<compile_context>
chip_gen: v5e
topology: v5e:2x2
jax: 0.10.0
libtpu: 0.0.40
codegen_flags: <defaults>
</compile_context>

<pallas_src>
import functools

import jax
import jax.numpy as jnp
from jax.experimental import pallas as pl
from jax.experimental.pallas import tpu as pltpu

LANE = 128   # vreg lane width (all TPU generations)
SUB = 8      # f32 sublane count


def _round_up(x, m):
    return ((x + m - 1) // m) * m


def _pad_to(x, shape):
    return jnp.pad(x, [(0, s - d) for d, s in zip(x.shape, shape)])


# ----------------------------------------------------------------------------
# Encoder kernel: conv-as-matmul + ReLU + global-avg-pool + fc + ReLU, fused.
# ----------------------------------------------------------------------------
def _encoder_kernel(patch_ref, convw_ref, convb_ref, fcw_ref, fcb_ref, out_ref):
    x = patch_ref[0]                                             # (HW, CKKp) bf16
    h = jnp.dot(x, convw_ref[...], preferred_element_type=jnp.float32)
    h = jnp.maximum(h + convb_ref[...], 0.0)                     # (HW, Cfp) f32
    pooled = jnp.mean(h, axis=0, keepdims=True)                  # fused global avg pool
    f = jnp.dot(pooled.astype(fcw_ref.dtype), fcw_ref[...],
                preferred_element_type=jnp.float32)
    f = jnp.maximum(f + fcb_ref[...], 0.0)                       # (1, Ep)
    # nn.Dropout(0.5): identity in eval mode.
    out_ref[0] = f.astype(out_ref.dtype)


def encoder_forward(images, enc):
    """images (N,C,H,W) f32 -> padded features (N, Ep) f32 (cols >= embedSize are 0)."""
    n, c, hi, wi = images.shape
    k = 3
    ho, wo = hi - k + 1, wi - k + 1
    hw = ho * wo
    ckk = c * k * k
    ckk_p, cf_p = enc["conv_w"].shape
    e_p = enc["fc_w"].shape[1]

    # im2col (glue), zero-pad contraction dim to a lane multiple, bf16 MXU inputs.
    patches = jax.lax.conv_general_dilated_patches(
        images, filter_shape=(k, k), window_strides=(1, 1), padding="VALID",
        dimension_numbers=("NCHW", "OIHW", "NCHW"))              # (N, CKK, Ho, Wo)
    patches = jnp.transpose(patches, (0, 2, 3, 1)).reshape(n, hw, ckk)
    patches = _pad_to(patches, (n, hw, ckk_p)).astype(jnp.bfloat16)

    feats = pl.pallas_call(
        _encoder_kernel,
        out_shape=jax.ShapeDtypeStruct((n, 1, e_p), jnp.float32),
        grid_spec=pltpu.PrefetchScalarGridSpec(
            num_scalar_prefetch=0,
            grid=(n,),
            in_specs=[
                pl.BlockSpec((1, hw, ckk_p), lambda i: (i, 0, 0)),
                pl.BlockSpec((ckk_p, cf_p), lambda i: (0, 0)),
                pl.BlockSpec((1, cf_p), lambda i: (0, 0)),
                pl.BlockSpec((cf_p, e_p), lambda i: (0, 0)),
                pl.BlockSpec((1, e_p), lambda i: (0, 0)),
            ],
            out_specs=pl.BlockSpec((1, 1, e_p), lambda i: (i, 0, 0)),
        ),
        compiler_params=pltpu.CompilerParams(
            dimension_semantics=("parallel",)),      # lets both v7x TCs take images
    )(patches, enc["conv_w"], enc["conv_b"], enc["fc_w"], enc["fc_b"])
    return feats[:, 0, :]                                         # (N, Ep)


# ----------------------------------------------------------------------------
# Decoder kernel: all LSTM layers + whole time loop + vocab projection, fused.
# PyTorch gate order: i, f, g, o.
# ----------------------------------------------------------------------------
def _decoder_kernel(*refs, num_layers, seq_len, batch_p):
    x0_ref = refs[0]
    layer_refs = refs[1:1 + 3 * num_layers]
    linw_ref, linb_ref, out_ref, act_scr, xproj_scr = refs[1 + 3 * num_layers:]

    h_p = act_scr.shape[1]
    bp = batch_p

    for li in range(num_layers):
        wih_ref, whh_ref, b_ref = layer_refs[3 * li:3 * li + 3]

        # Input projection hoisted out of the recurrence: one MXU matmul over
        # all timesteps (T*Bp rows), bf16 inputs / f32 accumulation.
        x_in = x0_ref[...] if li == 0 else act_scr[...]
        xproj_scr[...] = (
            jnp.dot(x_in.astype(wih_ref.dtype), wih_ref[...],
                    preferred_element_type=jnp.float32)
            + b_ref[...])

        whh = whh_ref[...]                                        # (Hp, 4Hp) f32

        def step(t, carry, whh=whh):
            h, c = carry
            row = pl.multiple_of(t * bp, bp)
            gates = xproj_scr[pl.ds(row, bp), :] + jnp.dot(
                h, whh, preferred_element_type=jnp.float32)       # (Bp, 4Hp)
            # 128-lane-aligned gate slices -> pure VPU/EUP work.
            i_g = jax.nn.sigmoid(gates[:, 0 * h_p:1 * h_p])
            f_g = jax.nn.sigmoid(gates[:, 1 * h_p:2 * h_p])
            g_g = jnp.tanh(gates[:, 2 * h_p:3 * h_p])
            o_g = jax.nn.sigmoid(gates[:, 3 * h_p:4 * h_p])
            c_new = f_g * c + i_g * g_g
            h_new = o_g * jnp.tanh(c_new)
            act_scr[pl.ds(row, bp), :] = h_new
            return h_new, c_new

        zeros = jnp.zeros((bp, h_p), jnp.float32)
        jax.lax.fori_loop(0, seq_len, step, (zeros, zeros), unroll=True)

    # Final hidden -> vocab projection fused in-kernel; lane-dense (T*Bp, Vp) store.
    logits = jnp.dot(act_scr[...].astype(linw_ref.dtype), linw_ref[...],
                     preferred_element_type=jnp.float32) + linb_ref[...]
    out_ref[...] = logits.astype(out_ref.dtype)


def decoder_forward(features_p, captions, dec, *, vocab_size):
    t_cap, b = captions.shape
    t = t_cap + 1
    e_p = dec["embed"].shape[1]
    h_p = dec["lstm"][0]["w_hh"].shape[0]
    v_p = dec["lin_w"].shape[1]
    b_p = _round_up(b, SUB)
    num_layers = len(dec["lstm"])

    # Embedding gather + dropout(identity) + concat(features, emb) -- glue.
    # TODO(synk): for large vocab/seq this gather could move into the kernel via
    #             PrefetchScalarGridSpec(num_scalar_prefetch=1) + pl.Element rows.
    emb = jnp.take(dec["embed"], captions, axis=0)                # (T-1, B, Ep)
    x = jnp.concatenate([features_p[None, :, :], emb], axis=0)    # (T, B, Ep)
    x = jnp.pad(x, ((0, 0), (0, b_p - b), (0, 0)))                # (T, Bp, Ep)
    x0 = x.reshape(t * b_p, e_p)

    args = [x0]
    for layer in dec["lstm"]:
        args += [layer["w_ih"], layer["w_hh"], layer["b"]]
    args += [dec["lin_w"], dec["lin_b"]]

    out = pl.pallas_call(
        functools.partial(_decoder_kernel, num_layers=num_layers,
                          seq_len=t, batch_p=b_p),
        out_shape=jax.ShapeDtypeStruct((t * b_p, v_p), jnp.float32),
        in_specs=[pl.BlockSpec(memory_space=pltpu.MemorySpace.VMEM)] * len(args),
        out_specs=pl.BlockSpec(memory_space=pltpu.MemorySpace.VMEM),
        scratch_shapes=[
            pltpu.VMEM((t * b_p, h_p), jnp.float32),              # inter-layer activations
            pltpu.VMEM((t * b_p, 4 * h_p), jnp.float32),          # hoisted input projection
        ],
        compiler_params=pltpu.CompilerParams(
            vmem_limit_bytes=32 * 1024 * 1024),                   # safe on v5e/v6e/v7x
    )(*args)

    return out.reshape(t, b_p, v_p)[:, :b, :vocab_size]           # (T, B, vocab)


def cnn_to_rnn_forward(images, captions, params, *, vocab_size):
    features = encoder_forward(images, params["enc"])
    return decoder_forward(features, captions, params["dec"], vocab_size=vocab_size)


# ----------------------------------------------------------------------------
# Deterministic parameter init (logical weights, zero-padded to TPU-dense shapes)
# ----------------------------------------------------------------------------
def init_params(key, *, embed_size, hidden_size, vocab_size, num_layers,
                in_ch, conv_feat):
    ks = iter(jax.random.split(key, 8 + 3 * num_layers))
    s = 0.1
    ckk = in_ch * 9
    ckk_p = _round_up(ckk, LANE)
    cf_p = _round_up(conv_feat, LANE)
    e_p = _round_up(embed_size, LANE)
    h_p = _round_up(hidden_size, LANE)
    v_p = _round_up(vocab_size, LANE)

    def w(shape):
        return s * jax.random.normal(next(ks), shape, jnp.float32)

    def pad_gates(m, rows_p):
        # (rows, 4H) -> (rows_p, 4*Hp): pad each gate block separately so gate
        # slices stay 128-lane aligned and padded hidden units stay exactly 0.
        rows = m.shape[0]
        m4 = m.reshape(rows, 4, hidden_size)
        m4 = jnp.pad(m4, ((0, rows_p - rows), (0, 0), (0, h_p - hidden_size)))
        return m4.reshape(rows_p, 4 * h_p)

    # TODO(synk): pretrained inception_v3 backbone has no Pallas/checkpoint
    #             equivalent; replaced by a deterministic 3x3-conv stand-in.
    enc = {
        "conv_w": _pad_to(w((ckk, conv_feat)), (ckk_p, cf_p)).astype(jnp.bfloat16),
        "conv_b": _pad_to(w((1, conv_feat)), (1, cf_p)),
        "fc_w": _pad_to(w((conv_feat, embed_size)), (cf_p, e_p)).astype(jnp.bfloat16),
        "fc_b": _pad_to(w((1, embed_size)), (1, e_p)),
    }

    lstm = []
    for layer in range(num_layers):
        in_dim = embed_size if layer == 0 else hidden_size
        in_p = e_p if layer == 0 else h_p
        lstm.append({
            "w_ih": pad_gates(w((in_dim, 4 * hidden_size)), in_p).astype(jnp.bfloat16),
            "w_hh": pad_gates(w((hidden_size, 4 * hidden_size)), h_p),
            # folded b_ih + b_hh (a real checkpoint must sum both bias vectors)
            "b": pad_gates(w((1, 4 * hidden_size)), 1),
        })

    dec = {
        "embed": _pad_to(w((vocab_size, embed_size)), (vocab_size, e_p)),
        "lstm": lstm,
        "lin_w": _pad_to(w((hidden_size, vocab_size)), (h_p, v_p)).astype(jnp.bfloat16),
        "lin_b": _pad_to(w((1, vocab_size)), (1, v_p)),
    }
    return {"enc": enc, "dec": dec}


if __name__ == "__main__":
    embedSize, hiddenSize, vocabSize, numLayers = 32, 32, 64, 2
    B, C, Hi, Wi, seqLen = 2, 4, 16, 16, 8
    convFeat = 8

    key = jax.random.PRNGKey(0)
    k_img, k_cap, k_par = jax.random.split(key, 3)

    images = jax.random.normal(k_img, (B, C, Hi, Wi), jnp.float32)
    captions = jax.random.randint(k_cap, (seqLen, B), 0, vocabSize, dtype=jnp.int32)
    params = init_params(k_par, embed_size=embedSize, hidden_size=hiddenSize,
                         vocab_size=vocabSize, num_layers=numLayers,
                         in_ch=C, conv_feat=convFeat)

    fwd = jax.jit(functools.partial(cnn_to_rnn_forward, vocab_size=vocabSize))
    out = jax.block_until_ready(fwd(images, captions, params))

    assert out.shape == (seqLen + 1, B, vocabSize), out.shape
    assert bool(jnp.all(jnp.isfinite(out)))
    print("KERNEL_OK")
</pallas_src>

<mosaic_0001>
module attributes {stable_mosaic.version = 11 : i64} {
  func.func @_encoder_kernel(%arg0: i32, %arg1: memref<1x196x128xbf16, #tpu.memory_space<vmem>>, %arg2: memref<128x128xbf16, #tpu.memory_space<vmem>>, %arg3: memref<1x128xf32, #tpu.memory_space<vmem>>, %arg4: memref<128x128xbf16, #tpu.memory_space<vmem>>, %arg5: memref<1x128xf32, #tpu.memory_space<vmem>>, %arg6: memref<1x1x128xf32, #tpu.memory_space<vmem>>) attributes {dimension_semantics = [#tpu.dimension_semantics<parallel>], iteration_bounds = array<i64: 2>, scalar_prefetch = 0 : i64, scratch_operands = 0 : i64, tpu.core_type = #tpu.core_type<tc>, window_params = [{transform_indices = @transform_0, window_bounds = array<i64: 1, 196, 128>}, {pipeline_mode = #tpu.pipeline_mode<synchronous>, transform_indices = @transform_1, window_bounds = array<i64: 128, 128>}, {pipeline_mode = #tpu.pipeline_mode<synchronous>, transform_indices = @transform_2, window_bounds = array<i64: 1, 128>}, {pipeline_mode = #tpu.pipeline_mode<synchronous>, transform_indices = @transform_3, window_bounds = array<i64: 128, 128>}, {pipeline_mode = #tpu.pipeline_mode<synchronous>, transform_indices = @transform_4, window_bounds = array<i64: 1, 128>}, {transform_indices = @transform_5, window_bounds = array<i64: 1, 1, 128>}]} {
    %c0 = arith.constant 0 : index
    %c0_0 = arith.constant 0 : index
    %c0_1 = arith.constant 0 : index
    %0 = vector.load %arg1[%c0, %c0_0, %c0_1] : memref<1x196x128xbf16, #tpu.memory_space<vmem>>, vector<1x196x128xbf16>
    %1 = vector.shape_cast %0 : vector<1x196x128xbf16> to vector<196x128xbf16>
    %c0_2 = arith.constant 0 : index
    %c0_3 = arith.constant 0 : index
    %2 = vector.load %arg2[%c0_2, %c0_3] : memref<128x128xbf16, #tpu.memory_space<vmem>>, vector<128x128xbf16>
    %cst = arith.constant dense<0.000000e+00> : vector<196x128xf32>
    %3 = tpu.matmul %1, %2, %cst {dimension_numbers = #tpu.dot_dimension_numbers<[1], [0], [0], [1], [0, 0, 1, 1], [], []>} : vector<196x128xbf16>, vector<128x128xbf16>, vector<196x128xf32> -> vector<196x128xf32>
    %c0_4 = arith.constant 0 : index
    %c0_5 = arith.constant 0 : index
    %4 = vector.load %arg3[%c0_4, %c0_5] : memref<1x128xf32, #tpu.memory_space<vmem>>, vector<1x128xf32>
    %5 = vector.broadcast %4 : vector<1x128xf32> to vector<196x128xf32>
    %6 = arith.addf %3, %5 : vector<196x128xf32>
    %cst_6 = arith.constant 0.000000e+00 : f32
    %7 = vector.broadcast %cst_6 : f32 to vector<196x128xf32>
    %8 = arith.maximumf %6, %7 : vector<196x128xf32>
    %cst_7 = arith.constant dense<0.000000e+00> : vector<128xf32>
    %9 = vector.multi_reduction <add>, %8, %cst_7 [0] : vector<196x128xf32> to vector<128xf32>
    %10 = vector.shape_cast %9 : vector<128xf32> to vector<1x128xf32>
    %cst_8 = arith.constant 1.960000e+02 : f32
    %11 = vector.broadcast %cst_8 : f32 to vector<1x128xf32>
    %12 = arith.divf %10, %11 : vector<1x128xf32>
    %13 = arith.truncf %12 : vector<1x128xf32> to vector<1x128xbf16>
    %c0_9 = arith.constant 0 : index
    %c0_10 = arith.constant 0 : index
    %14 = vector.load %arg4[%c0_9, %c0_10] : memref<128x128xbf16, #tpu.memory_space<vmem>>, vector<128x128xbf16>
    %cst_11 = arith.constant dense<0.000000e+00> : vector<1x128xf32>
    %15 = tpu.matmul %13, %14, %cst_11 {dimension_numbers = #tpu.dot_dimension_numbers<[1], [0], [0], [1], [0, 0, 1, 1], [], []>} : vector<1x128xbf16>, vector<128x128xbf16>, vector<1x128xf32> -> vector<1x128xf32>
    %c0_12 = arith.constant 0 : index
    %c0_13 = arith.constant 0 : index
    %16 = vector.load %arg5[%c0_12, %c0_13] : memref<1x128xf32, #tpu.memory_space<vmem>>, vector<1x128xf32>
    %17 = arith.addf %15, %16 : vector<1x128xf32>
    %cst_14 = arith.constant 0.000000e+00 : f32
    %18 = vector.broadcast %cst_14 : f32 to vector<1x128xf32>
    %19 = arith.maximumf %17, %18 : vector<1x128xf32>
    %c0_15 = arith.constant 0 : index
    %c0_16 = arith.constant 0 : index
    %c0_17 = arith.constant 0 : index
    %20 = vector.load %arg6[%c0_15, %c0_16, %c0_17] : memref<1x1x128xf32, #tpu.memory_space<vmem>>, vector<1x1x128xf32>
    %21 = vector.shape_cast %20 : vector<1x1x128xf32> to vector<1x128xf32>
    %22 = vector.shape_cast %19 : vector<1x128xf32> to vector<1x1x128xf32>
    tpu.vector_store %arg6[%c0_15, %c0_16, %c0_17], %22 {strides = array<i32>} : memref<1x1x128xf32, #tpu.memory_space<vmem>>, vector<1x1x128xf32>,
    return
  }
  func.func @transform_0(%arg0: i32) -> (i32, i32, i32) {
    %c0_i32 = arith.constant 0 : i32
    %c0_i32_0 = arith.constant 0 : i32
    %c0_i32_1 = arith.constant 0 : i32
    return %arg0, %c0_i32, %c0_i32_0 : i32, i32, i32
  }
  func.func @transform_1(%arg0: i32) -> (i32, i32) {
    %c0_i32 = arith.constant 0 : i32
    %c0_i32_0 = arith.constant 0 : i32
    %c0_i32_1 = arith.constant 0 : i32
    return %c0_i32, %c0_i32_0 : i32, i32
  }
  func.func @transform_2(%arg0: i32) -> (i32, i32) {
    %c0_i32 = arith.constant 0 : i32
    %c0_i32_0 = arith.constant 0 : i32
    %c0_i32_1 = arith.constant 0 : i32
    return %c0_i32, %c0_i32_0 : i32, i32
  }
  func.func @transform_3(%arg0: i32) -> (i32, i32) {
    %c0_i32 = arith.constant 0 : i32
    %c0_i32_0 = arith.constant 0 : i32
    %c0_i32_1 = arith.constant 0 : i32
    return %c0_i32, %c0_i32_0 : i32, i32
  }
  func.func @transform_4(%arg0: i32) -> (i32, i32) {
    %c0_i32 = arith.constant 0 : i32
    %c0_i32_0 = arith.constant 0 : i32
    %c0_i32_1 = arith.constant 0 : i32
    return %c0_i32, %c0_i32_0 : i32, i32
  }
  func.func @transform_5(%arg0: i32) -> (i32, i32, i32) {
    %c0_i32 = arith.constant 0 : i32
    %c0_i32_0 = arith.constant 0 : i32
    %c0_i32_1 = arith.constant 0 : i32
    return %arg0, %c0_i32, %c0_i32_0 : i32, i32, i32
  }
}

module attributes {stable_mosaic.version = 11 : i64} {
  func.func @_decoder_kernel(%arg0: memref<72x128xf32, #tpu.memory_space<vmem>>, %arg1: memref<128x512xbf16, #tpu.memory_space<vmem>>, %arg2: memref<128x512xf32, #tpu.memory_space<vmem>>, %arg3: memref<1x512xf32, #tpu.memory_space<vmem>>, %arg4: memref<128x512xbf16, #tpu.memory_space<vmem>>, %arg5: memref<128x512xf32, #tpu.memory_space<vmem>>, %arg6: memref<1x512xf32, #tpu.memory_space<vmem>>, %arg7: memref<128x128xbf16, #tpu.memory_space<vmem>>, %arg8: memref<1x128xf32, #tpu.memory_space<vmem>>, %arg9: memref<72x128xf32, #tpu.memory_space<vmem>>, %arg10: memref<72x128xf32, #tpu.memory_space<vmem>>, %arg11: memref<72x512xf32, #tpu.memory_space<vmem>>) attributes {dimension_semantics = [], scalar_prefetch = 0 : i64, scratch_operands = 2 : i64, tpu.core_type = #tpu.core_type<tc>} {
    %c0 = arith.constant 0 : index
    %c0_0 = arith.constant 0 : index
    %0 = vector.load %arg0[%c0, %c0_0] : memref<72x128xf32, #tpu.memory_space<vmem>>, vector<72x128xf32>
    %1 = arith.truncf %0 : vector<72x128xf32> to vector<72x128xbf16>
    %c0_1 = arith.constant 0 : index
    %c0_2 = arith.constant 0 : index
    %2 = vector.load %arg1[%c0_1, %c0_2] : memref<128x512xbf16, #tpu.memory_space<vmem>>, vector<128x512xbf16>
    %cst = arith.constant dense<0.000000e+00> : vector<72x512xf32>
    %3 = tpu.matmul %1, %2, %cst {dimension_numbers = #tpu.dot_dimension_numbers<[1], [0], [0], [1], [0, 0, 1, 1], [], []>} : vector<72x128xbf16>, vector<128x512xbf16>, vector<72x512xf32> -> vector<72x512xf32>
    %c0_3 = arith.constant 0 : index
    %c0_4 = arith.constant 0 : index
    %4 = vector.load %arg3[%c0_3, %c0_4] : memref<1x512xf32, #tpu.memory_space<vmem>>, vector<1x512xf32>
    %5 = vector.broadcast %4 : vector<1x512xf32> to vector<72x512xf32>
    %6 = arith.addf %3, %5 : vector<72x512xf32>
    %c0_5 = arith.constant 0 : index
    %c0_6 = arith.constant 0 : index
    %7 = vector.load %arg11[%c0_5, %c0_6] : memref<72x512xf32, #tpu.memory_space<vmem>>, vector<72x512xf32>
    tpu.vector_store %arg11[%c0_5, %c0_6], %6 {strides = array<i32>} : memref<72x512xf32, #tpu.memory_space<vmem>>, vector<72x512xf32>,
    %c0_7 = arith.constant 0 : index
    %c0_8 = arith.constant 0 : index
    %8 = vector.load %arg2[%c0_7, %c0_8] : memref<128x512xf32, #tpu.memory_space<vmem>>, vector<128x512xf32>
    %cst_9 = arith.constant 0.000000e+00 : f32
    %9 = vector.broadcast %cst_9 : f32 to vector<8x128xf32>
    %c0_i32 = arith.constant 0 : i32
    %c8_i32 = arith.constant 8 : i32
    %10 = arith.muli %c0_i32, %c8_i32 : i32
    %11 = tpu.assume_multiple %10, 8 : i32
    %12 = arith.index_cast %11 : i32 to index
    %c0_10 = arith.constant 0 : index
    %13 = vector.load %arg11[%12, %c0_10] : memref<72x512xf32, #tpu.memory_space<vmem>>, vector<8x512xf32>
    %cst_11 = arith.constant dense<0.000000e+00> : vector<8x512xf32>
    %14 = tpu.matmul %9, %8, %cst_11 {dimension_numbers = #tpu.dot_dimension_numbers<[1], [0], [0], [1], [0, 0, 1, 1], [], []>} : vector<8x128xf32>, vector<128x512xf32>, vector<8x512xf32> -> vector<8x512xf32>
    %15 = arith.addf %13, %14 : vector<8x512xf32>
    %16 = vector.extract_strided_slice %15 {offsets = [0, 0], sizes = [8, 128], strides = [1, 1]} : vector<8x512xf32> to vector<8x128xf32>
    %17 = arith.negf %16 : vector<8x128xf32>
    %18 = math.exp %17 : vector<8x128xf32>
    %cst_12 = arith.constant 1.000000e+00 : f32
    %19 = vector.broadcast %cst_12 : f32 to vector<8x128xf32>
    %20 = arith.addf %19, %18 : vector<8x128xf32>
    %21 = arith.divf %19, %20 : vector<8x128xf32>
    %22 = vector.extract_strided_slice %15 {offsets = [0, 128], sizes = [8, 128], strides = [1, 1]} : vector<8x512xf32> to vector<8x128xf32>
    %23 = arith.negf %22 : vector<8x128xf32>
    %24 = math.exp %23 : vector<8x128xf32>
    %cst_13 = arith.constant 1.000000e+00 : f32
    %25 = vector.broadcast %cst_13 : f32 to vector<8x128xf32>
    %26 = arith.addf %25, %24 : vector<8x128xf32>
    %27 = arith.divf %25, %26 : vector<8x128xf32>
    %28 = vector.extract_strided_slice %15 {offsets = [0, 256], sizes = [8, 128], strides = [1, 1]} : vector<8x512xf32> to vector<8x128xf32>
    %29 = math.tanh %28 : vector<8x128xf32>
    %30 = vector.extract_strided_slice %15 {offsets = [0, 384], sizes = [8, 128], strides = [1, 1]} : vector<8x512xf32> to vector<8x128xf32>
    %31 = arith.negf %30 : vector<8x128xf32>
    %32 = math.exp %31 : vector<8x128xf32>
    %cst_14 = arith.constant 1.000000e+00 : f32
    %33 = vector.broadcast %cst_14 : f32 to vector<8x128xf32>
    %34 = arith.addf %33, %32 : vector<8x128xf32>
    %35 = arith.divf %33, %34 : vector<8x128xf32>
    %36 = arith.mulf %27, %9 : vector<8x128xf32>
    %37 = arith.mulf %21, %29 : vector<8x128xf32>
    %38 = arith.addf %36, %37 : vector<8x128xf32>
    %39 = math.tanh %38 : vector<8x128xf32>
    %40 = arith.mulf %35, %39 : vector<8x128xf32>
    %41 = arith.index_cast %11 : i32 to index
    %c0_15 = arith.constant 0 : index
    %42 = vector.load %arg10[%41, %c0_15] : memref<72x128xf32, #tpu.memory_space<vmem>>, vector<8x128xf32>
    tpu.vector_store %arg10[%41, %c0_15], %40 {strides = array<i32>} : memref<72x128xf32, #tpu.memory_space<vmem>>, vector<8x128xf32>,
    %c1_i32 = arith.constant 1 : i32
    %c8_i32_16 = arith.constant 8 : i32
    %43 = arith.muli %c1_i32, %c8_i32_16 : i32
    %44 = tpu.assume_multiple %43, 8 : i32
    %45 = arith.index_cast %44 : i32 to index
    %c0_17 = arith.constant 0 : index
    %46 = vector.load %arg11[%45, %c0_17] : memref<72x512xf32, #tpu.memory_space<vmem>>, vector<8x512xf32>
    %cst_18 = arith.constant dense<0.000000e+00> : vector<8x512xf32>
    %47 = tpu.matmul %40, %8, %cst_18 {dimension_numbers = #tpu.dot_dimension_numbers<[1], [0], [0], [1], [0, 0, 1, 1], [], []>} : vector<8x128xf32>, vector<128x512xf32>, vector<8x512xf32> -> vector<8x512xf32>
    %48 = arith.addf %46, %47 : vector<8x512xf32>
    %49 = vector.extract_strided_slice %48 {offsets = [0, 0], sizes = [8, 128], strides = [1, 1]} : vector<8x512xf32> to vector<8x128xf32>
    %50 = arith.negf %49 : vector<8x128xf32>
    %51 = math.exp %50 : vector<8x128xf32>
    %cst_19 = arith.constant 1.000000e+00 : f32
    %52 = vector.broadcast %cst_19 : f32 to vector<8x128xf32>
    %53 = arith.addf %52, %51 : vector<8x128xf32>
    %54 = arith.divf %52, %53 : vector<8x128xf32>
    %55 = vector.extract_strided_slice %48 {offsets = [0, 128], sizes = [8, 128], strides = [1, 1]} : vector<8x512xf32> to vector<8x128xf32>
    %56 = arith.negf %55 : vector<8x128xf32>
    %57 = math.exp %56 : vector<8x128xf32>
    %cst_20 = arith.constant 1.000000e+00 : f32
    %58 = vector.broadcast %cst_20 : f32 to vector<8x128xf32>
    %59 = arith.addf %58, %57 : vector<8x128xf32>
    %60 = arith.divf %58, %59 : vector<8x128xf32>
    %61 = vector.extract_strided_slice %48 {offsets = [0, 256], sizes = [8, 128], strides = [1, 1]} : vector<8x512xf32> to vector<8x128xf32>
    %62 = math.tanh %61 : vector<8x128xf32>
    %63 = vector.extract_strided_slice %48 {offsets = [0, 384], sizes = [8, 128], strides = [1, 1]} : vector<8x512xf32> to vector<8x128xf32>
    %64 = arith.negf %63 : vector<8x128xf32>
    %65 = math.exp %64 : vector<8x128xf32>
    %cst_21 = arith.constant 1.000000e+00 : f32
    %66 = vector.broadcast %cst_21 : f32 to vector<8x128xf32>
    %67 = arith.addf %66, %65 : vector<8x128xf32>
    %68 = arith.divf %66, %67 : vector<8x128xf32>
    %69 = arith.mulf %60, %38 : vector<8x128xf32>
    %70 = arith.mulf %54, %62 : vector<8x128xf32>
    %71 = arith.addf %69, %70 : vector<8x128xf32>
    %72 = math.tanh %71 : vector<8x128xf32>
    %73 = arith.mulf %68, %72 : vector<8x128xf32>
    %74 = arith.index_cast %44 : i32 to index
    %c0_22 = arith.constant 0 : index
    %75 = vector.load %arg10[%74, %c0_22] : memref<72x128xf32, #tpu.memory_space<vmem>>, vector<8x128xf32>
    tpu.vector_store %arg10[%74, %c0_22], %73 {strides = array<i32>} : memref<72x128xf32, #tpu.memory_space<vmem>>, vector<8x128xf32>,
    %c2_i32 = arith.constant 2 : i32
    %c8_i32_23 = arith.constant 8 : i32
    %76 = arith.muli %c2_i32, %c8_i32_23 : i32
    %77 = tpu.assume_multiple %76, 8 : i32
    %78 = arith.index_cast %77 : i32 to index
    %c0_24 = arith.constant 0 : index
    %79 = vector.load %arg11[%78, %c0_24] : memref<72x512xf32, #tpu.memory_space<vmem>>, vector<8x512xf32>
    %cst_25 = arith.constant dense<0.000000e+00> : vector<8x512xf32>
    %80 = tpu.matmul %73, %8, %cst_25 {dimension_numbers = #tpu.dot_dimension_numbers<[1], [0], [0], [1], [0, 0, 1, 1], [], []>} : vector<8x128xf32>, vector<128x512xf32>, vector<8x512xf32> -> vector<8x512xf32>
    %81 = arith.addf %79, %80 : vector<8x512xf32>
    %82 = vector.extract_strided_slice %81 {offsets = [0, 0], sizes = [8, 128], strides = [1, 1]} : vector<8x512xf32> to vector<8x128xf32>
    %83 = arith.negf %82 : vector<8x128xf32>
    %84 = math.exp %83 : vector<8x128xf32>
    %cst_26 = arith.constant 1.000000e+00 : f32
    %85 = vector.broadcast %cst_26 : f32 to vector<8x128xf32>
    %86 = arith.addf %85, %84 : vector<8x128xf32>
    %87 = arith.divf %85, %86 : vector<8x128xf32>
    %88 = vector.extract_strided_slice %81 {offsets = [0, 128], sizes = [8, 128], strides = [1, 1]} : vector<8x512xf32> to vector<8x128xf32>
    %89 = arith.negf %88 : vector<8x128xf32>
    %90 = math.exp %89 : vector<8x128xf32>
    %cst_27 = arith.constant 1.000000e+00 : f32
    %91 = vector.broadcast %cst_27 : f32 to vector<8x128xf32>
    %92 = arith.addf %91, %90 : vector<8x128xf32>
    %93 = arith.divf %91, %92 : vector<8x128xf32>
    %94 = vector.extract_strided_slice %81 {offsets = [0, 256], sizes = [8, 128], strides = [1, 1]} : vector<8x512xf32> to vector<8x128xf32>
    %95 = math.tanh %94 : vector<8x128xf32>
    %96 = vector.extract_strided_slice %81 {offsets = [0, 384], sizes = [8, 128], strides = [1, 1]} : vector<8x512xf32> to vector<8x128xf32>
    %97 = arith.negf %96 : vector<8x128xf32>
    %98 = math.exp %97 : vector<8x128xf32>
    %cst_28 = arith.constant 1.000000e+00 : f32
    %99 = vector.broadcast %cst_28 : f32 to vector<8x128xf32>
    %100 = arith.addf %99, %98 : vector<8x128xf32>
    %101 = arith.divf %99, %100 : vector<8x128xf32>
    %102 = arith.mulf %93, %71 : vector<8x128xf32>
    %103 = arith.mulf %87, %95 : vector<8x128xf32>
    %104 = arith.addf %102, %103 : vector<8x128xf32>
    %105 = math.tanh %104 : vector<8x128xf32>
    %106 = arith.mulf %101, %105 : vector<8x128xf32>
    %107 = arith.index_cast %77 : i32 to index
    %c0_29 = arith.constant 0 : index
    %108 = vector.load %arg10[%107, %c0_29] : memref<72x128xf32, #tpu.memory_space<vmem>>, vector<8x128xf32>
    tpu.vector_store %arg10[%107, %c0_29], %106 {strides = array<i32>} : memref<72x128xf32, #tpu.memory_space<vmem>>, vector<8x128xf32>,
    %c3_i32 = arith.constant 3 : i32
    %c8_i32_30 = arith.constant 8 : i32
    %109 = arith.muli %c3_i32, %c8_i32_30 : i32
    %110 = tpu.assume_multiple %109, 8 : i32
    %111 = arith.index_cast %110 : i32 to index
    %c0_31 = arith.constant 0 : index
    %112 = vector.load %arg11[%111, %c0_31] : memref<72x512xf32, #tpu.memory_space<vmem>>, vector<8x512xf32>
    %cst_32 = arith.constant dense<0.000000e+00> : vector<8x512xf32>
    %113 = tpu.matmul %106, %8, %cst_32 {dimension_numbers = #tpu.dot_dimension_numbers<[1], [0], [0], [1], [0, 0, 1, 1], [], []>} : vector<8x128xf32>, vector<128x512xf32>, vector<8x512xf32> -> vector<8x512xf32>
    %114 = arith.addf %112, %113 : vector<8x512xf32>
    %115 = vector.extract_strided_slice %114 {offsets = [0, 0], sizes = [8, 128], strides = [1, 1]} : vector<8x512xf32> to vector<8x128xf32>
    %116 = arith.negf %115 : vector<8x128xf32>
    %117 = math.exp %116 : vector<8x128xf32>
    %cst_33 = arith.constant 1.000000e+00 : f32
    %118 = vector.broadcast %cst_33 : f32 to vector<8x128xf32>
    %119 = arith.addf %118, %117 : vector<8x128xf32>
    %120 = arith.divf %118, %119 : vector<8x128xf32>
    %121 = vector.extract_strided_slice %114 {offsets = [0, 128], sizes = [8, 128], strides = [1, 1]} : vector<8x512xf32> to vector<8x128xf32>
    %122 = arith.negf %121 : vector<8x128xf32>
    %123 = math.exp %122 : vector<8x128xf32>
    %cst_34 = arith.constant 1.000000e+00 : f32
    %124 = vector.broadcast %cst_34 : f32 to vector<8x128xf32>
    %125 = arith.addf %124, %123 : vector<8x128xf32>
    %126 = arith.divf %124, %125 : vector<8x128xf32>
    %127 = vector.extract_strided_slice %114 {offsets = [0, 256], sizes = [8, 128], strides = [1, 1]} : vector<8x512xf32> to vector<8x128xf32>
    %128 = math.tanh %127 : vector<8x128xf32>
    %129 = vector.extract_strided_slice %114 {offsets = [0, 384], sizes = [8, 128], strides = [1, 1]} : vector<8x512xf32> to vector<8x128xf32>
    %130 = arith.negf %129 : vector<8x128xf32>
    %131 = math.exp %130 : vector<8x128xf32>
    %cst_35 = arith.constant 1.000000e+00 : f32
    %132 = vector.broadcast %cst_35 : f32 to vector<8x128xf32>
    %133 = arith.addf %132, %131 : vector<8x128xf32>
    %134 = arith.divf %132, %133 : vector<8x128xf32>
    %135 = arith.mulf %126, %104 : vector<8x128xf32>
    %136 = arith.mulf %120, %128 : vector<8x128xf32>
    %137 = arith.addf %135, %136 : vector<8x128xf32>
    %138 = math.tanh %137 : vector<8x128xf32>
    %139 = arith.mulf %134, %138 : vector<8x128xf32>
    %140 = arith.index_cast %110 : i32 to index
    %c0_36 = arith.constant 0 : index
    %141 = vector.load %arg10[%140, %c0_36] : memref<72x128xf32, #tpu.memory_space<vmem>>, vector<8x128xf32>
    tpu.vector_store %arg10[%140, %c0_36], %139 {strides = array<i32>} : memref<72x128xf32, #tpu.memory_space<vmem>>, vector<8x128xf32>,
    %c4_i32 = arith.constant 4 : i32
    %c8_i32_37 = arith.constant 8 : i32
    %142 = arith.muli %c4_i32, %c8_i32_37 : i32
    %143 = tpu.assume_multiple %142, 8 : i32
    %144 = arith.index_cast %143 : i32 to index
    %c0_38 = arith.constant 0 : index
    %145 = vector.load %arg11[%144, %c0_38] : memref<72x512xf32, #tpu.memory_space<vmem>>, vector<8x512xf32>
    %cst_39 = arith.constant dense<0.000000e+00> : vector<8x512xf32>
    %146 = tpu.matmul %139, %8, %cst_39 {dimension_numbers = #tpu.dot_dimension_numbers<[1], [0], [0], [1], [0, 0, 1, 1], [], []>} : vector<8x128xf32>, vector<128x512xf32>, vector<8x512xf32> -> vector<8x512xf32>
    %147 = arith.addf %145, %146 : vector<8x512xf32>
    %148 = vector.extract_strided_slice %147 {offsets = [0, 0], sizes = [8, 128], strides = [1, 1]} : vector<8x512xf32> to vector<8x128xf32>
    %149 = arith.negf %148 : vector<8x128xf32>
    %150 = math.exp %149 : vector<8x128xf32>
    %cst_40 = arith.constant 1.000000e+00 : f32
    %151 = vector.broadcast %cst_40 : f32 to vector<8x128xf32>
    %152 = arith.addf %151, %150 : vector<8x128xf32>
    %153 = arith.divf %151, %152 : vector<8x128xf32>
    %154 = vector.extract_strided_slice %147 {offsets = [0, 128], sizes = [8, 128], strides = [1, 1]} : vector<8x512xf32> to vector<8x128xf32>
    %155 = arith.negf %154 : vector<8x128xf32>
    %156 = math.exp %155 : vector<8x128xf32>
    %cst_41 = arith.constant 1.000000e+00 : f32
    %157 = vector.broadcast %cst_41 : f32 to vector<8x128xf32>
    %158 = arith.addf %157, %156 : vector<8x128xf32>
    %159 = arith.divf %157, %158 : vector<8x128xf32>
    %160 = vector.extract_strided_slice %147 {offsets = [0, 256], sizes = [8, 128], strides = [1, 1]} : vector<8x512xf32> to vector<8x128xf32>
    %161 = math.tanh %160 : vector<8x128xf32>
    %162 = vector.extract_strided_slice %147 {offsets = [0, 384], sizes = [8, 128], strides = [1, 1]} : vector<8x512xf32> to vector<8x128xf32>
    %163 = arith.negf %162 : vector<8x128xf32>
    %164 = math.exp %163 : vector<8x128xf32>
    %cst_42 = arith.constant 1.000000e+00 : f32
    %165 = vector.broadcast %cst_42 : f32 to vector<8x128xf32>
    %166 = arith.addf %165, %164 : vector<8x128xf32>
    %167 = arith.divf %165, %166 : vector<8x128xf32>
    %168 = arith.mulf %159, %137 : vector<8x128xf32>
    %169 = arith.mulf %153, %161 : vector<8x128xf32>
    %170 = arith.addf %168, %169 : vector<8x128xf32>
    %171 = math.tanh %170 : vector<8x128xf32>
    %172 = arith.mulf %167, %171 : vector<8x128xf32>
    %173 = arith.index_cast %143 : i32 to index
    %c0_43 = arith.constant 0 : index
    %174 = vector.load %arg10[%173, %c0_43] : memref<72x128xf32, #tpu.memory_space<vmem>>, vector<8x128xf32>
    tpu.vector_store %arg10[%173, %c0_43], %172 {strides = array<i32>} : memref<72x128xf32, #tpu.memory_space<vmem>>, vector<8x128xf32>,
    %c5_i32 = arith.constant 5 : i32
    %c8_i32_44 = arith.constant 8 : i32
    %175 = arith.muli %c5_i32, %c8_i32_44 : i32
    %176 = tpu.assume_multiple %175, 8 : i32
    %177 = arith.index_cast %176 : i32 to index
    %c0_45 = arith.constant 0 : index
    %178 = vector.load %arg11[%177, %c0_45] : memref<72x512xf32, #tpu.memory_space<vmem>>, vector<8x512xf32>
    %cst_46 = arith.constant dense<0.000000e+00> : vector<8x512xf32>
    %179 = tpu.matmul %172, %8, %cst_46 {dimension_numbers = #tpu.dot_dimension_numbers<[1], [0], [0], [1], [0, 0, 1, 1], [], []>} : vector<8x128xf32>, vector<128x512xf32>, vector<8x512xf32> -> vector<8x512xf32>
    %180 = arith.addf %178, %179 : vector<8x512xf32>
    %181 = vector.extract_strided_slice %180 {offsets = [0, 0], sizes = [8, 128], strides = [1, 1]} : vector<8x512xf32> to vector<8x128xf32>
    %182 = arith.negf %181 : vector<8x128xf32>
    %183 = math.exp %182 : vector<8x128xf32>
    %cst_47 = arith.constant 1.000000e+00 : f32
    %184 = vector.broadcast %cst_47 : f32 to vector<8x128xf32>
    %185 = arith.addf %184, %183 : vector<8x128xf32>
    %186 = arith.divf %184, %185 : vector<8x128xf32>
    %187 = vector.extract_strided_slice %180 {offsets = [0, 128], sizes = [8, 128], strides = [1, 1]} : vector<8x512xf32> to vector<8x128xf32>
    %188 = arith.negf %187 : vector<8x128xf32>
    %189 = math.exp %188 : vector<8x128xf32>
    %cst_48 = arith.constant 1.000000e+00 : f32
    %190 = vector.broadcast %cst_48 : f32 to vector<8x128xf32>
    %191 = arith.addf %190, %189 : vector<8x128xf32>
    %192 = arith.divf %190, %191 : vector<8x128xf32>
    %193 = vector.extract_strided_slice %180 {offsets = [0, 256], sizes = [8, 128], strides = [1, 1]} : vector<8x512xf32> to vector<8x128xf32>
    %194 = math.tanh %193 : vector<8x128xf32>
    %195 = vector.extract_strided_slice %180 {offsets = [0, 384], sizes = [8, 128], strides = [1, 1]} : vector<8x512xf32> to vector<8x128xf32>
    %196 = arith.negf %195 : vector<8x128xf32>
    %197 = math.exp %196 : vector<8x128xf32>
    %cst_49 = arith.constant 1.000000e+00 : f32
    %198 = vector.broadcast %cst_49 : f32 to vector<8x128xf32>
    %199 = arith.addf %198, %197 : vector<8x128xf32>
    %200 = arith.divf %198, %199 : vector<8x128xf32>
    %201 = arith.mulf %192, %170 : vector<8x128xf32>
    %202 = arith.mulf %186, %194 : vector<8x128xf32>
    %203 = arith.addf %201, %202 : vector<8x128xf32>
    %204 = math.tanh %203 : vector<8x128xf32>
    %205 = arith.mulf %200, %204 : vector<8x128xf32>
    %206 = arith.index_cast %176 : i32 to index
    %c0_50 = arith.constant 0 : index
    %207 = vector.load %arg10[%206, %c0_50] : memref<72x128xf32, #tpu.memory_space<vmem>>, vector<8x128xf32>
    tpu.vector_store %arg10[%206, %c0_50], %205 {strides = array<i32>} : memref<72x128xf32, #tpu.memory_space<vmem>>, vector<8x128xf32>,
    %c6_i32 = arith.constant 6 : i32
    %c8_i32_51 = arith.constant 8 : i32
    %208 = arith.muli %c6_i32, %c8_i32_51 : i32
    %209 = tpu.assume_multiple %208, 8 : i32
    %210 = arith.index_cast %209 : i32 to index
    %c0_52 = arith.constant 0 : index
    %211 = vector.load %arg11[%210, %c0_52] : memref<72x512xf32, #tpu.memory_space<vmem>>, vector<8x512xf32>
    %cst_53 = arith.constant dense<0.000000e+00> : vector<8x512xf32>
    %212 = tpu.matmul %205, %8, %cst_53 {dimension_numbers = #tpu.dot_dimension_numbers<[1], [0], [0], [1], [0, 0, 1, 1], [], []>} : vector<8x128xf32>, vector<128x512xf32>, vector<8x512xf32> -> vector<8x512xf32>
    %213 = arith.addf %211, %212 : vector<8x512xf32>
    %214 = vector.extract_strided_slice %213 {offsets = [0, 0], sizes = [8, 128], strides = [1, 1]} : vector<8x512xf32> to vector<8x128xf32>
    %215 = arith.negf %214 : vector<8x128xf32>
    %216 = math.exp %215 : vector<8x128xf32>
    %cst_54 = arith.constant 1.000000e+00 : f32
    %217 = vector.broadcast %cst_54 : f32 to vector<8x128xf32>
    %218 = arith.addf %217, %216 : vector<8x128xf32>
    %219 = arith.divf %217, %218 : vector<8x128xf32>
    %220 = vector.extract_strided_slice %213 {offsets = [0, 128], sizes = [8, 128], strides = [1, 1]} : vector<8x512xf32> to vector<8x128xf32>
    %221 = arith.negf %220 : vector<8x128xf32>
    %222 = math.exp %221 : vector<8x128xf32>
    %cst_55 = arith.constant 1.000000e+00 : f32
    %223 = vector.broadcast %cst_55 : f32 to vector<8x128xf32>
    %224 = arith.addf %223, %222 : vector<8x128xf32>
    %225 = arith.divf %223, %224 : vector<8x128xf32>
    %226 = vector.extract_strided_slice %213 {offsets = [0, 256], sizes = [8, 128], strides = [1, 1]} : vector<8x512xf32> to vector<8x128xf32>
    %227 = math.tanh %226 : vector<8x128xf32>
    %228 = vector.extract_strided_slice %213 {offsets = [0, 384], sizes = [8, 128], strides = [1, 1]} : vector<8x512xf32> to vector<8x128xf32>
    %229 = arith.negf %228 : vector<8x128xf32>
    %230 = math.exp %229 : vector<8x128xf32>
    %cst_56 = arith.constant 1.000000e+00 : f32
    %231 = vector.broadcast %cst_56 : f32 to vector<8x128xf32>
    %232 = arith.addf %231, %230 : vector<8x128xf32>
    %233 = arith.divf %231, %232 : vector<8x128xf32>
    %234 = arith.mulf %225, %203 : vector<8x128xf32>
    %235 = arith.mulf %219, %227 : vector<8x128xf32>
    %236 = arith.addf %234, %235 : vector<8x128xf32>
    %237 = math.tanh %236 : vector<8x128xf32>
    %238 = arith.mulf %233, %237 : vector<8x128xf32>
    %239 = arith.index_cast %209 : i32 to index
    %c0_57 = arith.constant 0 : index
    %240 = vector.load %arg10[%239, %c0_57] : memref<72x128xf32, #tpu.memory_space<vmem>>, vector<8x128xf32>
    tpu.vector_store %arg10[%239, %c0_57], %238 {strides = array<i32>} : memref<72x128xf32, #tpu.memory_space<vmem>>, vector<8x128xf32>,
    %c7_i32 = arith.constant 7 : i32
    %c8_i32_58 = arith.constant 8 : i32
    %241 = arith.muli %c7_i32, %c8_i32_58 : i32
    %242 = tpu.assume_multiple %241, 8 : i32
    %243 = arith.index_cast %242 : i32 to index
    %c0_59 = arith.constant 0 : index
    %244 = vector.load %arg11[%243, %c0_59] : memref<72x512xf32, #tpu.memory_space<vmem>>, vector<8x512xf32>
    %cst_60 = arith.constant dense<0.000000e+00> : vector<8x512xf32>
    %245 = tpu.matmul %238, %8, %cst_60 {dimension_numbers = #tpu.dot_dimension_numbers<[1], [0], [0], [1], [0, 0, 1, 1], [], []>} : vector<8x128xf32>, vector<128x512xf32>, vector<8x512xf32> -> vector<8x512xf32>
    %246 = arith.addf %244, %245 : vector<8x512xf32>
    %247 = vector.extract_strided_slice %246 {offsets = [0, 0], sizes = [8, 128], strides = [1, 1]} : vector<8x512xf32> to vector<8x128xf32>
    %248 = arith.negf %247 : vector<8x128xf32>
    %249 = math.exp %248 : vector<8x128xf32>
    %cst_61 = arith.constant 1.000000e+00 : f32
    %250 = vector.broadcast %cst_61 : f32 to vector<8x128xf32>
    %251 = arith.addf %250, %249 : vector<8x128xf32>
    %252 = arith.divf %250, %251 : vector<8x128xf32>
    %253 = vector.extract_strided_slice %246 {offsets = [0, 128], sizes = [8, 128], strides = [1, 1]} : vector<8x512xf32> to vector<8x128xf32>
    %254 = arith.negf %253 : vector<8x128xf32>
    %255 = math.exp %254 : vector<8x128xf32>
    %cst_62 = arith.constant 1.000000e+00 : f32
    %256 = vector.broadcast %cst_62 : f32 to vector<8x128xf32>
    %257 = arith.addf %256, %255 : vector<8x128xf32>
    %258 = arith.divf %256, %257 : vector<8x128xf32>
    %259 = vector.extract_strided_slice %246 {offsets = [0, 256], sizes = [8, 128], strides = [1, 1]} : vector<8x512xf32> to vector<8x128xf32>
    %260 = math.tanh %259 : vector<8x128xf32>
    %261 = vector.extract_strided_slice %246 {offsets = [0, 384], sizes = [8, 128], strides = [1, 1]} : vector<8x512xf32> to vector<8x128xf32>
    %262 = arith.negf %261 : vector<8x128xf32>
    %263 = math.exp %262 : vector<8x128xf32>
    %cst_63 = arith.constant 1.000000e+00 : f32
    %264 = vector.broadcast %cst_63 : f32 to vector<8x128xf32>
    %265 = arith.addf %264, %263 : vector<8x128xf32>
    %266 = arith.divf %264, %265 : vector<8x128xf32>
    %267 = arith.mulf %258, %236 : vector<8x128xf32>
    %268 = arith.mulf %252, %260 : vector<8x128xf32>
    %269 = arith.addf %267, %268 : vector<8x128xf32>
    %270 = math.tanh %269 : vector<8x128xf32>
    %271 = arith.mulf %266, %270 : vector<8x128xf32>
    %272 = arith.index_cast %242 : i32 to index
    %c0_64 = arith.constant 0 : index
    %273 = vector.load %arg10[%272, %c0_64] : memref<72x128xf32, #tpu.memory_space<vmem>>, vector<8x128xf32>
    tpu.vector_store %arg10[%272, %c0_64], %271 {strides = array<i32>} : memref<72x128xf32, #tpu.memory_space<vmem>>, vector<8x128xf32>,
    %c8_i32_65 = arith.constant 8 : i32
    %c8_i32_66 = arith.constant 8 : i32
    %274 = arith.muli %c8_i32_65, %c8_i32_66 : i32
    %275 = tpu.assume_multiple %274, 8 : i32
    %276 = arith.index_cast %275 : i32 to index
    %c0_67 = arith.constant 0 : index
    %277 = vector.load %arg11[%276, %c0_67] : memref<72x512xf32, #tpu.memory_space<vmem>>, vector<8x512xf32>
    %cst_68 = arith.constant dense<0.000000e+00> : vector<8x512xf32>
    %278 = tpu.matmul %271, %8, %cst_68 {dimension_numbers = #tpu.dot_dimension_numbers<[1], [0], [0], [1], [0, 0, 1, 1], [], []>} : vector<8x128xf32>, vector<128x512xf32>, vector<8x512xf32> -> vector<8x512xf32>
    %279 = arith.addf %277, %278 : vector<8x512xf32>
    %280 = vector.extract_strided_slice %279 {offsets = [0, 0], sizes = [8, 128], strides = [1, 1]} : vector<8x512xf32> to vector<8x128xf32>
    %281 = arith.negf %280 : vector<8x128xf32>
    %282 = math.exp %281 : vector<8x128xf32>
    %cst_69 = arith.constant 1.000000e+00 : f32
    %283 = vector.broadcast %cst_69 : f32 to vector<8x128xf32>
    %284 = arith.addf %283, %282 : vector<8x128xf32>
    %285 = arith.divf %283, %284 : vector<8x128xf32>
    %286 = vector.extract_strided_slice %279 {offsets = [0, 128], sizes = [8, 128], strides = [1, 1]} : vector<8x512xf32> to vector<8x128xf32>
    %287 = arith.negf %286 : vector<8x128xf32>
    %288 = math.exp %287 : vector<8x128xf32>
    %cst_70 = arith.constant 1.000000e+00 : f32
    %289 = vector.broadcast %cst_70 : f32 to vector<8x128xf32>
    %290 = arith.addf %289, %288 : vector<8x128xf32>
    %291 = arith.divf %289, %290 : vector<8x128xf32>
    %292 = vector.extract_strided_slice %279 {offsets = [0, 256], sizes = [8, 128], strides = [1, 1]} : vector<8x512xf32> to vector<8x128xf32>
    %293 = math.tanh %292 : vector<8x128xf32>
    %294 = vector.extract_strided_slice %279 {offsets = [0, 384], sizes = [8, 128], strides = [1, 1]} : vector<8x512xf32> to vector<8x128xf32>
    %295 = arith.negf %294 : vector<8x128xf32>
    %296 = math.exp %295 : vector<8x128xf32>
    %cst_71 = arith.constant 1.000000e+00 : f32
    %297 = vector.broadcast %cst_71 : f32 to vector<8x128xf32>
    %298 = arith.addf %297, %296 : vector<8x128xf32>
    %299 = arith.divf %297, %298 : vector<8x128xf32>
    %300 = arith.mulf %291, %269 : vector<8x128xf32>
    %301 = arith.mulf %285, %293 : vector<8x128xf32>
    %302 = arith.addf %300, %301 : vector<8x128xf32>
    %303 = math.tanh %302 : vector<8x128xf32>
    %304 = arith.mulf %299, %303 : vector<8x128xf32>
    %305 = arith.index_cast %275 : i32 to index
    %c0_72 = arith.constant 0 : index
    %306 = vector.load %arg10[%305, %c0_72] : memref<72x128xf32, #tpu.memory_space<vmem>>, vector<8x128xf32>
    tpu.vector_store %arg10[%305, %c0_72], %304 {strides = array<i32>} : memref<72x128xf32, #tpu.memory_space<vmem>>, vector<8x128xf32>,
    %c9_i32 = arith.constant 9 : i32
    %c0_73 = arith.constant 0 : index
    %c0_74 = arith.constant 0 : index
    %307 = vector.load %arg10[%c0_73, %c0_74] : memref<72x128xf32, #tpu.memory_space<vmem>>, vector<72x128xf32>
    %308 = arith.truncf %307 : vector<72x128xf32> to vector<72x128xbf16>
    %c0_75 = arith.constant 0 : index
    %c0_76 = arith.constant 0 : index
    %309 = vector.load %arg4[%c0_75, %c0_76] : memref<128x512xbf16, #tpu.memory_space<vmem>>, vector<128x512xbf16>
    %cst_77 = arith.constant dense<0.000000e+00> : vector<72x512xf32>
    %310 = tpu.matmul %308, %309, %cst_77 {dimension_numbers = #tpu.dot_dimension_numbers<[1], [0], [0], [1], [0, 0, 1, 1], [], []>} : vector<72x128xbf16>, vector<128x512xbf16>, vector<72x512xf32> -> vector<72x512xf32>
    %c0_78 = arith.constant 0 : index
    %c0_79 = arith.constant 0 : index
    %311 = vector.load %arg6[%c0_78, %c0_79] : memref<1x512xf32, #tpu.memory_space<vmem>>, vector<1x512xf32>
    %312 = vector.broadcast %311 : vector<1x512xf32> to vector<72x512xf32>
    %313 = arith.addf %310, %312 : vector<72x512xf32>
    %c0_80 = arith.constant 0 : index
    %c0_81 = arith.constant 0 : index
    %314 = vector.load %arg11[%c0_80, %c0_81] : memref<72x512xf32, #tpu.memory_space<vmem>>, vector<72x512xf32>
    tpu.vector_store %arg11[%c0_80, %c0_81], %313 {strides = array<i32>} : memref<72x512xf32, #tpu.memory_space<vmem>>, vector<72x512xf32>,
    %c0_82 = arith.constant 0 : index
    %c0_83 = arith.constant 0 : index
    %315 = vector.load %arg5[%c0_82, %c0_83] : memref<128x512xf32, #tpu.memory_space<vmem>>, vector<128x512xf32>
    %cst_84 = arith.constant 0.000000e+00 : f32
    %316 = vector.broadcast %cst_84 : f32 to vector<8x128xf32>
    %c0_i32_85 = arith.constant 0 : i32
    %c8_i32_86 = arith.constant 8 : i32
    %317 = arith.muli %c0_i32_85, %c8_i32_86 : i32
    %318 = tpu.assume_multiple %317, 8 : i32
    %319 = arith.index_cast %318 : i32 to index
    %c0_87 = arith.constant 0 : index
    %320 = vector.load %arg11[%319, %c0_87] : memref<72x512xf32, #tpu.memory_space<vmem>>, vector<8x512xf32>
    %cst_88 = arith.constant dense<0.000000e+00> : vector<8x512xf32>
    %321 = tpu.matmul %316, %315, %cst_88 {dimension_numbers = #tpu.dot_dimension_numbers<[1], [0], [0], [1], [0, 0, 1, 1], [], []>} : vector<8x128xf32>, vector<128x512xf32>, vector<8x512xf32> -> vector<8x512xf32>
    %322 = arith.addf %320, %321 : vector<8x512xf32>
    %323 = vector.extract_strided_slice %322 {offsets = [0, 0], sizes = [8, 128], strides = [1, 1]} : vector<8x512xf32> to vector<8x128xf32>
    %324 = arith.negf %323 : vector<8x128xf32>
    %325 = math.exp %324 : vector<8x128xf32>
    %cst_89 = arith.constant 1.000000e+00 : f32
    %326 = vector.broadcast %cst_89 : f32 to vector<8x128xf32>
    %327 = arith.addf %326, %325 : vector<8x128xf32>
    %328 = arith.divf %326, %327 : vector<8x128xf32>
    %329 = vector.extract_strided_slice %322 {offsets = [0, 128], sizes = [8, 128], strides = [1, 1]} : vector<8x512xf32> to vector<8x128xf32>
    %330 = arith.negf %329 : vector<8x128xf32>
    %331 = math.exp %330 : vector<8x128xf32>
    %cst_90 = arith.constant 1.000000e+00 : f32
    %332 = vector.broadcast %cst_90 : f32 to vector<8x128xf32>
    %333 = arith.addf %332, %331 : vector<8x128xf32>
    %334 = arith.divf %332, %333 : vector<8x128xf32>
    %335 = vector.extract_strided_slice %322 {offsets = [0, 256], sizes = [8, 128], strides = [1, 1]} : vector<8x512xf32> to vector<8x128xf32>
    %336 = math.tanh %335 : vector<8x128xf32>
    %337 = vector.extract_strided_slice %322 {offsets = [0, 384], sizes = [8, 128], strides = [1, 1]} : vector<8x512xf32> to vector<8x128xf32>
    %338 = arith.negf %337 : vector<8x128xf32>
    %339 = math.exp %338 : vector<8x128xf32>
    %cst_91 = arith.constant 1.000000e+00 : f32
    %340 = vector.broadcast %cst_91 : f32 to vector<8x128xf32>
    %341 = arith.addf %340, %339 : vector<8x128xf32>
    %342 = arith.divf %340, %341 : vector<8x128xf32>
    %343 = arith.mulf %334, %316 : vector<8x128xf32>
    %344 = arith.mulf %328, %336 : vector<8x128xf32>
    %345 = arith.addf %343, %344 : vector<8x128xf32>
    %346 = math.tanh %345 : vector<8x128xf32>
    %347 = arith.mulf %342, %346 : vector<8x128xf32>
    %348 = arith.index_cast %318 : i32 to index
    %c0_92 = arith.constant 0 : index
    %349 = vector.load %arg10[%348, %c0_92] : memref<72x128xf32, #tpu.memory_space<vmem>>, vector<8x128xf32>
    tpu.vector_store %arg10[%348, %c0_92], %347 {strides = array<i32>} : memref<72x128xf32, #tpu.memory_space<vmem>>, vector<8x128xf32>,
    %c1_i32_93 = arith.constant 1 : i32
    %c8_i32_94 = arith.constant 8 : i32
    %350 = arith.muli %c1_i32_93, %c8_i32_94 : i32
    %351 = tpu.assume_multiple %350, 8 : i32
    %352 = arith.index_cast %351 : i32 to index
    %c0_95 = arith.constant 0 : index
    %353 = vector.load %arg11[%352, %c0_95] : memref<72x512xf32, #tpu.memory_space<vmem>>, vector<8x512xf32>
    %cst_96 = arith.constant dense<0.000000e+00> : vector<8x512xf32>
    %354 = tpu.matmul %347, %315, %cst_96 {dimension_numbers = #tpu.dot_dimension_numbers<[1], [0], [0], [1], [0, 0, 1, 1], [], []>} : vector<8x128xf32>, vector<128x512xf32>, vector<8x512xf32> -> vector<8x512xf32>
    %355 = arith.addf %353, %354 : vector<8x512xf32>
    %356 = vector.extract_strided_slice %355 {offsets = [0, 0], sizes = [8, 128], strides = [1, 1]} : vector<8x512xf32> to vector<8x128xf32>
    %357 = arith.negf %356 : vector<8x128xf32>
    %358 = math.exp %357 : vector<8x128xf32>
    %cst_97 = arith.constant 1.000000e+00 : f32
    %359 = vector.broadcast %cst_97 : f32 to vector<8x128xf32>
    %360 = arith.addf %359, %358 : vector<8x128xf32>
    %361 = arith.divf %359, %360 : vector<8x128xf32>
    %362 = vector.extract_strided_slice %355 {offsets = [0, 128], sizes = [8, 128], strides = [1, 1]} : vector<8x512xf32> to vector<8x128xf32>
    %363 = arith.negf %362 : vector<8x128xf32>
    %364 = math.exp %363 : vector<8x128xf32>
    %cst_98 = arith.constant 1.000000e+00 : f32
    %365 = vector.broadcast %cst_98 : f32 to vector<8x128xf32>
    %366 = arith.addf %365, %364 : vector<8x128xf32>
    %367 = arith.divf %365, %366 : vector<8x128xf32>
    %368 = vector.extract_strided_slice %355 {offsets = [0, 256], sizes = [8, 128], strides = [1, 1]} : vector<8x512xf32> to vector<8x128xf32>
    %369 = math.tanh %368 : vector<8x128xf32>
    %370 = vector.extract_strided_slice %355 {offsets = [0, 384], sizes = [8, 128], strides = [1, 1]} : vector<8x512xf32> to vector<8x128xf32>
    %371 = arith.negf %370 : vector<8x128xf32>
    %372 = math.exp %371 : vector<8x128xf32>
    %cst_99 = arith.constant 1.000000e+00 : f32
    %373 = vector.broadcast %cst_99 : f32 to vector<8x128xf32>
    %374 = arith.addf %373, %372 : vector<8x128xf32>
    %375 = arith.divf %373, %374 : vector<8x128xf32>
    %376 = arith.mulf %367, %345 : vector<8x128xf32>
    %377 = arith.mulf %361, %369 : vector<8x128xf32>
    %378 = arith.addf %376, %377 : vector<8x128xf32>
    %379 = math.tanh %378 : vector<8x128xf32>
    %380 = arith.mulf %375, %379 : vector<8x128xf32>
    %381 = arith.index_cast %351 : i32 to index
    %c0_100 = arith.constant 0 : index
    %382 = vector.load %arg10[%381, %c0_100] : memref<72x128xf32, #tpu.memory_space<vmem>>, vector<8x128xf32>
    tpu.vector_store %arg10[%381, %c0_100], %380 {strides = array<i32>} : memref<72x128xf32, #tpu.memory_space<vmem>>, vector<8x128xf32>,
    %c2_i32_101 = arith.constant 2 : i32
    %c8_i32_102 = arith.constant 8 : i32
    %383 = arith.muli %c2_i32_101, %c8_i32_102 : i32
    %384 = tpu.assume_multiple %383, 8 : i32
    %385 = arith.index_cast %384 : i32 to index
    %c0_103 = arith.constant 0 : index
    %386 = vector.load %arg11[%385, %c0_103] : memref<72x512xf32, #tpu.memory_space<vmem>>, vector<8x512xf32>
    %cst_104 = arith.constant dense<0.000000e+00> : vector<8x512xf32>
    %387 = tpu.matmul %380, %315, %cst_104 {dimension_numbers = #tpu.dot_dimension_numbers<[1], [0], [0], [1], [0, 0, 1, 1], [], []>} : vector<8x128xf32>, vector<128x512xf32>, vector<8x512xf32> -> vector<8x512xf32>
    %388 = arith.addf %386, %387 : vector<8x512xf32>
    %389 = vector.extract_strided_slice %388 {offsets = [0, 0], sizes = [8, 128], strides = [1, 1]} : vector<8x512xf32> to vector<8x128xf32>
    %390 = arith.negf %389 : vector<8x128xf32>
    %391 = math.exp %390 : vector<8x128xf32>
    %cst_105 = arith.constant 1.000000e+00 : f32
    %392 = vector.broadcast %cst_105 : f32 to vector<8x128xf32>
    %393 = arith.addf %392, %391 : vector<8x128xf32>
    %394 = arith.divf %392, %393 : vector<8x128xf32>
    %395 = vector.extract_strided_slice %388 {offsets = [0, 128], sizes = [8, 128], strides = [1, 1]} : vector<8x512xf32> to vector<8x128xf32>
    %396 = arith.negf %395 : vector<8x128xf32>
    %397 = math.exp %396 : vector<8x128xf32>
    %cst_106 = arith.constant 1.000000e+00 : f32
    %398 = vector.broadcast %cst_106 : f32 to vector<8x128xf32>
    %399 = arith.addf %398, %397 : vector<8x128xf32>
    %400 = arith.divf %398, %399 : vector<8x128xf32>
    %401 = vector.extract_strided_slice %388 {offsets = [0, 256], sizes = [8, 128], strides = [1, 1]} : vector<8x512xf32> to vector<8x128xf32>
    %402 = math.tanh %401 : vector<8x128xf32>
    %403 = vector.extract_strided_slice %388 {offsets = [0, 384], sizes = [8, 128], strides = [1, 1]} : vector<8x512xf32> to vector<8x128xf32>
    %404 = arith.negf %403 : vector<8x128xf32>
    %405 = math.exp %404 : vector<8x128xf32>
    %cst_107 = arith.constant 1.000000e+00 : f32
    %406 = vector.broadcast %cst_107 : f32 to vector<8x128xf32>
    %407 = arith.addf %406, %405 : vector<8x128xf32>
    %408 = arith.divf %406, %407 : vector<8x128xf32>
    %409 = arith.mulf %400, %378 : vector<8x128xf32>
    %410 = arith.mulf %394, %402 : vector<8x128xf32>
    %411 = arith.addf %409, %410 : vector<8x128xf32>
    %412 = math.tanh %411 : vector<8x128xf32>
    %413 = arith.mulf %408, %412 : vector<8x128xf32>
    %414 = arith.index_cast %384 : i32 to index
    %c0_108 = arith.constant 0 : index
    %415 = vector.load %arg10[%414, %c0_108] : memref<72x128xf32, #tpu.memory_space<vmem>>, vector<8x128xf32>
    tpu.vector_store %arg10[%414, %c0_108], %413 {strides = array<i32>} : memref<72x128xf32, #tpu.memory_space<vmem>>, vector<8x128xf32>,
    %c3_i32_109 = arith.constant 3 : i32
    %c8_i32_110 = arith.constant 8 : i32
    %416 = arith.muli %c3_i32_109, %c8_i32_110 : i32
    %417 = tpu.assume_multiple %416, 8 : i32
    %418 = arith.index_cast %417 : i32 to index
    %c0_111 = arith.constant 0 : index
    %419 = vector.load %arg11[%418, %c0_111] : memref<72x512xf32, #tpu.memory_space<vmem>>, vector<8x512xf32>
    %cst_112 = arith.constant dense<0.000000e+00> : vector<8x512xf32>
    %420 = tpu.matmul %413, %315, %cst_112 {dimension_numbers = #tpu.dot_dimension_numbers<[1], [0], [0], [1], [0, 0, 1, 1], [], []>} : vector<8x128xf32>, vector<128x512xf32>, vector<8x512xf32> -> vector<8x512xf32>
    %421 = arith.addf %419, %420 : vector<8x512xf32>
    %422 = vector.extract_strided_slice %421 {offsets = [0, 0], sizes = [8, 128], strides = [1, 1]} : vector<8x512xf32> to vector<8x128xf32>
    %423 = arith.negf %422 : vector<8x128xf32>
    %424 = math.exp %423 : vector<8x128xf32>
    %cst_113 = arith.constant 1.000000e+00 : f32
    %425 = vector.broadcast %cst_113 : f32 to vector<8x128xf32>
    %426 = arith.addf %425, %424 : vector<8x128xf32>
    %427 = arith.divf %425, %426 : vector<8x128xf32>
    %428 = vector.extract_strided_slice %421 {offsets = [0, 128], sizes = [8, 128], strides = [1, 1]} : vector<8x512xf32> to vector<8x128xf32>
    %429 = arith.negf %428 : vector<8x128xf32>
    %430 = math.exp %429 : vector<8x128xf32>
    %cst_114 = arith.constant 1.000000e+00 : f32
    %431 = vector.broadcast %cst_114 : f32 to vector<8x128xf32>
    %432 = arith.addf %431, %430 : vector<8x128xf32>
    %433 = arith.divf %431, %432 : vector<8x128xf32>
    %434 = vector.extract_strided_slice %421 {offsets = [0, 256], sizes = [8, 128], strides = [1, 1]} : vector<8x512xf32> to vector<8x128xf32>
    %435 = math.tanh %434 : vector<8x128xf32>
    %436 = vector.extract_strided_slice %421 {offsets = [0, 384], sizes = [8, 128], strides = [1, 1]} : vector<8x512xf32> to vector<8x128xf32>
    %437 = arith.negf %436 : vector<8x128xf32>
    %438 = math.exp %437 : vector<8x128xf32>
    %cst_115 = arith.constant 1.000000e+00 : f32
    %439 = vector.broadcast %cst_115 : f32 to vector<8x128xf32>
    %440 = arith.addf %439, %438 : vector<8x128xf32>
    %441 = arith.divf %439, %440 : vector<8x128xf32>
    %442 = arith.mulf %433, %411 : vector<8x128xf32>
    %443 = arith.mulf %427, %435 : vector<8x128xf32>
    %444 = arith.addf %442, %443 : vector<8x128xf32>
    %445 = math.tanh %444 : vector<8x128xf32>
    %446 = arith.mulf %441, %445 : vector<8x128xf32>
    %447 = arith.index_cast %417 : i32 to index
    %c0_116 = arith.constant 0 : index
    %448 = vector.load %arg10[%447, %c0_116] : memref<72x128xf32, #tpu.memory_space<vmem>>, vector<8x128xf32>
    tpu.vector_store %arg10[%447, %c0_116], %446 {strides = array<i32>} : memref<72x128xf32, #tpu.memory_space<vmem>>, vector<8x128xf32>,
    %c4_i32_117 = arith.constant 4 : i32
    %c8_i32_118 = arith.constant 8 : i32
    %449 = arith.muli %c4_i32_117, %c8_i32_118 : i32
    %450 = tpu.assume_multiple %449, 8 : i32
    %451 = arith.index_cast %450 : i32 to index
    %c0_119 = arith.constant 0 : index
    %452 = vector.load %arg11[%451, %c0_119] : memref<72x512xf32, #tpu.memory_space<vmem>>, vector<8x512xf32>
    %cst_120 = arith.constant dense<0.000000e+00> : vector<8x512xf32>
    %453 = tpu.matmul %446, %315, %cst_120 {dimension_numbers = #tpu.dot_dimension_numbers<[1], [0], [0], [1], [0, 0, 1, 1], [], []>} : vector<8x128xf32>, vector<128x512xf32>, vector<8x512xf32> -> vector<8x512xf32>
    %454 = arith.addf %452, %453 : vector<8x512xf32>
    %455 = vector.extract_strided_slice %454 {offsets = [0, 0], sizes = [8, 128], strides = [1, 1]} : vector<8x512xf32> to vector<8x128xf32>
    %456 = arith.negf %455 : vector<8x128xf32>
    %457 = math.exp %456 : vector<8x128xf32>
    %cst_121 = arith.constant 1.000000e+00 : f32
    %458 = vector.broadcast %cst_121 : f32 to vector<8x128xf32>
    %459 = arith.addf %458, %457 : vector<8x128xf32>
    %460 = arith.divf %458, %459 : vector<8x128xf32>
    %461 = vector.extract_strided_slice %454 {offsets = [0, 128], sizes = [8, 128], strides = [1, 1]} : vector<8x512xf32> to vector<8x128xf32>
    %462 = arith.negf %461 : vector<8x128xf32>
    %463 = math.exp %462 : vector<8x128xf32>
    %cst_122 = arith.constant 1.000000e+00 : f32
    %464 = vector.broadcast %cst_122 : f32 to vector<8x128xf32>
    %465 = arith.addf %464, %463 : vector<8x128xf32>
    %466 = arith.divf %464, %465 : vector<8x128xf32>
    %467 = vector.extract_strided_slice %454 {offsets = [0, 256], sizes = [8, 128], strides = [1, 1]} : vector<8x512xf32> to vector<8x128xf32>
    %468 = math.tanh %467 : vector<8x128xf32>
    %469 = vector.extract_strided_slice %454 {offsets = [0, 384], sizes = [8, 128], strides = [1, 1]} : vector<8x512xf32> to vector<8x128xf32>
    %470 = arith.negf %469 : vector<8x128xf32>
    %471 = math.exp %470 : vector<8x128xf32>
    %cst_123 = arith.constant 1.000000e+00 : f32
    %472 = vector.broadcast %cst_123 : f32 to vector<8x128xf32>
    %473 = arith.addf %472, %471 : vector<8x128xf32>
    %474 = arith.divf %472, %473 : vector<8x128xf32>
    %475 = arith.mulf %466, %444 : vector<8x128xf32>
    %476 = arith.mulf %460, %468 : vector<8x128xf32>
    %477 = arith.addf %475, %476 : vector<8x128xf32>
    %478 = math.tanh %477 : vector<8x128xf32>
    %479 = arith.mulf %474, %478 : vector<8x128xf32>
    %480 = arith.index_cast %450 : i32 to index
    %c0_124 = arith.constant 0 : index
    %481 = vector.load %arg10[%480, %c0_124] : memref<72x128xf32, #tpu.memory_space<vmem>>, vector<8x128xf32>
    tpu.vector_store %arg10[%480, %c0_124], %479 {strides = array<i32>} : memref<72x128xf32, #tpu.memory_space<vmem>>, vector<8x128xf32>,
    %c5_i32_125 = arith.constant 5 : i32
    %c8_i32_126 = arith.constant 8 : i32
    %482 = arith.muli %c5_i32_125, %c8_i32_126 : i32
    %483 = tpu.assume_multiple %482, 8 : i32
    %484 = arith.index_cast %483 : i32 to index
    %c0_127 = arith.constant 0 : index
    %485 = vector.load %arg11[%484, %c0_127] : memref<72x512xf32, #tpu.memory_space<vmem>>, vector<8x512xf32>
    %cst_128 = arith.constant dense<0.000000e+00> : vector<8x512xf32>
    %486 = tpu.matmul %479, %315, %cst_128 {dimension_numbers = #tpu.dot_dimension_numbers<[1], [0], [0], [1], [0, 0, 1, 1], [], []>} : vector<8x128xf32>, vector<128x512xf32>, vector<8x512xf32> -> vector<8x512xf32>
    %487 = arith.addf %485, %486 : vector<8x512xf32>
    %488 = vector.extract_strided_slice %487 {offsets = [0, 0], sizes = [8, 128], strides = [1, 1]} : vector<8x512xf32> to vector<8x128xf32>
    %489 = arith.negf %488 : vector<8x128xf32>
    %490 = math.exp %489 : vector<8x128xf32>
    %cst_129 = arith.constant 1.000000e+00 : f32
    %491 = vector.broadcast %cst_129 : f32 to vector<8x128xf32>
    %492 = arith.addf %491, %490 : vector<8x128xf32>
    %493 = arith.divf %491, %492 : vector<8x128xf32>
    %494 = vector.extract_strided_slice %487 {offsets = [0, 128], sizes = [8, 128], strides = [1, 1]} : vector<8x512xf32> to vector<8x128xf32>
    %495 = arith.negf %494 : vector<8x128xf32>
    %496 = math.exp %495 : vector<8x128xf32>
    %cst_130 = arith.constant 1.000000e+00 : f32
    %497 = vector.broadcast %cst_130 : f32 to vector<8x128xf32>
    %498 = arith.addf %497, %496 : vector<8x128xf32>
    %499 = arith.divf %497, %498 : vector<8x128xf32>
    %500 = vector.extract_strided_slice %487 {offsets = [0, 256], sizes = [8, 128], strides = [1, 1]} : vector<8x512xf32> to vector<8x128xf32>
    %501 = math.tanh %500 : vector<8x128xf32>
    %502 = vector.extract_strided_slice %487 {offsets = [0, 384], sizes = [8, 128], strides = [1, 1]} : vector<8x512xf32> to vector<8x128xf32>
    %503 = arith.negf %502 : vector<8x128xf32>
    %504 = math.exp %503 : vector<8x128xf32>
    %cst_131 = arith.constant 1.000000e+00 : f32
    %505 = vector.broadcast %cst_131 : f32 to vector<8x128xf32>
    %506 = arith.addf %505, %504 : vector<8x128xf32>
    %507 = arith.divf %505, %506 : vector<8x128xf32>
    %508 = arith.mulf %499, %477 : vector<8x128xf32>
    %509 = arith.mulf %493, %501 : vector<8x128xf32>
    %510 = arith.addf %508, %509 : vector<8x128xf32>
    %511 = math.tanh %510 : vector<8x128xf32>
    %512 = arith.mulf %507, %511 : vector<8x128xf32>
    %513 = arith.index_cast %483 : i32 to index
    %c0_132 = arith.constant 0 : index
    %514 = vector.load %arg10[%513, %c0_132] : memref<72x128xf32, #tpu.memory_space<vmem>>, vector<8x128xf32>
    tpu.vector_store %arg10[%513, %c0_132], %512 {strides = array<i32>} : memref<72x128xf32, #tpu.memory_space<vmem>>, vector<8x128xf32>,
    %c6_i32_133 = arith.constant 6 : i32
    %c8_i32_134 = arith.constant 8 : i32
    %515 = arith.muli %c6_i32_133, %c8_i32_134 : i32
    %516 = tpu.assume_multiple %515, 8 : i32
    %517 = arith.index_cast %516 : i32 to index
    %c0_135 = arith.constant 0 : index
    %518 = vector.load %arg11[%517, %c0_135] : memref<72x512xf32, #tpu.memory_space<vmem>>, vector<8x512xf32>
    %cst_136 = arith.constant dense<0.000000e+00> : vector<8x512xf32>
    %519 = tpu.matmul %512, %315, %cst_136 {dimension_numbers = #tpu.dot_dimension_numbers<[1], [0], [0], [1], [0, 0, 1, 1], [], []>} : vector<8x128xf32>, vector<128x512xf32>, vector<8x512xf32> -> vector<8x512xf32>
    %520 = arith.addf %518, %519 : vector<8x512xf32>
    %521 = vector.extract_strided_slice %520 {offsets = [0, 0], sizes = [8, 128], strides = [1, 1]} : vector<8x512xf32> to vector<8x128xf32>
    %522 = arith.negf %521 : vector<8x128xf32>
    %523 = math.exp %522 : vector<8x128xf32>
    %cst_137 = arith.constant 1.000000e+00 : f32
    %524 = vector.broadcast %cst_137 : f32 to vector<8x128xf32>
    %525 = arith.addf %524, %523 : vector<8x128xf32>
    %526 = arith.divf %524, %525 : vector<8x128xf32>
    %527 = vector.extract_strided_slice %520 {offsets = [0, 128], sizes = [8, 128], strides = [1, 1]} : vector<8x512xf32> to vector<8x128xf32>
    %528 = arith.negf %527 : vector<8x128xf32>
    %529 = math.exp %528 : vector<8x128xf32>
    %cst_138 = arith.constant 1.000000e+00 : f32
    %530 = vector.broadcast %cst_138 : f32 to vector<8x128xf32>
    %531 = arith.addf %530, %529 : vector<8x128xf32>
    %532 = arith.divf %530, %531 : vector<8x128xf32>
    %533 = vector.extract_strided_slice %520 {offsets = [0, 256], sizes = [8, 128], strides = [1, 1]} : vector<8x512xf32> to vector<8x128xf32>
    %534 = math.tanh %533 : vector<8x128xf32>
    %535 = vector.extract_strided_slice %520 {offsets = [0, 384], sizes = [8, 128], strides = [1, 1]} : vector<8x512xf32> to vector<8x128xf32>
    %536 = arith.negf %535 : vector<8x128xf32>
    %537 = math.exp %536 : vector<8x128xf32>
    %cst_139 = arith.constant 1.000000e+00 : f32
    %538 = vector.broadcast %cst_139 : f32 to vector<8x128xf32>
    %539 = arith.addf %538, %537 : vector<8x128xf32>
    %540 = arith.divf %538, %539 : vector<8x128xf32>
    %541 = arith.mulf %532, %510 : vector<8x128xf32>
    %542 = arith.mulf %526, %534 : vector<8x128xf32>
    %543 = arith.addf %541, %542 : vector<8x128xf32>
    %544 = math.tanh %543 : vector<8x128xf32>
    %545 = arith.mulf %540, %544 : vector<8x128xf32>
    %546 = arith.index_cast %516 : i32 to index
    %c0_140 = arith.constant 0 : index
    %547 = vector.load %arg10[%546, %c0_140] : memref<72x128xf32, #tpu.memory_space<vmem>>, vector<8x128xf32>
    tpu.vector_store %arg10[%546, %c0_140], %545 {strides = array<i32>} : memref<72x128xf32, #tpu.memory_space<vmem>>, vector<8x128xf32>,
    %c7_i32_141 = arith.constant 7 : i32
    %c8_i32_142 = arith.constant 8 : i32
    %548 = arith.muli %c7_i32_141, %c8_i32_142 : i32
    %549 = tpu.assume_multiple %548, 8 : i32
    %550 = arith.index_cast %549 : i32 to index
    %c0_143 = arith.constant 0 : index
    %551 = vector.load %arg11[%550, %c0_143] : memref<72x512xf32, #tpu.memory_space<vmem>>, vector<8x512xf32>
    %cst_144 = arith.constant dense<0.000000e+00> : vector<8x512xf32>
    %552 = tpu.matmul %545, %315, %cst_144 {dimension_numbers = #tpu.dot_dimension_numbers<[1], [0], [0], [1], [0, 0, 1, 1], [], []>} : vector<8x128xf32>, vector<128x512xf32>, vector<8x512xf32> -> vector<8x512xf32>
    %553 = arith.addf %551, %552 : vector<8x512xf32>
    %554 = vector.extract_strided_slice %553 {offsets = [0, 0], sizes = [8, 128], strides = [1, 1]} : vector<8x512xf32> to vector<8x128xf32>
    %555 = arith.negf %554 : vector<8x128xf32>
    %556 = math.exp %555 : vector<8x128xf32>
    %cst_145 = arith.constant 1.000000e+00 : f32
    %557 = vector.broadcast %cst_145 : f32 to vector<8x128xf32>
    %558 = arith.addf %557, %556 : vector<8x128xf32>
    %559 = arith.divf %557, %558 : vector<8x128xf32>
    %560 = vector.extract_strided_slice %553 {offsets = [0, 128], sizes = [8, 128], strides = [1, 1]} : vector<8x512xf32> to vector<8x128xf32>
    %561 = arith.negf %560 : vector<8x128xf32>
    %562 = math.exp %561 : vector<8x128xf32>
    %cst_146 = arith.constant 1.000000e+00 : f32
    %563 = vector.broadcast %cst_146 : f32 to vector<8x128xf32>
    %564 = arith.addf %563, %562 : vector<8x128xf32>
    %565 = arith.divf %563, %564 : vector<8x128xf32>
    %566 = vector.extract_strided_slice %553 {offsets = [0, 256], sizes = [8, 128], strides = [1, 1]} : vector<8x512xf32> to vector<8x128xf32>
    %567 = math.tanh %566 : vector<8x128xf32>
    %568 = vector.extract_strided_slice %553 {offsets = [0, 384], sizes = [8, 128], strides = [1, 1]} : vector<8x512xf32> to vector<8x128xf32>
    %569 = arith.negf %568 : vector<8x128xf32>
    %570 = math.exp %569 : vector<8x128xf32>
    %cst_147 = arith.constant 1.000000e+00 : f32
    %571 = vector.broadcast %cst_147 : f32 to vector<8x128xf32>
    %572 = arith.addf %571, %570 : vector<8x128xf32>
    %573 = arith.divf %571, %572 : vector<8x128xf32>
    %574 = arith.mulf %565, %543 : vector<8x128xf32>
    %575 = arith.mulf %559, %567 : vector<8x128xf32>
    %576 = arith.addf %574, %575 : vector<8x128xf32>
    %577 = math.tanh %576 : vector<8x128xf32>
    %578 = arith.mulf %573, %577 : vector<8x128xf32>
    %579 = arith.index_cast %549 : i32 to index
    %c0_148 = arith.constant 0 : index
    %580 = vector.load %arg10[%579, %c0_148] : memref<72x128xf32, #tpu.memory_space<vmem>>, vector<8x128xf32>
    tpu.vector_store %arg10[%579, %c0_148], %578 {strides = array<i32>} : memref<72x128xf32, #tpu.memory_space<vmem>>, vector<8x128xf32>,
    %c8_i32_149 = arith.constant 8 : i32
    %c8_i32_150 = arith.constant 8 : i32
    %581 = arith.muli %c8_i32_149, %c8_i32_150 : i32
    %582 = tpu.assume_multiple %581, 8 : i32
    %583 = arith.index_cast %582 : i32 to index
    %c0_151 = arith.constant 0 : index
    %584 = vector.load %arg11[%583, %c0_151] : memref<72x512xf32, #tpu.memory_space<vmem>>, vector<8x512xf32>
    %cst_152 = arith.constant dense<0.000000e+00> : vector<8x512xf32>
    %585 = tpu.matmul %578, %315, %cst_152 {dimension_numbers = #tpu.dot_dimension_numbers<[1], [0], [0], [1], [0, 0, 1, 1], [], []>} : vector<8x128xf32>, vector<128x512xf32>, vector<8x512xf32> -> vector<8x512xf32>
    %586 = arith.addf %584, %585 : vector<8x512xf32>
    %587 = vector.extract_strided_slice %586 {offsets = [0, 0], sizes = [8, 128], strides = [1, 1]} : vector<8x512xf32> to vector<8x128xf32>
    %588 = arith.negf %587 : vector<8x128xf32>
    %589 = math.exp %588 : vector<8x128xf32>
    %cst_153 = arith.constant 1.000000e+00 : f32
    %590 = vector.broadcast %cst_153 : f32 to vector<8x128xf32>
    %591 = arith.addf %590, %589 : vector<8x128xf32>
    %592 = arith.divf %590, %591 : vector<8x128xf32>
    %593 = vector.extract_strided_slice %586 {offsets = [0, 128], sizes = [8, 128], strides = [1, 1]} : vector<8x512xf32> to vector<8x128xf32>
    %594 = arith.negf %593 : vector<8x128xf32>
    %595 = math.exp %594 : vector<8x128xf32>
    %cst_154 = arith.constant 1.000000e+00 : f32
    %596 = vector.broadcast %cst_154 : f32 to vector<8x128xf32>
    %597 = arith.addf %596, %595 : vector<8x128xf32>
    %598 = arith.divf %596, %597 : vector<8x128xf32>
    %599 = vector.extract_strided_slice %586 {offsets = [0, 256], sizes = [8, 128], strides = [1, 1]} : vector<8x512xf32> to vector<8x128xf32>
    %600 = math.tanh %599 : vector<8x128xf32>
    %601 = vector.extract_strided_slice %586 {offsets = [0, 384], sizes = [8, 128], strides = [1, 1]} : vector<8x512xf32> to vector<8x128xf32>
    %602 = arith.negf %601 : vector<8x128xf32>
    %603 = math.exp %602 : vector<8x128xf32>
    %cst_155 = arith.constant 1.000000e+00 : f32
    %604 = vector.broadcast %cst_155 : f32 to vector<8x128xf32>
    %605 = arith.addf %604, %603 : vector<8x128xf32>
    %606 = arith.divf %604, %605 : vector<8x128xf32>
    %607 = arith.mulf %598, %576 : vector<8x128xf32>
    %608 = arith.mulf %592, %600 : vector<8x128xf32>
    %609 = arith.addf %607, %608 : vector<8x128xf32>
    %610 = math.tanh %609 : vector<8x128xf32>
    %611 = arith.mulf %606, %610 : vector<8x128xf32>
    %612 = arith.index_cast %582 : i32 to index
    %c0_156 = arith.constant 0 : index
    %613 = vector.load %arg10[%612, %c0_156] : memref<72x128xf32, #tpu.memory_space<vmem>>, vector<8x128xf32>
    tpu.vector_store %arg10[%612, %c0_156], %611 {strides = array<i32>} : memref<72x128xf32, #tpu.memory_space<vmem>>, vector<8x128xf32>,
    %c9_i32_157 = arith.constant 9 : i32
    %c0_158 = arith.constant 0 : index
    %c0_159 = arith.constant 0 : index
    %614 = vector.load %arg10[%c0_158, %c0_159] : memref<72x128xf32, #tpu.memory_space<vmem>>, vector<72x128xf32>
    %615 = arith.truncf %614 : vector<72x128xf32> to vector<72x128xbf16>
    %c0_160 = arith.constant 0 : index
    %c0_161 = arith.constant 0 : index
    %616 = vector.load %arg7[%c0_160, %c0_161] : memref<128x128xbf16, #tpu.memory_space<vmem>>, vector<128x128xbf16>
    %cst_162 = arith.constant dense<0.000000e+00> : vector<72x128xf32>
    %617 = tpu.matmul %615, %616, %cst_162 {dimension_numbers = #tpu.dot_dimension_numbers<[1], [0], [0], [1], [0, 0, 1, 1], [], []>} : vector<72x128xbf16>, vector<128x128xbf16>, vector<72x128xf32> -> vector<72x128xf32>
    %c0_163 = arith.constant 0 : index
    %c0_164 = arith.constant 0 : index
    %618 = vector.load %arg8[%c0_163, %c0_164] : memref<1x128xf32, #tpu.memory_space<vmem>>, vector<1x128xf32>
    %619 = vector.broadcast %618 : vector<1x128xf32> to vector<72x128xf32>
    %620 = arith.addf %617, %619 : vector<72x128xf32>
    %c0_165 = arith.constant 0 : index
    %c0_166 = arith.constant 0 : index
    %621 = vector.load %arg9[%c0_165, %c0_166] : memref<72x128xf32, #tpu.memory_space<vmem>>, vector<72x128xf32>
    tpu.vector_store %arg9[%c0_165, %c0_166], %620 {strides = array<i32>} : memref<72x128xf32, #tpu.memory_space<vmem>>, vector<72x128xf32>,
    return
  }
}

</mosaic_0001>

<llo_original>
// kernel: cnn_to_rnn_forward.2
$region0: #{cnn_to_rnn_forward.2}
  #allocation0 [shape = 'u32[]', space=smem, size = 0x4, offset = 0x4, fixed_abs, tag = 'smem constant byte address 0x4 - core index']
  #allocation1 [shape = 'u32[72,128]{1,0:T(1,128)}', space=vmem, size = 0x9000, scoped, tag = 'internal scratch']
  %s0 = inlined_call_operand.vmem [shape: bf16[2,196,128], index: 0, kind: input, shape index: {}]
  %s1 = inlined_call_operand.vmem [shape: bf16[128,128], index: 1, kind: input, shape index: {}]
  %s2 = inlined_call_operand.vmem [shape: f32[1,128], index: 2, kind: input, shape index: {}]
  %s3 = inlined_call_operand.vmem [shape: bf16[128,128], index: 3, kind: input, shape index: {}]
  %s4 = inlined_call_operand.vmem [shape: f32[1,128], index: 4, kind: input, shape index: {}]
  %s5 = inlined_call_operand.vmem [shape: f32[2,1,128], index: 5, kind: output, shape index: {}]
  %s6 = sld [smem:[#allocation0]]
  $region53: #{cnn_to_rnn_forward.2} parent=0
    _
  %s8 = ssub.s32 1, %s6
  %s9 = scalar_select 0, %s8, %s6
  loop: start=0, step=1, limit=4
  $region2: #{cnn_to_rnn_forward.2} parent=0 // loop_pre_header
    _
  $region3: #{cnn_to_rnn_forward.2} parent=0 // loop_header
    %s11 = sphi 0, %s15
    %p12 = scmp.ge.s32.totalorder %s11, 4
    %s21 = sphi 0, %s23
    %s24 = sphi 0, %s21
    %s25 = sphi 0, %s24
    %s41 = sphi 0, %s25
    %s45 = sphi 0, %s45
    %s47 = sphi 0, %s45
    %s48 = sphi 0, %s47
    %s62 = sphi 0, %s48
    %s66 = sphi 0, %s66
    %s68 = sphi 0, %s66
    %s69 = sphi 0, %s68
    %s83 = sphi 0, %s69
    %s87 = sphi 0, %s87
    %s89 = sphi 0, %s87
    %s90 = sphi 0, %s89
    %s104 = sphi 0, %s90
    %s108 = sphi 0, %s108
    %s110 = sphi 0, %s108
    %s111 = sphi 0, %s110
    %s125 = sphi 0, %s111
    %s131 = sphi 0, %s133
    %s134 = sphi 0, %s131
    %s135 = sphi 0, %s134
    %s151 = sphi 0, %s135
  $region4: #{cnn_to_rnn_forward.2} parent=0 // loop_header_branch
    %14 = sbr.rel (%p12) target = $region8
  $region5: #{cnn_to_rnn_forward.2} parent=0 // loop_body
    %s16 = ssub.s32 %s11, 1
    %s17 = ssub.s32 %s11, 2
    %s18 = sadd.s32 %s11, 1
    %s19 = ssub.s32 %s11, %s18
    %p20 = scmp.eq.s32.totalorder %s19, 0
    %s22 = sadd.s32 %s21, 1
    %s23 = scalar_select %p20, %s21, %s22
    %p26 = pneg %p20
    %p27 = scmp.eq.s32.totalorder %s11, 1
    %p28 = por %p26, %p27
    %p29 = scmp.ne.s32.totalorder %s21, %s24
    %p30 = scmp.eq.s32.totalorder %s11, 0
    %p31 = por %p29, %p30
    %p32 = scmp.ne.s32.totalorder %s21, %s24
    %p33 = scmp.eq.s32.totalorder %s16, 1
    %p34 = por %p32, %p33
    %p35 = scmp.ne.s32.totalorder %s24, %s25
    %p36 = scmp.eq.s32.totalorder %s16, 0
    %p37 = por %p35, %p36
    %p38 = scmp.ne.s32.totalorder %s24, %s25
    %p39 = scmp.eq.s32.totalorder %s17, 1
    %p40 = por %p38, %p39
    %p42 = scmp.ne.s32.totalorder %s25, %s41
    %p43 = scmp.eq.s32.totalorder %s17, 0
    %p44 = por %p42, %p43
    %s46 = sadd.s32 %s45, 1
    %p49 = scmp.eq.s32.totalorder %s11, 1
    %p50 = scmp.ne.s32.totalorder %s45, %s47
    %p51 = scmp.eq.s32.totalorder %s11, 0
    %p52 = por %p50, %p51
    %p53 = scmp.ne.s32.totalorder %s45, %s47
    %p54 = scmp.eq.s32.totalorder %s16, 1
    %p55 = por %p53, %p54
    %p56 = scmp.ne.s32.totalorder %s47, %s48
    %p57 = scmp.eq.s32.totalorder %s16, 0
    %p58 = por %p56, %p57
    %p59 = scmp.ne.s32.totalorder %s47, %s48
    %p60 = scmp.eq.s32.totalorder %s17, 1
    %p61 = por %p59, %p60
    %p63 = scmp.ne.s32.totalorder %s48, %s62
    %p64 = scmp.eq.s32.totalorder %s17, 0
    %p65 = por %p63, %p64
    %s67 = sadd.s32 %s66, 1
    %p70 = scmp.eq.s32.totalorder %s11, 1
    %p71 = scmp.ne.s32.totalorder %s66, %s68
    %p72 = scmp.eq.s32.totalorder %s11, 0
    %p73 = por %p71, %p72
    %p74 = scmp.ne.s32.totalorder %s66, %s68
    %p75 = scmp.eq.s32.totalorder %s16, 1
    %p76 = por %p74, %p75
    %p77 = scmp.ne.s32.totalorder %s68, %s69
    %p78 = scmp.eq.s32.totalorder %s16, 0
    %p79 = por %p77, %p78
    %p80 = scmp.ne.s32.totalorder %s68, %s69
    %p81 = scmp.eq.s32.totalorder %s17, 1
    %p82 = por %p80, %p81
    %p84 = scmp.ne.s32.totalorder %s69, %s83
    %p85 = scmp.eq.s32.totalorder %s17, 0
    %p86 = por %p84, %p85
    %s88 = sadd.s32 %s87, 1
    %p91 = scmp.eq.s32.totalorder %s11, 1
    %p92 = scmp.ne.s32.totalorder %s87, %s89
    %p93 = scmp.eq.s32.totalorder %s11, 0
    %p94 = por %p92, %p93
    %p95 = scmp.ne.s32.totalorder %s87, %s89
    %p96 = scmp.eq.s32.totalorder %s16, 1
    %p97 = por %p95, %p96
    %p98 = scmp.ne.s32.totalorder %s89, %s90
    %p99 = scmp.eq.s32.totalorder %s16, 0
    %p100 = por %p98, %p99
    %p101 = scmp.ne.s32.totalorder %s89, %s90
    %p102 = scmp.eq.s32.totalorder %s17, 1
    %p103 = por %p101, %p102
    %p105 = scmp.ne.s32.totalorder %s90, %s104
    %p106 = scmp.eq.s32.totalorder %s17, 0
    %p107 = por %p105, %p106
    %s109 = sadd.s32 %s108, 1
    %p112 = scmp.eq.s32.totalorder %s11, 1
    %p113 = scmp.ne.s32.totalorder %s108, %s110
    %p114 = scmp.eq.s32.totalorder %s11, 0
    %p115 = por %p113, %p114
    %p116 = scmp.ne.s32.totalorder %s108, %s110
    %p117 = scmp.eq.s32.totalorder %s16, 1
    %p118 = por %p116, %p117
    %p119 = scmp.ne.s32.totalorder %s110, %s111
    %p120 = scmp.eq.s32.totalorder %s16, 0
    %p121 = por %p119, %p120
    %p122 = scmp.ne.s32.totalorder %s110, %s111
    %p123 = scmp.eq.s32.totalorder %s17, 1
    %p124 = por %p122, %p123
    %p126 = scmp.ne.s32.totalorder %s111, %s125
    %p127 = scmp.eq.s32.totalorder %s17, 0
    %p128 = por %p126, %p127
    %s129 = ssub.s32 %s11, %s18
    %p130 = scmp.eq.s32.totalorder %s129, 0
    %s132 = sadd.s32 %s131, 1
    %s133 = scalar_select %p130, %s131, %s132
    %p136 = pneg %p130
    %p137 = scmp.eq.s32.totalorder %s11, 1
    %p138 = por %p136, %p137
    %p139 = scmp.ne.s32.totalorder %s131, %s134
    %p140 = scmp.eq.s32.totalorder %s11, 0
    %p141 = por %p139, %p140
    %p142 = scmp.ne.s32.totalorder %s131, %s134
    %p143 = scmp.eq.s32.totalorder %s16, 1
    %p144 = por %p142, %p143
    %p145 = scmp.ne.s32.totalorder %s134, %s135
    %p146 = scmp.eq.s32.totalorder %s16, 0
    %p147 = por %p145, %p146
    %p148 = scmp.ne.s32.totalorder %s134, %s135
    %p149 = scmp.eq.s32.totalorder %s17, 1
    %p150 = por %p148, %p149
    %p152 = scmp.ne.s32.totalorder %s135, %s151
    %p153 = scmp.eq.s32.totalorder %s17, 0
    %p154 = por %p152, %p153
    %p155 = scmp.le.s32.totalorder 1, %s11
    %p156 = scmp.lt.s32.totalorder %s11, 3
    %p157 = pnand %p155, %p156
    %p158 = pneg %p157
    // Predicated region
    $region9: #{cnn_to_rnn_forward.2} parent=5 // pred_check
      _
    $region10: #{cnn_to_rnn_forward.2} parent=5 // pred_check_branch
      %160 = sbr.rel (%p157) target = $region12
    $region11: #{cnn_to_rnn_forward.2} parent=5 // pred_region
      %s161 = ssub.s32 %s11, 1
      // Predicated region
      $region13: #{cnn_to_rnn_forward.2} parent=11 // pred_check
        %p162 = pneg %p58
      $region14: #{cnn_to_rnn_forward.2} parent=11 // pred_check_branch
        %164 = sbr.rel (%p162) target = $region16
      $region15: #{cnn_to_rnn_forward.2} parent=11 // pred_region
        _
      $region16: #{cnn_to_rnn_forward.2} parent=11 // pred_fallthru
        _
      // Predicated region
      $region17: #{cnn_to_rnn_forward.2} parent=11 // pred_check
        %p165 = pneg %p79
      $region18: #{cnn_to_rnn_forward.2} parent=11 // pred_check_branch
        %167 = sbr.rel (%p165) target = $region20
      $region19: #{cnn_to_rnn_forward.2} parent=11 // pred_region
        _
      $region20: #{cnn_to_rnn_forward.2} parent=11 // pred_fallthru
        _
      // Predicated region
      $region21: #{cnn_to_rnn_forward.2} parent=11 // pred_check
        %p168 = pneg %p100
      $region22: #{cnn_to_rnn_forward.2} parent=11 // pred_check_branch
        %170 = sbr.rel (%p168) target = $region24
      $region23: #{cnn_to_rnn_forward.2} parent=11 // pred_region
        _
      $region24: #{cnn_to_rnn_forward.2} parent=11 // pred_fallthru
        _
      // Predicated region
      $region25: #{cnn_to_rnn_forward.2} parent=11 // pred_check
        %p171 = pneg %p121
      $region26: #{cnn_to_rnn_forward.2} parent=11 // pred_check_branch
        %173 = sbr.rel (%p171) target = $region28
      $region27: #{cnn_to_rnn_forward.2} parent=11 // pred_region
        _
      $region28: #{cnn_to_rnn_forward.2} parent=11 // pred_fallthru
        _
    $region12: #{cnn_to_rnn_forward.2} parent=5 // pred_fallthru
      _
    %p174 = scmp.lt.s32.totalorder %s11, 2
    // Predicated region
    $region29: #{cnn_to_rnn_forward.2} parent=5 // pred_check
      %p175 = pneg %p174
    $region30: #{cnn_to_rnn_forward.2} parent=5 // pred_check_branch
      %177 = sbr.rel (%p175) target = $region32
    $region31: #{cnn_to_rnn_forward.2} parent=5 // pred_region
      // Predicated region
      $region33: #{cnn_to_rnn_forward.2} parent=31 // pred_check
        %p178 = pneg %p31
      $region34: #{cnn_to_rnn_forward.2} parent=31 // pred_check_branch
        %180 = sbr.rel (%p178) target = $region36
      $region35: #{cnn_to_rnn_forward.2} parent=31 // pred_region
        %p181 = scmp.lt.s32.totalorder %s11, 1
        %s182 = scalar_select %p181, %s11, 1
        %s183 = smul.addr %s182, 25
        %s184 = smul.addr %s183, 4
        %s185 = scalar_lea.vmem %s0, %s184
      $region36: #{cnn_to_rnn_forward.2} parent=31 // pred_fallthru
        _
    $region32: #{cnn_to_rnn_forward.2} parent=5 // pred_fallthru
      _
    %p186 = scmp.le.s32.totalorder 1, %s11
    %p187 = scmp.lt.s32.totalorder %s11, 3
    %p188 = pnand %p186, %p187
    %p189 = pneg %p188
    // Predicated region
    $region37: #{cnn_to_rnn_forward.2} parent=5 // pred_check
      _
    $region38: #{cnn_to_rnn_forward.2} parent=5 // pred_check_branch
      %191 = sbr.rel (%p188) target = $region40
    $region39: #{cnn_to_rnn_forward.2} parent=5 // pred_region
      %s192 = ssub.s32 %s11, 1
      %p193 = scmp.lt.s32.totalorder %s16, 1
      %s194 = scalar_select %p193, %s16, 1
      %s195 = smul.addr %s194, 25
      %s196 = smul.addr %s195, 4
      %s197 = scalar_lea.vmem %s0, %s196
      %p198 = pneg %p37
      %p199 = pneg %p34
      %p200 = pneg %p58
      %p201 = pneg %p55
      %p202 = pneg %p79
      %p203 = pneg %p76
      %p204 = pneg %p100
      %p205 = pneg %p97
      %p206 = pneg %p121
      %p207 = pneg %p118
      %p208 = pneg %p147
      %p209 = pneg %p144
      %p210 = scmp.lt.s32.totalorder %s16, 1
      %s211 = scalar_select %p210, %s16, 1
      %s212 = scalar_lea.vmem %s5, %s211
      %p213 = scmp.lt.s32.totalorder %s16, 1
      %s214 = scalar_select %p213, %s16, 1
      %s215 = smul.addr %s214, 25
      %s216 = smul.addr %s215, 4
      %s217 = scalar_lea.vmem %s0, %s216
      %p218 = scmp.lt.s32.totalorder %s16, 1
      %s219 = scalar_select %p218, %s16, 1
      %s220 = scalar_lea.vmem %s5, %s219
      %v221 = vld [vmem:[%s217] sm:$0xf]
      %v222 = vld [vmem:[%s217 + $0x4] sm:$0xf]
      %v223 = vld [vmem:[%s217 + $0x8] sm:$0xf]
      %v224 = vld [vmem:[%s217 + $0xc] sm:$0xf]
      %v225 = vld [vmem:[%s217 + $0x10] sm:$0xf]
      %v226 = vld [vmem:[%s217 + $0x14] sm:$0xf]
      %v227 = vld [vmem:[%s217 + $0x18] sm:$0xf]
      %v228 = vld [vmem:[%s217 + $0x1c] sm:$0xf]
      %v229 = vld [vmem:[%s217 + $0x20] sm:$0xf]
      %v230 = vld [vmem:[%s217 + $0x24] sm:$0xf]
      %v231 = vld [vmem:[%s217 + $0x28] sm:$0xf]
      %v232 = vld [vmem:[%s217 + $0x2c] sm:$0xf]
      %v233 = vld [vmem:[%s217 + $0x30] sm:$0xf]
      %v234 = vld [vmem:[%s217 + $0x34] sm:$0xf]
      %v235 = vld [vmem:[%s217 + $0x38] sm:$0xf]
      %v236 = vld [vmem:[%s217 + $0x3c] sm:$0xf]
      %v237 = vld [vmem:[%s217 + $0x40] sm:$0xf]
      %v238 = vld [vmem:[%s217 + $0x44] sm:$0xf]
      %v239 = vld [vmem:[%s217 + $0x48] sm:$0xf]
      %v240 = vld [vmem:[%s217 + $0x4c] sm:$0xf]
      %v241 = vld [vmem:[%s217 + $0x50] sm:$0xf]
      %v242 = vld [vmem:[%s217 + $0x54] sm:$0xf]
      %v243 = vld [vmem:[%s217 + $0x58] sm:$0xf]
      %v244 = vld [vmem:[%s217 + $0x5c] sm:$0xf]
      %v245 = vld [vmem:[%s217 + $0x60] sm:$0x3]
      %v246 = vld [vmem:[%s1] sm:$0xf]
      %v247 = vld [vmem:[%s1 + $0x4] sm:$0xf]
      %v248 = vld [vmem:[%s1 + $0x8] sm:$0xf]
      %v249 = vld [vmem:[%s1 + $0xc] sm:$0xf]
      %v250 = vld [vmem:[%s1 + $0x10] sm:$0xf]
      %v251 = vld [vmem:[%s1 + $0x14] sm:$0xf]
      %v252 = vld [vmem:[%s1 + $0x18] sm:$0xf]
      %v253 = vld [vmem:[%s1 + $0x1c] sm:$0xf]
      %v254 = vld [vmem:[%s1 + $0x20] sm:$0xf]
      %v255 = vld [vmem:[%s1 + $0x24] sm:$0xf]
      %v256 = vld [vmem:[%s1 + $0x28] sm:$0xf]
      %v257 = vld [vmem:[%s1 + $0x2c] sm:$0xf]
      %v258 = vld [vmem:[%s1 + $0x30] sm:$0xf]
      %v259 = vld [vmem:[%s1 + $0x34] sm:$0xf]
      %v260 = vld [vmem:[%s1 + $0x38] sm:$0xf]
      %v261 = vld [vmem:[%s1 + $0x3c] sm:$0xf]
      %v262 = vld [vmem:[%s2] sm:$0x1]
      %v264 = vperm.slane %v262, 0
      %v291 = vunpack.c.l.b16 %v221
      %v292 = vunpack.c.l.b16 %v222
      %v293 = vunpack.c.l.b16 %v223
      %v294 = vunpack.c.l.b16 %v224
      %v295 = vunpack.c.l.b16 %v225
      %v296 = vunpack.c.l.b16 %v226
      %v297 = vunpack.c.l.b16 %v227
      %v298 = vunpack.c.l.b16 %v228
      %v299 = vunpack.c.l.b16 %v229
      %v300 = vunpack.c.l.b16 %v230
      %v301 = vunpack.c.l.b16 %v231
      %v302 = vunpack.c.l.b16 %v232
      %v303 = vunpack.c.l.b16 %v233
      %v304 = vunpack.c.l.b16 %v234
      %v305 = vunpack.c.l.b16 %v235
      %v306 = vunpack.c.l.b16 %v236
      %v307 = vunpack.c.l.b16 %v237
      %v308 = vunpack.c.l.b16 %v238
      %v309 = vunpack.c.l.b16 %v239
      %v310 = vunpack.c.l.b16 %v240
      %v311 = vunpack.c.l.b16 %v241
      %v312 = vunpack.c.l.b16 %v242
      %v313 = vunpack.c.l.b16 %v243
      %v314 = vunpack.c.l.b16 %v244
      %v315 = vunpack.c.l.b16 %v245
      %v316 = vpack.c.b16 %v292, %v291
      %v317 = vpack.c.b16 %v294, %v293
      %v318 = vpack.c.b16 %v296, %v295
      %v319 = vpack.c.b16 %v298, %v297
      %v320 = vpack.c.b16 %v300, %v299
      %v321 = vpack.c.b16 %v302, %v301
      %v322 = vpack.c.b16 %v304, %v303
      %v323 = vpack.c.b16 %v306, %v305
      %v324 = vpack.c.b16 %v308, %v307
      %v325 = vpack.c.b16 %v310, %v309
      %v326 = vpack.c.b16 %v312, %v311
      %v327 = vpack.c.b16 %v314, %v313
      %v328 = vpack.c.b16 %v315, %v315
      %v358 = vunpack.c.l.b16 %v246
      %v359 = vunpack.c.l.b16 %v247
      %v360 = vunpack.c.l.b16 %v248
      %v361 = vunpack.c.l.b16 %v249
      %v362 = vunpack.c.l.b16 %v250
      %v363 = vunpack.c.l.b16 %v251
      %v364 = vunpack.c.l.b16 %v252
      %v365 = vunpack.c.l.b16 %v253
      %v366 = vunpack.c.l.b16 %v254
      %v367 = vunpack.c.l.b16 %v255
      %v368 = vunpack.c.l.b16 %v256
      %v369 = vunpack.c.l.b16 %v257
      %v370 = vunpack.c.l.b16 %v258
      %v371 = vunpack.c.l.b16 %v259
      %v372 = vunpack.c.l.b16 %v260
      %v373 = vunpack.c.l.b16 %v261
      %v374 = vpack.c.b16 %v359, %v358
      %v375 = vpack.c.b16 %v361, %v360
      %v376 = vpack.c.b16 %v363, %v362
      %v377 = vpack.c.b16 %v365, %v364
      %v378 = vpack.c.b16 %v367, %v366
      %v379 = vpack.c.b16 %v369, %v368
      %v380 = vpack.c.b16 %v371, %v370
      %v381 = vpack.c.b16 %v373, %v372
      %390 = vmatpush.bf16.msra.mxu0 %v381
      %391 = vmatpush.bf16.msra.mxu0 %v380
      %392 = vmatpush.bf16.msra.mxu0 %v379
      %393 = vmatpush.bf16.msra.mxu0 %v378
      %394 = vmatpush.bf16.msra.mxu0 %v377
      %395 = vmatpush.bf16.msra.mxu0 %v376
      %396 = vmatpush.bf16.msra.mxu0 %v375
      %397 = vmatpush.bf16.msra.mxu0 %v374
      %398 = vmatmul.bf16.gmra.mxu0 %v316
      %v399 = vpop.f32.mrf.mxu0
      %v400 = vadd.f32 %v264, %v399
      %v401 = vpop.f32.mrf.mxu0
      %v402 = vadd.f32 %v264, %v401
      %403 = vmatmul.bf16.gmra.mxu0 %v317
      %v404 = vpop.f32.mrf.mxu0
      %v405 = vadd.f32 %v264, %v404
      %v406 = vpop.f32.mrf.mxu0
      %v407 = vadd.f32 %v264, %v406
      %408 = vmatmul.bf16.gmra.mxu0 %v318
      %v409 = vpop.f32.mrf.mxu0
      %v410 = vadd.f32 %v264, %v409
      %v411 = vpop.f32.mrf.mxu0
      %v412 = vadd.f32 %v264, %v411
      %413 = vmatmul.bf16.gmra.mxu0 %v319
      %v414 = vpop.f32.mrf.mxu0
      %v415 = vadd.f32 %v264, %v414
      %v416 = vpop.f32.mrf.mxu0
      %v417 = vadd.f32 %v264, %v416
      %418 = vmatmul.bf16.gmra.mxu0 %v320
      %v419 = vpop.f32.mrf.mxu0
      %v420 = vadd.f32 %v264, %v419
      %v421 = vpop.f32.mrf.mxu0
      %v422 = vadd.f32 %v264, %v421
      %423 = vmatmul.bf16.gmra.mxu0 %v321
      %v424 = vpop.f32.mrf.mxu0
      %v425 = vadd.f32 %v264, %v424
      %v426 = vpop.f32.mrf.mxu0
      %v427 = vadd.f32 %v264, %v426
      %428 = vmatmul.bf16.gmra.mxu0 %v322
      %v429 = vpop.f32.mrf.mxu0
      %v430 = vadd.f32 %v264, %v429
      %v431 = vpop.f32.mrf.mxu0
      %v432 = vadd.f32 %v264, %v431
      %433 = vmatmul.bf16.gmra.mxu0 %v323
      %v434 = vpop.f32.mrf.mxu0
      %v435 = vadd.f32 %v264, %v434
      %v436 = vpop.f32.mrf.mxu0
      %v437 = vadd.f32 %v264, %v436
      %438 = vmatmul.bf16.gmra.mxu0 %v324
      %v439 = vpop.f32.mrf.mxu0
      %v440 = vadd.f32 %v264, %v439
      %v441 = vpop.f32.mrf.mxu0
      %v442 = vadd.f32 %v264, %v441
      %443 = vmatmul.bf16.gmra.mxu0 %v325
      %v444 = vpop.f32.mrf.mxu0
      %v445 = vadd.f32 %v264, %v444
      %v446 = vpop.f32.mrf.mxu0
      %v447 = vadd.f32 %v264, %v446
      %448 = vmatmul.bf16.gmra.mxu0 %v326
      %v449 = vpop.f32.mrf.mxu0
      %v450 = vadd.f32 %v264, %v449
      %v451 = vpop.f32.mrf.mxu0
      %v452 = vadd.f32 %v264, %v451
      %453 = vmatmul.bf16.gmra.mxu0 %v327
      %v454 = vpop.f32.mrf.mxu0
      %v455 = vadd.f32 %v264, %v454
      %v456 = vpop.f32.mrf.mxu0
      %v457 = vadd.f32 %v264, %v456
      %458 = vmatmul.bf16.gmra.mxu0 %v328
      %v459 = vpop.f32.mrf.mxu0
      %v460 = vadd.f32 %v264, %v459
      %v461 = vpop.f32.mrf.mxu0
      %462 = vdwg.mxu0
      %v463 = vmax.f32 %v400, 0.0
      %v464 = vmax.f32 %v402, 0.0
      %v465 = vmax.f32 %v405, 0.0
      %v466 = vmax.f32 %v407, 0.0
      %v467 = vmax.f32 %v410, 0.0
      %v468 = vmax.f32 %v412, 0.0
      %v469 = vmax.f32 %v415, 0.0
      %v470 = vmax.f32 %v417, 0.0
      %v471 = vmax.f32 %v420, 0.0
      %v472 = vmax.f32 %v422, 0.0
      %v473 = vmax.f32 %v425, 0.0
      %v474 = vmax.f32 %v427, 0.0
      %v475 = vmax.f32 %v430, 0.0
      %v476 = vmax.f32 %v432, 0.0
      %v477 = vmax.f32 %v435, 0.0
      %v478 = vmax.f32 %v437, 0.0
      %v479 = vmax.f32 %v440, 0.0
      %v480 = vmax.f32 %v442, 0.0
      %v481 = vmax.f32 %v445, 0.0
      %v482 = vmax.f32 %v447, 0.0
      %v483 = vmax.f32 %v450, 0.0
      %v484 = vmax.f32 %v452, 0.0
      %v485 = vmax.f32 %v455, 0.0
      %v486 = vmax.f32 %v457, 0.0
      %v487 = vmax.f32 %v460, 0.0
      %v488 = vadd.f32 %v463, %v464
      %v489 = vadd.f32 %v488, %v465
      %v490 = vadd.f32 %v489, %v466
      %v491 = vadd.f32 %v490, %v467
      %v492 = vadd.f32 %v491, %v468
      %v493 = vadd.f32 %v492, %v469
      %v494 = vadd.f32 %v493, %v470
      %v495 = vadd.f32 %v494, %v471
      %v496 = vadd.f32 %v495, %v472
      %v497 = vadd.f32 %v496, %v473
      %v498 = vadd.f32 %v497, %v474
      %v499 = vadd.f32 %v498, %v475
      %v500 = vadd.f32 %v499, %v476
      %v501 = vadd.f32 %v500, %v477
      %v502 = vadd.f32 %v501, %v478
      %v503 = vadd.f32 %v502, %v479
      %v504 = vadd.f32 %v503, %v480
      %v505 = vadd.f32 %v504, %v481
      %v506 = vadd.f32 %v505, %v482
      %v507 = vadd.f32 %v506, %v483
      %v508 = vadd.f32 %v507, %v484
      %v509 = vadd.f32 %v508, %v485
      %v510 = vadd.f32 %v509, %v486
      %vm511 = vcmask 1043456
      %v512 = vsel %vm511, %v487, 0.0
      %v513 = vadd.f32 %v510, %v512
      %v514 = vrot.slane %v513, 4
      %v515 = vadd.f32 %v513, %v514
      %v516 = vrot.slane %v515, 2
      %v517 = vadd.f32 %v515, %v516
      %v518 = vrot.slane %v517, 1
      %v519 = vadd.f32 %v517, %v518
      %v520 = vrcp.pop 196.0
      %v521 = vmul.f32 196.0, %v520
      %v522 = vsub.f32 1.0, %v521
      %v523 = vmul.f32 %v520, %v522
      %v524 = vadd.f32 %v520, %v523
      %vm525 = vweird.f32 %v520
      %v526 = vsel %vm525, %v520, %v524
      %v527 = vmul.f32 %v519, %v526
      %v528 = vpack.c.bf16 %v527, %v527
      %v529 = vld [vmem:[%s3] sm:$0xf]
      %v530 = vld [vmem:[%s3 + $0x4] sm:$0xf]
      %v531 = vld [vmem:[%s3 + $0x8] sm:$0xf]
      %v532 = vld [vmem:[%s3 + $0xc] sm:$0xf]
      %v533 = vld [vmem:[%s3 + $0x10] sm:$0xf]
      %v534 = vld [vmem:[%s3 + $0x14] sm:$0xf]
      %v535 = vld [vmem:[%s3 + $0x18] sm:$0xf]
      %v536 = vld [vmem:[%s3 + $0x1c] sm:$0xf]
      %v537 = vld [vmem:[%s3 + $0x20] sm:$0xf]
      %v538 = vld [vmem:[%s3 + $0x24] sm:$0xf]
      %v539 = vld [vmem:[%s3 + $0x28] sm:$0xf]
      %v540 = vld [vmem:[%s3 + $0x2c] sm:$0xf]
      %v541 = vld [vmem:[%s3 + $0x30] sm:$0xf]
      %v542 = vld [vmem:[%s3 + $0x34] sm:$0xf]
      %v543 = vld [vmem:[%s3 + $0x38] sm:$0xf]
      %v544 = vld [vmem:[%s3 + $0x3c] sm:$0xf]
      %v545 = vld [vmem:[%s4] sm:$0x1]
      %v562 = vunpack.c.l.b16 %v529
      %v563 = vunpack.c.l.b16 %v530
      %v564 = vunpack.c.l.b16 %v531
      %v565 = vunpack.c.l.b16 %v532
      %v566 = vunpack.c.l.b16 %v533
      %v567 = vunpack.c.l.b16 %v534
      %v568 = vunpack.c.l.b16 %v535
      %v569 = vunpack.c.l.b16 %v536
      %v570 = vunpack.c.l.b16 %v537
      %v571 = vunpack.c.l.b16 %v538
      %v572 = vunpack.c.l.b16 %v539
      %v573 = vunpack.c.l.b16 %v540
      %v574 = vunpack.c.l.b16 %v541
      %v575 = vunpack.c.l.b16 %v542
      %v576 = vunpack.c.l.b16 %v543
      %v577 = vunpack.c.l.b16 %v544
      %v578 = vpack.c.b16 %v563, %v562
      %v579 = vpack.c.b16 %v565, %v564
      %v580 = vpack.c.b16 %v567, %v566
      %v581 = vpack.c.b16 %v569, %v568
      %v582 = vpack.c.b16 %v571, %v570
      %v583 = vpack.c.b16 %v573, %v572
      %v584 = vpack.c.b16 %v575, %v574
      %v585 = vpack.c.b16 %v577, %v576
      %594 = vmatpush.bf16.msra.mxu0 %v585
      %595 = vmatpush.bf16.msra.mxu0 %v584
      %596 = vmatpush.bf16.msra.mxu0 %v583
      %597 = vmatpush.bf16.msra.mxu0 %v582
      %598 = vmatpush.bf16.msra.mxu0 %v581
      %599 = vmatpush.bf16.msra.mxu0 %v580
      %600 = vmatpush.bf16.msra.mxu0 %v579
      %601 = vmatpush.bf16.msra.mxu0 %v578
      %602 = vmatmul.bf16.gmra.mxu0 %v528
      %v603 = vpop.f32.mrf.mxu0
      %v604 = vadd.f32 %v545, %v603
      %v605 = vpop.f32.mrf.mxu0
      %606 = vdwg.mxu0
      %v607 = vmax.f32 %v604, 0.0
      %608 = vst [vmem:[%s220] sm:$0x1] %v607
      %p609 = scmp.lt.s32.totalorder %s16, 1
      %s610 = scalar_select %p609, %s16, 1
      %s611 = scalar_lea.vmem %s5, %s610
      // Predicated region
      $region41: #{cnn_to_rnn_forward.2} parent=39 // pred_check
        %p612 = pneg %p144
      $region42: #{cnn_to_rnn_forward.2} parent=39 // pred_check_branch
        %614 = sbr.rel (%p612) target = $region44
      $region43: #{cnn_to_rnn_forward.2} parent=39 // pred_region
        _
      $region44: #{cnn_to_rnn_forward.2} parent=39 // pred_fallthru
        _
    $region40: #{cnn_to_rnn_forward.2} parent=5 // pred_fallthru
      _
    %p615 = scmp.le.s32.totalorder 2, %s11
    // Predicated region
    $region45: #{cnn_to_rnn_forward.2} parent=5 // pred_check
      %p616 = pneg %p615
    $region46: #{cnn_to_rnn_forward.2} parent=5 // pred_check_branch
      %618 = sbr.rel (%p616) target = $region48
    $region47: #{cnn_to_rnn_forward.2} parent=5 // pred_region
      %s619 = ssub.s32 %s11, 2
      // Predicated region
      $region49: #{cnn_to_rnn_forward.2} parent=47 // pred_check
        %p620 = pneg %p150
      $region50: #{cnn_to_rnn_forward.2} parent=47 // pred_check_branch
        %622 = sbr.rel (%p620) target = $region52
      $region51: #{cnn_to_rnn_forward.2} parent=47 // pred_region
        %p623 = scmp.lt.s32.totalorder %s17, 1
        %s624 = scalar_select %p623, %s17, 1
        %s625 = scalar_lea.vmem %s5, %s624
      $region52: #{cnn_to_rnn_forward.2} parent=47 // pred_fallthru
        _
    $region48: #{cnn_to_rnn_forward.2} parent=5 // pred_fallthru
      _
  $region6: #{cnn_to_rnn_forward.2} parent=0 // loop_footer
    %s15 = sadd.s32 1, %s11
  $region7: #{cnn_to_rnn_forward.2} parent=0 // loop_footer_branch
    %10 = sbr.rel target = $region3
  $region8: #{cnn_to_rnn_forward.2} parent=0 // loop_exit
    _

// kernel: cnn_to_rnn_forward.3
$region0: #{cnn_to_rnn_forward.3}
  #allocation0 [shape = 'u32[]', space=smem, size = 0x4, offset = 0x4, fixed_abs, tag = 'smem constant byte address 0x4 - core index']
  #allocation1 [shape = 'u32[72,128]{1,0:T(1,128)}', space=vmem, size = 0x9000, scoped, tag = 'internal scratch']
  #allocation2 [shape = 'f32[72,128]{1,0:T(8,128)}', space=vmem, size = 0x9000, scoped, tag = 'scratch operand']
  #allocation3 [shape = 'f32[72,512]{1,0:T(8,128)}', space=vmem, size = 0x24000, scoped, tag = 'scratch operand']
  %s0 = inlined_call_operand.vmem [shape: f32[72,128], index: 0, kind: input, shape index: {}]
  %s1 = inlined_call_operand.vmem [shape: bf16[128,512], index: 1, kind: input, shape index: {}]
  %s2 = inlined_call_operand.vmem [shape: f32[128,512], index: 2, kind: input, shape index: {}]
  %s3 = inlined_call_operand.vmem [shape: f32[1,512], index: 3, kind: input, shape index: {}]
  %s4 = inlined_call_operand.vmem [shape: bf16[128,512], index: 4, kind: input, shape index: {}]
  %s5 = inlined_call_operand.vmem [shape: f32[128,512], index: 5, kind: input, shape index: {}]
  %s6 = inlined_call_operand.vmem [shape: f32[1,512], index: 6, kind: input, shape index: {}]
  %s7 = inlined_call_operand.vmem [shape: bf16[128,128], index: 7, kind: input, shape index: {}]
  %s8 = inlined_call_operand.vmem [shape: f32[1,128], index: 8, kind: input, shape index: {}]
  %s9 = inlined_call_operand.vmem [shape: f32[72,128], index: 9, kind: output, shape index: {}]
  %s10 = sld [smem:[#allocation0]]
  $region46: #{cnn_to_rnn_forward.3} parent=0
    _
  %s12 = ssub.s32 1, %s10
  %s13 = scalar_select 0, %s12, %s10
  // Predicated region
  $region2: #{cnn_to_rnn_forward.3} parent=0 // pred_check
    _
  $region3: #{cnn_to_rnn_forward.3} parent=0 // pred_check_branch
    %15 = sbr.rel (0) target = $region5
  $region4: #{cnn_to_rnn_forward.3} parent=0 // pred_region
    _
  $region5: #{cnn_to_rnn_forward.3} parent=0 // pred_fallthru
    _
  // Predicated region
  $region6: #{cnn_to_rnn_forward.3} parent=0 // pred_check
    _
  $region7: #{cnn_to_rnn_forward.3} parent=0 // pred_check_branch
    %17 = sbr.rel (0) target = $region9
  $region8: #{cnn_to_rnn_forward.3} parent=0 // pred_region
    _
  $region9: #{cnn_to_rnn_forward.3} parent=0 // pred_fallthru
    _
  // Predicated region
  $region10: #{cnn_to_rnn_forward.3} parent=0 // pred_check
    _
  $region11: #{cnn_to_rnn_forward.3} parent=0 // pred_check_branch
    %19 = sbr.rel (0) target = $region13
  $region12: #{cnn_to_rnn_forward.3} parent=0 // pred_region
    _
  $region13: #{cnn_to_rnn_forward.3} parent=0 // pred_fallthru
    _
  // Predicated region
  $region14: #{cnn_to_rnn_forward.3} parent=0 // pred_check
    _
  $region15: #{cnn_to_rnn_forward.3} parent=0 // pred_check_branch
    %21 = sbr.rel (0) target = $region17
  $region16: #{cnn_to_rnn_forward.3} parent=0 // pred_region
    _
  $region17: #{cnn_to_rnn_forward.3} parent=0 // pred_fallthru
    _
  // Predicated region
  $region18: #{cnn_to_rnn_forward.3} parent=0 // pred_check
    _
  $region19: #{cnn_to_rnn_forward.3} parent=0 // pred_check_branch
    %23 = sbr.rel (0) target = $region21
  $region20: #{cnn_to_rnn_forward.3} parent=0 // pred_region
    _
  $region21: #{cnn_to_rnn_forward.3} parent=0 // pred_fallthru
    _
  // Predicated region
  $region22: #{cnn_to_rnn_forward.3} parent=0 // pred_check
    _
  $region23: #{cnn_to_rnn_forward.3} parent=0 // pred_check_branch
    %25 = sbr.rel (0) target = $region25
  $region24: #{cnn_to_rnn_forward.3} parent=0 // pred_region
    _
  $region25: #{cnn_to_rnn_forward.3} parent=0 // pred_fallthru
    _
  // Predicated region
  $region26: #{cnn_to_rnn_forward.3} parent=0 // pred_check
    _
  $region27: #{cnn_to_rnn_forward.3} parent=0 // pred_check_branch
    %27 = sbr.rel (0) target = $region29
  $region28: #{cnn_to_rnn_forward.3} parent=0 // pred_region
    _
  $region29: #{cnn_to_rnn_forward.3} parent=0 // pred_fallthru
    _
  // Predicated region
  $region30: #{cnn_to_rnn_forward.3} parent=0 // pred_check
    _
  $region31: #{cnn_to_rnn_forward.3} parent=0 // pred_check_branch
    %29 = sbr.rel (0) target = $region33
  $region32: #{cnn_to_rnn_forward.3} parent=0 // pred_region
    _
  $region33: #{cnn_to_rnn_forward.3} parent=0 // pred_fallthru
    _
  // Predicated region
  $region34: #{cnn_to_rnn_forward.3} parent=0 // pred_check
    _
  $region35: #{cnn_to_rnn_forward.3} parent=0 // pred_check_branch
    %31 = sbr.rel (0) target = $region37
  $region36: #{cnn_to_rnn_forward.3} parent=0 // pred_region
    _
  $region37: #{cnn_to_rnn_forward.3} parent=0 // pred_fallthru
    _
  %v32 = vld [vmem:[%s0] sm:$0xff]
  %v33 = vld [vmem:[%s0 + $0x8] sm:$0xff]
  %v34 = vld [vmem:[%s0 + $0x10] sm:$0xff]
  %v35 = vld [vmem:[%s0 + $0x18] sm:$0xff]
  %v36 = vld [vmem:[%s0 + $0x20] sm:$0xff]
  %v37 = vld [vmem:[%s0 + $0x28] sm:$0xff]
  %v38 = vld [vmem:[%s0 + $0x30] sm:$0xff]
  %v39 = vld [vmem:[%s0 + $0x38] sm:$0xff]
  %v40 = vld [vmem:[%s0 + $0x40] sm:$0xff]
  %v41 = vpack.c.bf16 %v33, %v32
  %v42 = vpack.c.bf16 %v35, %v34
  %v43 = vpack.c.bf16 %v37, %v36
  %v44 = vpack.c.bf16 %v39, %v38
  %v45 = vpack.c.bf16 %v40, %v40
  %v46 = vld [vmem:[%s1] sm:$0xff]
  %v47 = vld [vmem:[%s1 + $0x8] sm:$0xff]
  %v48 = vld [vmem:[%s1 + $0x10] sm:$0xff]
  %v49 = vld [vmem:[%s1 + $0x18] sm:$0xff]
  %v50 = vld [vmem:[%s1 + $0x20] sm:$0xff]
  %v51 = vld [vmem:[%s1 + $0x28] sm:$0xff]
  %v52 = vld [vmem:[%s1 + $0x30] sm:$0xff]
  %v53 = vld [vmem:[%s1 + $0x38] sm:$0xff]
  %v54 = vld [vmem:[%s1 + $0x40] sm:$0xff]
  %v55 = vld [vmem:[%s1 + $0x48] sm:$0xff]
  %v56 = vld [vmem:[%s1 + $0x50] sm:$0xff]
  %v57 = vld [vmem:[%s1 + $0x58] sm:$0xff]
  %v58 = vld [vmem:[%s1 + $0x60] sm:$0xff]
  %v59 = vld [vmem:[%s1 + $0x68] sm:$0xff]
  %v60 = vld [vmem:[%s1 + $0x70] sm:$0xff]
  %v61 = vld [vmem:[%s1 + $0x78] sm:$0xff]
  %v62 = vld [vmem:[%s1 + $0x80] sm:$0xff]
  %v63 = vld [vmem:[%s1 + $0x88] sm:$0xff]
  %v64 = vld [vmem:[%s1 + $0x90] sm:$0xff]
  %v65 = vld [vmem:[%s1 + $0x98] sm:$0xff]
  %v66 = vld [vmem:[%s1 + $0xa0] sm:$0xff]
  %v67 = vld [vmem:[%s1 + $0xa8] sm:$0xff]
  %v68 = vld [vmem:[%s1 + $0xb0] sm:$0xff]
  %v69 = vld [vmem:[%s1 + $0xb8] sm:$0xff]
  %v70 = vld [vmem:[%s1 + $0xc0] sm:$0xff]
  %v71 = vld [vmem:[%s1 + $0xc8] sm:$0xff]
  %v72 = vld [vmem:[%s1 + $0xd0] sm:$0xff]
  %v73 = vld [vmem:[%s1 + $0xd8] sm:$0xff]
  %v74 = vld [vmem:[%s1 + $0xe0] sm:$0xff]
  %v75 = vld [vmem:[%s1 + $0xe8] sm:$0xff]
  %v76 = vld [vmem:[%s1 + $0xf0] sm:$0xff]
  %v77 = vld [vmem:[%s1 + $0xf8] sm:$0xff]
  %v78 = vld [vmem:[%s3] sm:$0xf]
  %v80 = vperm.slane %v78, 0
  %v81 = vperm.slane %v78, 1
  %v82 = vperm.slane %v78, 2
  %v83 = vperm.slane %v78, 3
  %v120 = vunpack.c.l.b16 %v46
  %v121 = vunpack.c.h.b16 %v46
  %v122 = vunpack.c.l.b16 %v47
  %v123 = vunpack.c.h.b16 %v47
  %v124 = vunpack.c.l.b16 %v48
  %v125 = vunpack.c.h.b16 %v48
  %v126 = vunpack.c.l.b16 %v49
  %v127 = vunpack.c.h.b16 %v49
  %v128 = vunpack.c.l.b16 %v50
  %v129 = vunpack.c.h.b16 %v50
  %v130 = vunpack.c.l.b16 %v51
  %v131 = vunpack.c.h.b16 %v51
  %v132 = vunpack.c.l.b16 %v52
  %v133 = vunpack.c.h.b16 %v52
  %v134 = vunpack.c.l.b16 %v53
  %v135 = vunpack.c.h.b16 %v53
  %v136 = vunpack.c.l.b16 %v54
  %v137 = vunpack.c.h.b16 %v54
  %v138 = vunpack.c.l.b16 %v55
  %v139 = vunpack.c.h.b16 %v55
  %v140 = vunpack.c.l.b16 %v56
  %v141 = vunpack.c.h.b16 %v56
  %v142 = vunpack.c.l.b16 %v57
  %v143 = vunpack.c.h.b16 %v57
  %v144 = vunpack.c.l.b16 %v58
  %v145 = vunpack.c.h.b16 %v58
  %v146 = vunpack.c.l.b16 %v59
  %v147 = vunpack.c.h.b16 %v59
  %v148 = vunpack.c.l.b16 %v60
  %v149 = vunpack.c.h.b16 %v60
  %v150 = vunpack.c.l.b16 %v61
  %v151 = vunpack.c.h.b16 %v61
  %v152 = vunpack.c.l.b16 %v62
  %v153 = vunpack.c.h.b16 %v62
  %v154 = vunpack.c.l.b16 %v63
  %v155 = vunpack.c.h.b16 %v63
  %v156 = vunpack.c.l.b16 %v64
  %v157 = vunpack.c.h.b16 %v64
  %v158 = vunpack.c.l.b16 %v65
  %v159 = vunpack.c.h.b16 %v65
  %v160 = vunpack.c.l.b16 %v66
  %v161 = vunpack.c.h.b16 %v66
  %v162 = vunpack.c.l.b16 %v67
  %v163 = vunpack.c.h.b16 %v67
  %v164 = vunpack.c.l.b16 %v68
  %v165 = vunpack.c.h.b16 %v68
  %v166 = vunpack.c.l.b16 %v69
  %v167 = vunpack.c.h.b16 %v69
  %v168 = vunpack.c.l.b16 %v70
  %v169 = vunpack.c.h.b16 %v70
  %v170 = vunpack.c.l.b16 %v71
  %v171 = vunpack.c.h.b16 %v71
  %v172 = vunpack.c.l.b16 %v72
  %v173 = vunpack.c.h.b16 %v72
  %v174 = vunpack.c.l.b16 %v73
  %v175 = vunpack.c.h.b16 %v73
  %v176 = vunpack.c.l.b16 %v74
  %v177 = vunpack.c.h.b16 %v74
  %v178 = vunpack.c.l.b16 %v75
  %v179 = vunpack.c.h.b16 %v75
  %v180 = vunpack.c.l.b16 %v76
  %v181 = vunpack.c.h.b16 %v76
  %v182 = vunpack.c.l.b16 %v77
  %v183 = vunpack.c.h.b16 %v77
  %v184 = vpack.c.b16 %v124, %v120
  %v185 = vpack.c.b16 %v125, %v121
  %v186 = vpack.c.b16 %v126, %v122
  %v187 = vpack.c.b16 %v127, %v123
  %v188 = vpack.c.b16 %v132, %v128
  %v189 = vpack.c.b16 %v133, %v129
  %v190 = vpack.c.b16 %v134, %v130
  %v191 = vpack.c.b16 %v135, %v131
  %v192 = vpack.c.b16 %v140, %v136
  %v193 = vpack.c.b16 %v141, %v137
  %v194 = vpack.c.b16 %v142, %v138
  %v195 = vpack.c.b16 %v143, %v139
  %v196 = vpack.c.b16 %v148, %v144
  %v197 = vpack.c.b16 %v149, %v145
  %v198 = vpack.c.b16 %v150, %v146
  %v199 = vpack.c.b16 %v151, %v147
  %v200 = vpack.c.b16 %v156, %v152
  %v201 = vpack.c.b16 %v157, %v153
  %v202 = vpack.c.b16 %v158, %v154
  %v203 = vpack.c.b16 %v159, %v155
  %v204 = vpack.c.b16 %v164, %v160
  %v205 = vpack.c.b16 %v165, %v161
  %v206 = vpack.c.b16 %v166, %v162
  %v207 = vpack.c.b16 %v167, %v163
  %v208 = vpack.c.b16 %v172, %v168
  %v209 = vpack.c.b16 %v173, %v169
  %v210 = vpack.c.b16 %v174, %v170
  %v211 = vpack.c.b16 %v175, %v171
  %v212 = vpack.c.b16 %v180, %v176
  %v213 = vpack.c.b16 %v181, %v177
  %v214 = vpack.c.b16 %v182, %v178
  %v215 = vpack.c.b16 %v183, %v179
  %248 = vmatpush.bf16.msra.mxu0 %v212
  %249 = vmatpush.bf16.msra.mxu0 %v208
  %250 = vmatpush.bf16.msra.mxu0 %v204
  %251 = vmatpush.bf16.msra.mxu0 %v200
  %252 = vmatpush.bf16.msra.mxu0 %v196
  %253 = vmatpush.bf16.msra.mxu0 %v192
  %254 = vmatpush.bf16.msra.mxu0 %v188
  %255 = vmatpush.bf16.msra.mxu0 %v184
  %256 = vmatmul.bf16.gmra.mxu0 %v41
  %v257 = vpop.f32.mrf.mxu0
  %v258 = vadd.f32 %v80, %v257
  %v259 = vpop.f32.mrf.mxu0
  %v260 = vadd.f32 %v80, %v259
  %261 = vmatmul.bf16.gmra.mxu0 %v42
  %v262 = vpop.f32.mrf.mxu0
  %v263 = vadd.f32 %v80, %v262
  %v264 = vpop.f32.mrf.mxu0
  %v265 = vadd.f32 %v80, %v264
  %266 = vmatmul.bf16.gmra.mxu0 %v43
  %v267 = vpop.f32.mrf.mxu0
  %v268 = vadd.f32 %v80, %v267
  %v269 = vpop.f32.mrf.mxu0
  %v270 = vadd.f32 %v80, %v269
  %271 = vmatmul.bf16.gmra.mxu0 %v44
  %v272 = vpop.f32.mrf.mxu0
  %v273 = vadd.f32 %v80, %v272
  %v274 = vpop.f32.mrf.mxu0
  %v275 = vadd.f32 %v80, %v274
  %276 = vmatmul.bf16.gmra.mxu0 %v45
  %v277 = vpop.f32.mrf.mxu0
  %v278 = vadd.f32 %v80, %v277
  %v279 = vpop.f32.mrf.mxu0
  %280 = vdwg.mxu0
  %281 = vmatpush.bf16.msra.mxu0 %v213
  %282 = vmatpush.bf16.msra.mxu0 %v209
  %283 = vmatpush.bf16.msra.mxu0 %v205
  %284 = vmatpush.bf16.msra.mxu0 %v201
  %285 = vmatpush.bf16.msra.mxu0 %v197
  %286 = vmatpush.bf16.msra.mxu0 %v193
  %287 = vmatpush.bf16.msra.mxu0 %v189
  %288 = vmatpush.bf16.msra.mxu0 %v185
  %289 = vmatmul.bf16.gmra.mxu0 %v41
  %v290 = vpop.f32.mrf.mxu0
  %v291 = vadd.f32 %v81, %v290
  %v292 = vpop.f32.mrf.mxu0
  %v293 = vadd.f32 %v81, %v292
  %294 = vmatmul.bf16.gmra.mxu0 %v42
  %v295 = vpop.f32.mrf.mxu0
  %v296 = vadd.f32 %v81, %v295
  %v297 = vpop.f32.mrf.mxu0
  %v298 = vadd.f32 %v81, %v297
  %299 = vmatmul.bf16.gmra.mxu0 %v43
  %v300 = vpop.f32.mrf.mxu0
  %v301 = vadd.f32 %v81, %v300
  %v302 = vpop.f32.mrf.mxu0
  %v303 = vadd.f32 %v81, %v302
  %304 = vmatmul.bf16.gmra.mxu0 %v44
  %v305 = vpop.f32.mrf.mxu0
  %v306 = vadd.f32 %v81, %v305
  %v307 = vpop.f32.mrf.mxu0
  %v308 = vadd.f32 %v81, %v307
  %309 = vmatmul.bf16.gmra.mxu0 %v45
  %v310 = vpop.f32.mrf.mxu0
  %v311 = vadd.f32 %v81, %v310
  %v312 = vpop.f32.mrf.mxu0
  %313 = vdwg.mxu0
  %314 = vmatpush.bf16.msra.mxu0 %v214
  %315 = vmatpush.bf16.msra.mxu0 %v210
  %316 = vmatpush.bf16.msra.mxu0 %v206
  %317 = vmatpush.bf16.msra.mxu0 %v202
  %318 = vmatpush.bf16.msra.mxu0 %v198
  %319 = vmatpush.bf16.msra.mxu0 %v194
  %320 = vmatpush.bf16.msra.mxu0 %v190
  %321 = vmatpush.bf16.msra.mxu0 %v186
  %322 = vmatmul.bf16.gmra.mxu0 %v41
  %v323 = vpop.f32.mrf.mxu0
  %v324 = vadd.f32 %v82, %v323
  %v325 = vpop.f32.mrf.mxu0
  %v326 = vadd.f32 %v82, %v325
  %327 = vmatmul.bf16.gmra.mxu0 %v42
  %v328 = vpop.f32.mrf.mxu0
  %v329 = vadd.f32 %v82, %v328
  %v330 = vpop.f32.mrf.mxu0
  %v331 = vadd.f32 %v82, %v330
  %332 = vmatmul.bf16.gmra.mxu0 %v43
  %v333 = vpop.f32.mrf.mxu0
  %v334 = vadd.f32 %v82, %v333
  %v335 = vpop.f32.mrf.mxu0
  %v336 = vadd.f32 %v82, %v335
  %337 = vmatmul.bf16.gmra.mxu0 %v44
  %v338 = vpop.f32.mrf.mxu0
  %v339 = vadd.f32 %v82, %v338
  %v340 = vpop.f32.mrf.mxu0
  %v341 = vadd.f32 %v82, %v340
  %342 = vmatmul.bf16.gmra.mxu0 %v45
  %v343 = vpop.f32.mrf.mxu0
  %v344 = vadd.f32 %v82, %v343
  %v345 = vpop.f32.mrf.mxu0
  %346 = vdwg.mxu0
  %347 = vmatpush.bf16.msra.mxu0 %v215
  %348 = vmatpush.bf16.msra.mxu0 %v211
  %349 = vmatpush.bf16.msra.mxu0 %v207
  %350 = vmatpush.bf16.msra.mxu0 %v203
  %351 = vmatpush.bf16.msra.mxu0 %v199
  %352 = vmatpush.bf16.msra.mxu0 %v195
  %353 = vmatpush.bf16.msra.mxu0 %v191
  %354 = vmatpush.bf16.msra.mxu0 %v187
  %355 = vmatmul.bf16.gmra.mxu0 %v41
  %v356 = vpop.f32.mrf.mxu0
  %v357 = vadd.f32 %v83, %v356
  %v358 = vpop.f32.mrf.mxu0
  %v359 = vadd.f32 %v83, %v358
  %360 = vmatmul.bf16.gmra.mxu0 %v42
  %v361 = vpop.f32.mrf.mxu0
  %v362 = vadd.f32 %v83, %v361
  %v363 = vpop.f32.mrf.mxu0
  %v364 = vadd.f32 %v83, %v363
  %365 = vmatmul.bf16.gmra.mxu0 %v43
  %v366 = vpop.f32.mrf.mxu0
  %v367 = vadd.f32 %v83, %v366
  %v368 = vpop.f32.mrf.mxu0
  %v369 = vadd.f32 %v83, %v368
  %370 = vmatmul.bf16.gmra.mxu0 %v44
  %v371 = vpop.f32.mrf.mxu0
  %v372 = vadd.f32 %v83, %v371
  %v373 = vpop.f32.mrf.mxu0
  %v374 = vadd.f32 %v83, %v373
  %375 = vmatmul.bf16.gmra.mxu0 %v45
  %v376 = vpop.f32.mrf.mxu0
  %v377 = vadd.f32 %v83, %v376
  %v378 = vpop.f32.mrf.mxu0
  %379 = vdwg.mxu0
  %380 = vst [vmem:[#allocation3] sm:$0xff] %v258
  %381 = vst [vmem:[#allocation3 + $0x8] sm:$0xff] %v291
  %382 = vst [vmem:[#allocation3 + $0x10] sm:$0xff] %v324
  %383 = vst [vmem:[#allocation3 + $0x18] sm:$0xff] %v357
  %384 = vst [vmem:[#allocation3 + $0x20] sm:$0xff] %v260
  %385 = vst [vmem:[#allocation3 + $0x28] sm:$0xff] %v293
  %386 = vst [vmem:[#allocation3 + $0x30] sm:$0xff] %v326
  %387 = vst [vmem:[#allocation3 + $0x38] sm:$0xff] %v359
  %388 = vst [vmem:[#allocation3 + $0x40] sm:$0xff] %v263
  %389 = vst [vmem:[#allocation3 + $0x48] sm:$0xff] %v296
  %390 = vst [vmem:[#allocation3 + $0x50] sm:$0xff] %v329
  %391 = vst [vmem:[#allocation3 + $0x58] sm:$0xff] %v362
  %392 = vst [vmem:[#allocation3 + $0x60] sm:$0xff] %v265
  %393 = vst [vmem:[#allocation3 + $0x68] sm:$0xff] %v298
  %394 = vst [vmem:[#allocation3 + $0x70] sm:$0xff] %v331
  %395 = vst [vmem:[#allocation3 + $0x78] sm:$0xff] %v364
  %396 = vst [vmem:[#allocation3 + $0x80] sm:$0xff] %v268
  %397 = vst [vmem:[#allocation3 + $0x88] sm:$0xff] %v301
  %398 = vst [vmem:[#allocation3 + $0x90] sm:$0xff] %v334
  %399 = vst [vmem:[#allocation3 + $0x98] sm:$0xff] %v367
  %400 = vst [vmem:[#allocation3 + $0xa0] sm:$0xff] %v270
  %401 = vst [vmem:[#allocation3 + $0xa8] sm:$0xff] %v303
  %402 = vst [vmem:[#allocation3 + $0xb0] sm:$0xff] %v336
  %403 = vst [vmem:[#allocation3 + $0xb8] sm:$0xff] %v369
  %404 = vst [vmem:[#allocation3 + $0xc0] sm:$0xff] %v273
  %405 = vst [vmem:[#allocation3 + $0xc8] sm:$0xff] %v306
  %406 = vst [vmem:[#allocation3 + $0xd0] sm:$0xff] %v339
  %407 = vst [vmem:[#allocation3 + $0xd8] sm:$0xff] %v372
  %408 = vst [vmem:[#allocation3 + $0xe0] sm:$0xff] %v275
  %409 = vst [vmem:[#allocation3 + $0xe8] sm:$0xff] %v308
  %410 = vst [vmem:[#allocation3 + $0xf0] sm:$0xff] %v341
  %411 = vst [vmem:[#allocation3 + $0xf8] sm:$0xff] %v374
  %412 = vst [vmem:[#allocation3 + $0x100] sm:$0xff] %v278
  %413 = vst [vmem:[#allocation3 + $0x108] sm:$0xff] %v311
  %414 = vst [vmem:[#allocation3 + $0x110] sm:$0xff] %v344
  %415 = vst [vmem:[#allocation3 + $0x118] sm:$0xff] %v377
  %v416 = vld [vmem:[%s2] sm:$0xff]
  %v417 = vld [vmem:[%s2 + $0x8] sm:$0xff]
  %v418 = vld [vmem:[%s2 + $0x10] sm:$0xff]
  %v419 = vld [vmem:[%s2 + $0x18] sm:$0xff]
  %v420 = vld [vmem:[%s2 + $0x20] sm:$0xff]
  %v421 = vld [vmem:[%s2 + $0x28] sm:$0xff]
  %v422 = vld [vmem:[%s2 + $0x30] sm:$0xff]
  %v423 = vld [vmem:[%s2 + $0x38] sm:$0xff]
  %v424 = vld [vmem:[%s2 + $0x40] sm:$0xff]
  %v425 = vld [vmem:[%s2 + $0x48] sm:$0xff]
  %v426 = vld [vmem:[%s2 + $0x50] sm:$0xff]
  %v427 = vld [vmem:[%s2 + $0x58] sm:$0xff]
  %v428 = vld [vmem:[%s2 + $0x60] sm:$0xff]
  %v429 = vld [vmem:[%s2 + $0x68] sm:$0xff]
  %v430 = vld [vmem:[%s2 + $0x70] sm:$0xff]
  %v431 = vld [vmem:[%s2 + $0x78] sm:$0xff]
  %v432 = vld [vmem:[%s2 + $0x80] sm:$0xff]
  %v433 = vld [vmem:[%s2 + $0x88] sm:$0xff]
  %v434 = vld [vmem:[%s2 + $0x90] sm:$0xff]
  %v435 = vld [vmem:[%s2 + $0x98] sm:$0xff]
  %v436 = vld [vmem:[%s2 + $0xa0] sm:$0xff]
  %v437 = vld [vmem:[%s2 + $0xa8] sm:$0xff]
  %v438 = vld [vmem:[%s2 + $0xb0] sm:$0xff]
  %v439 = vld [vmem:[%s2 + $0xb8] sm:$0xff]
  %v440 = vld [vmem:[%s2 + $0xc0] sm:$0xff]
  %v441 = vld [vmem:[%s2 + $0xc8] sm:$0xff]
  %v442 = vld [vmem:[%s2 + $0xd0] sm:$0xff]
  %v443 = vld [vmem:[%s2 + $0xd8] sm:$0xff]
  %v444 = vld [vmem:[%s2 + $0xe0] sm:$0xff]
  %v445 = vld [vmem:[%s2 + $0xe8] sm:$0xff]
  %v446 = vld [vmem:[%s2 + $0xf0] sm:$0xff]
  %v447 = vld [vmem:[%s2 + $0xf8] sm:$0xff]
  %v448 = vld [vmem:[%s2 + $0x100] sm:$0xff]
  %v449 = vld [vmem:[%s2 + $0x108] sm:$0xff]
  %v450 = vld [vmem:[%s2 + $0x110] sm:$0xff]
  %v451 = vld [vmem:[%s2 + $0x118] sm:$0xff]
  %v452 = vld [vmem:[%s2 + $0x120] sm:$0xff]
  %v453 = vld [vmem:[%s2 + $0x128] sm:$0xff]
  %v454 = vld [vmem:[%s2 + $0x130] sm:$0xff]
  %v455 = vld [vmem:[%s2 + $0x138] sm:$0xff]
  %v456 = vld [vmem:[%s2 + $0x140] sm:$0xff]
  %v457 = vld [vmem:[%s2 + $0x148] sm:$0xff]
  %v458 = vld [vmem:[%s2 + $0x150] sm:$0xff]
  %v459 = vld [vmem:[%s2 + $0x158] sm:$0xff]
  %v460 = vld [vmem:[%s2 + $0x160] sm:$0xff]
  %v461 = vld [vmem:[%s2 + $0x168] sm:$0xff]
  %v462 = vld [vmem:[%s2 + $0x170] sm:$0xff]
  %v463 = vld [vmem:[%s2 + $0x178] sm:$0xff]
  %v464 = vld [vmem:[%s2 + $0x180] sm:$0xff]
  %v465 = vld [vmem:[%s2 + $0x188] sm:$0xff]
  %v466 = vld [vmem:[%s2 + $0x190] sm:$0xff]
  %v467 = vld [vmem:[%s2 + $0x198] sm:$0xff]
  %v468 = vld [vmem:[%s2 + $0x1a0] sm:$0xff]
  %v469 = vld [vmem:[%s2 + $0x1a8] sm:$0xff]
  %v470 = vld [vmem:[%s2 + $0x1b0] sm:$0xff]
  %v471 = vld [vmem:[%s2 + $0x1b8] sm:$0xff]
  %v472 = vld [vmem:[%s2 + $0x1c0] sm:$0xff]
  %v473 = vld [vmem:[%s2 + $0x1c8] sm:$0xff]
  %v474 = vld [vmem:[%s2 + $0x1d0] sm:$0xff]
  %v475 = vld [vmem:[%s2 + $0x1d8] sm:$0xff]
  %v476 = vld [vmem:[%s2 + $0x1e0] sm:$0xff]
  %v477 = vld [vmem:[%s2 + $0x1e8] sm:$0xff]
  %v478 = vld [vmem:[%s2 + $0x1f0] sm:$0xff]
  %v479 = vld [vmem:[%s2 + $0x1f8] sm:$0xff]
  %s480 = smul.u32 0, 4
  %s481 = smul.addr %s480, 8
  %s482 = scalar_lea.vmem [#allocation3], %s481
  %v483 = vld [vmem:[%s482] sm:$0xff]
  %v484 = vld [vmem:[%s482 + $0x8] sm:$0xff]
  %v485 = vld [vmem:[%s482 + $0x10] sm:$0xff]
  %v486 = vld [vmem:[%s482 + $0x18] sm:$0xff]
  %487 = vmatpush.msra.mxu0 %v476
  %488 = vmatpush.msra.mxu0 %v472
  %489 = vmatpush.msra.mxu0 %v468
  %490 = vmatpush.msra.mxu0 %v464
  %491 = vmatpush.msra.mxu0 %v460
  %492 = vmatpush.msra.mxu0 %v456
  %493 = vmatpush.msra.mxu0 %v452
  %494 = vmatpush.msra.mxu0 %v448
  %495 = vmatpush.msra.mxu0 %v444
  %496 = vmatpush.msra.mxu0 %v440
  %497 = vmatpush.msra.mxu0 %v436
  %498 = vmatpush.msra.mxu0 %v432
  %499 = vmatpush.msra.mxu0 %v428
  %500 = vmatpush.msra.mxu0 %v424
  %501 = vmatpush.msra.mxu0 %v420
  %502 = vmatpush.msra.mxu0 %v416
  %503 = vmatmul.f32.gmra.mxu0 0.0
  %v504 = vpop.f32.mrf.mxu0
  %v505 = vadd.f32 0.0, %v504
  %506 = vdwg.mxu0
  %507 = vmatpush.msra.mxu0 %v477
  %508 = vmatpush.msra.mxu0 %v473
  %509 = vmatpush.msra.mxu0 %v469
  %510 = vmatpush.msra.mxu0 %v465
  %511 = vmatpush.msra.mxu0 %v461
  %512 = vmatpush.msra.mxu0 %v457
  %513 = vmatpush.msra.mxu0 %v453
  %514 = vmatpush.msra.mxu0 %v449
  %515 = vmatpush.msra.mxu0 %v445
  %516 = vmatpush.msra.mxu0 %v441
  %517 = vmatpush.msra.mxu0 %v437
  %518 = vmatpush.msra.mxu0 %v433
  %519 = vmatpush.msra.mxu0 %v429
  %520 = vmatpush.msra.mxu0 %v425
  %521 = vmatpush.msra.mxu0 %v421
  %522 = vmatpush.msra.mxu0 %v417
  %523 = vmatmul.f32.gmra.mxu0 0.0
  %v524 = vpop.f32.mrf.mxu0
  %v525 = vadd.f32 0.0, %v524
  %526 = vdwg.mxu0
  %527 = vmatpush.msra.mxu0 %v478
  %528 = vmatpush.msra.mxu0 %v474
  %529 = vmatpush.msra.mxu0 %v470
  %530 = vmatpush.msra.mxu0 %v466
  %531 = vmatpush.msra.mxu0 %v462
  %532 = vmatpush.msra.mxu0 %v458
  %533 = vmatpush.msra.mxu0 %v454
  %534 = vmatpush.msra.mxu0 %v450
  %535 = vmatpush.msra.mxu0 %v446
  %536 = vmatpush.msra.mxu0 %v442
  %537 = vmatpush.msra.mxu0 %v438
  %538 = vmatpush.msra.mxu0 %v434
  %539 = vmatpush.msra.mxu0 %v430
  %540 = vmatpush.msra.mxu0 %v426
  %541 = vmatpush.msra.mxu0 %v422
  %542 = vmatpush.msra.mxu0 %v418
  %543 = vmatmul.f32.gmra.mxu0 0.0
  %v544 = vpop.f32.mrf.mxu0
  %v545 = vadd.f32 0.0, %v544
  %546 = vdwg.mxu0
  %547 = vmatpush.msra.mxu0 %v479
  %548 = vmatpush.msra.mxu0 %v475
  %549 = vmatpush.msra.mxu0 %v471
  %550 = vmatpush.msra.mxu0 %v467
  %551 = vmatpush.msra.mxu0 %v463
  %552 = vmatpush.msra.mxu0 %v459
  %553 = vmatpush.msra.mxu0 %v455
  %554 = vmatpush.msra.mxu0 %v451
  %555 = vmatpush.msra.mxu0 %v447
  %556 = vmatpush.msra.mxu0 %v443
  %557 = vmatpush.msra.mxu0 %v439
  %558 = vmatpush.msra.mxu0 %v435
  %559 = vmatpush.msra.mxu0 %v431
  %560 = vmatpush.msra.mxu0 %v427
  %561 = vmatpush.msra.mxu0 %v423
  %562 = vmatpush.msra.mxu0 %v419
  %563 = vmatmul.f32.gmra.mxu0 0.0
  %v564 = vpop.f32.mrf.mxu0
  %v565 = vadd.f32 0.0, %v564
  %566 = vdwg.mxu0
  %v567 = vadd.f32 %v483, %v505
  %v568 = vadd.f32 %v484, %v525
  %v569 = vadd.f32 %v485, %v545
  %v570 = vadd.f32 %v486, %v565
  %v571 = vxor.u32 %v567, 2147483648
  %v572 = vmul.f32 %v571, 1.442695
  %v573 = vpow.pop %v572
  %v574 = vadd.f32 %v573, 1.0
  %v575 = vrcp.pop %v574
  %v576 = vmul.f32 %v574, %v575
  %v577 = vsub.f32 1.0, %v576
  %v578 = vmul.f32 %v575, %v577
  %v579 = vadd.f32 %v575, %v578
  %vm580 = vweird.f32 %v574
  %vm581 = vweird.f32 %v575
  %vm582 = vmor %vm580, %vm581
  %v583 = vsel %vm582, %v575, %v579
  %v584 = vand.u32 2147483647, %v574
  %vm585 = vcmp.eq.f32.partialorder %v584, 8.507059e+37
  %v586 = vand.u32 %v574, 2147483648
  %v587 = vor.u32 1.1754944e-38, %v586
  %v588 = vsel %vm585, %v587, %v583
  %v589 = vmul.f32 1.0, %v588
  %v590 = vxor.u32 %v568, 2147483648
  %v591 = vmul.f32 %v590, 1.442695
  %v592 = vpow.pop %v591
  %v593 = vadd.f32 %v592, 1.0
  %v594 = vrcp.pop %v593
  %v595 = vmul.f32 %v593, %v594
  %v596 = vsub.f32 1.0, %v595
  %v597 = vmul.f32 %v594, %v596
  %v598 = vadd.f32 %v594, %v597
  %vm599 = vweird.f32 %v593
  %vm600 = vweird.f32 %v594
  %vm601 = vmor %vm599, %vm600
  %v602 = vsel %vm601, %v594, %v598
  %v603 = vand.u32 2147483647, %v593
  %vm604 = vcmp.eq.f32.partialorder %v603, 8.507059e+37
  %v605 = vand.u32 %v593, 2147483648
  %v606 = vor.u32 1.1754944e-38, %v605
  %v607 = vsel %vm604, %v606, %v602
  %v608 = vmul.f32 1.0, %v607
  %v609 = vtanh.pop %v569
  %v610 = vxor.u32 %v570, 2147483648
  %v611 = vmul.f32 %v610, 1.442695
  %v612 = vpow.pop %v611
  %v613 = vadd.f32 %v612, 1.0
  %v614 = vrcp.pop %v613
  %v615 = vmul.f32 %v613, %v614
  %v616 = vsub.f32 1.0, %v615
  %v617 = vmul.f32 %v614, %v616
  %v618 = vadd.f32 %v614, %v617
  %vm619 = vweird.f32 %v613
  %vm620 = vweird.f32 %v614
  %vm621 = vmor %vm619, %vm620
  %v622 = vsel %vm621, %v614, %v618
  %v623 = vand.u32 2147483647, %v613
  %vm624 = vcmp.eq.f32.partialorder %v623, 8.507059e+37
  %v625 = vand.u32 %v613, 2147483648
  %v626 = vor.u32 1.1754944e-38, %v625
  %v627 = vsel %vm624, %v626, %v622
  %v628 = vmul.f32 1.0, %v627
  %v629 = vmul.f32 %v608, 0.0
  %v630 = vmul.f32 %v589, %v609
  %v631 = vadd.f32 %v629, %v630
  %v632 = vtanh.pop %v631
  %v633 = vmul.f32 %v628, %v632
  %634 = vst [vmem:[#allocation2] sm:$0xff] %v633
  %s635 = smul.u32 1, 4
  %s636 = smul.addr %s635, 8
  %s637 = scalar_lea.vmem [#allocation3], %s636
  %v638 = vld [vmem:[%s637] sm:$0xff]
  %v639 = vld [vmem:[%s637 + $0x8] sm:$0xff]
  %v640 = vld [vmem:[%s637 + $0x10] sm:$0xff]
  %v641 = vld [vmem:[%s637 + $0x18] sm:$0xff]
  %642 = vmatpush.msra.mxu0 %v476
  %643 = vmatpush.msra.mxu0 %v472
  %644 = vmatpush.msra.mxu0 %v468
  %645 = vmatpush.msra.mxu0 %v464
  %646 = vmatpush.msra.mxu0 %v460
  %647 = vmatpush.msra.mxu0 %v456
  %648 = vmatpush.msra.mxu0 %v452
  %649 = vmatpush.msra.mxu0 %v448
  %650 = vmatpush.msra.mxu0 %v444
  %651 = vmatpush.msra.mxu0 %v440
  %652 = vmatpush.msra.mxu0 %v436
  %653 = vmatpush.msra.mxu0 %v432
  %654 = vmatpush.msra.mxu0 %v428
  %655 = vmatpush.msra.mxu0 %v424
  %656 = vmatpush.msra.mxu0 %v420
  %657 = vmatpush.msra.mxu0 %v416
  %658 = vmatmul.f32.gmra.mxu0 %v633
  %v659 = vpop.f32.mrf.mxu0
  %v660 = vadd.f32 0.0, %v659
  %661 = vdwg.mxu0
  %662 = vmatpush.msra.mxu0 %v477
  %663 = vmatpush.msra.mxu0 %v473
  %664 = vmatpush.msra.mxu0 %v469
  %665 = vmatpush.msra.mxu0 %v465
  %666 = vmatpush.msra.mxu0 %v461
  %667 = vmatpush.msra.mxu0 %v457
  %668 = vmatpush.msra.mxu0 %v453
  %669 = vmatpush.msra.mxu0 %v449
  %670 = vmatpush.msra.mxu0 %v445
  %671 = vmatpush.msra.mxu0 %v441
  %672 = vmatpush.msra.mxu0 %v437
  %673 = vmatpush.msra.mxu0 %v433
  %674 = vmatpush.msra.mxu0 %v429
  %675 = vmatpush.msra.mxu0 %v425
  %676 = vmatpush.msra.mxu0 %v421
  %677 = vmatpush.msra.mxu0 %v417
  %678 = vmatmul.f32.gmra.mxu0 %v633
  %v679 = vpop.f32.mrf.mxu0
  %v680 = vadd.f32 0.0, %v679
  %681 = vdwg.mxu0
  %682 = vmatpush.msra.mxu0 %v478
  %683 = vmatpush.msra.mxu0 %v474
  %684 = vmatpush.msra.mxu0 %v470
  %685 = vmatpush.msra.mxu0 %v466
  %686 = vmatpush.msra.mxu0 %v462
  %687 = vmatpush.msra.mxu0 %v458
  %688 = vmatpush.msra.mxu0 %v454
  %689 = vmatpush.msra.mxu0 %v450
  %690 = vmatpush.msra.mxu0 %v446
  %691 = vmatpush.msra.mxu0 %v442
  %692 = vmatpush.msra.mxu0 %v438
  %693 = vmatpush.msra.mxu0 %v434
  %694 = vmatpush.msra.mxu0 %v430
  %695 = vmatpush.msra.mxu0 %v426
  %696 = vmatpush.msra.mxu0 %v422
  %697 = vmatpush.msra.mxu0 %v418
  %698 = vmatmul.f32.gmra.mxu0 %v633
  %v699 = vpop.f32.mrf.mxu0
  %v700 = vadd.f32 0.0, %v699
  %701 = vdwg.mxu0
  %702 = vmatpush.msra.mxu0 %v479
  %703 = vmatpush.msra.mxu0 %v475
  %704 = vmatpush.msra.mxu0 %v471
  %705 = vmatpush.msra.mxu0 %v467
  %706 = vmatpush.msra.mxu0 %v463
  %707 = vmatpush.msra.mxu0 %v459
  %708 = vmatpush.msra.mxu0 %v455
  %709 = vmatpush.msra.mxu0 %v451
  %710 = vmatpush.msra.mxu0 %v447
  %711 = vmatpush.msra.mxu0 %v443
  %712 = vmatpush.msra.mxu0 %v439
  %713 = vmatpush.msra.mxu0 %v435
  %714 = vmatpush.msra.mxu0 %v431
  %715 = vmatpush.msra.mxu0 %v427
  %716 = vmatpush.msra.mxu0 %v423
  %717 = vmatpush.msra.mxu0 %v419
  %718 = vmatmul.f32.gmra.mxu0 %v633
  %v719 = vpop.f32.mrf.mxu0
  %v720 = vadd.f32 0.0, %v719
  %721 = vdwg.mxu0
  %v722 = vadd.f32 %v638, %v660
  %v723 = vadd.f32 %v639, %v680
  %v724 = vadd.f32 %v640, %v700
  %v725 = vadd.f32 %v641, %v720
  %v726 = vxor.u32 %v722, 2147483648
  %v727 = vmul.f32 %v726, 1.442695
  %v728 = vpow.pop %v727
  %v729 = vadd.f32 %v728, 1.0
  %v730 = vrcp.pop %v729
  %v731 = vmul.f32 %v729, %v730
  %v732 = vsub.f32 1.0, %v731
  %v733 = vmul.f32 %v730, %v732
  %v734 = vadd.f32 %v730, %v733
  %vm735 = vweird.f32 %v729
  %vm736 = vweird.f32 %v730
  %vm737 = vmor %vm735, %vm736
  %v738 = vsel %vm737, %v730, %v734
  %v739 = vand.u32 2147483647, %v729
  %vm740 = vcmp.eq.f32.partialorder %v739, 8.507059e+37
  %v741 = vand.u32 %v729, 2147483648
  %v742 = vor.u32 1.1754944e-38, %v741
  %v743 = vsel %vm740, %v742, %v738
  %v744 = vmul.f32 1.0, %v743
  %v745 = vxor.u32 %v723, 2147483648
  %v746 = vmul.f32 %v745, 1.442695
  %v747 = vpow.pop %v746
  %v748 = vadd.f32 %v747, 1.0
  %v749 = vrcp.pop %v748
  %v750 = vmul.f32 %v748, %v749
  %v751 = vsub.f32 1.0, %v750
  %v752 = vmul.f32 %v749, %v751
  %v753 = vadd.f32 %v749, %v752
  %vm754 = vweird.f32 %v748
  %vm755 = vweird.f32 %v749
  %vm756 = vmor %vm754, %vm755
  %v757 = vsel %vm756, %v749, %v753
  %v758 = vand.u32 2147483647, %v748
  %vm759 = vcmp.eq.f32.partialorder %v758, 8.507059e+37
  %v760 = vand.u32 %v748, 2147483648
  %v761 = vor.u32 1.1754944e-38, %v760
  %v762 = vsel %vm759, %v761, %v757
  %v763 = vmul.f32 1.0, %v762
  %v764 = vtanh.pop %v724
  %v765 = vxor.u32 %v725, 2147483648
  %v766 = vmul.f32 %v765, 1.442695
  %v767 = vpow.pop %v766
  %v768 = vadd.f32 %v767, 1.0
  %v769 = vrcp.pop %v768
  %v770 = vmul.f32 %v768, %v769
  %v771 = vsub.f32 1.0, %v770
  %v772 = vmul.f32 %v769, %v771
  %v773 = vadd.f32 %v769, %v772
  %vm774 = vweird.f32 %v768
  %vm775 = vweird.f32 %v769
  %vm776 = vmor %vm774, %vm775
  %v777 = vsel %vm776, %v769, %v773
  %v778 = vand.u32 2147483647, %v768
  %vm779 = vcmp.eq.f32.partialorder %v778, 8.507059e+37
  %v780 = vand.u32 %v768, 2147483648
  %v781 = vor.u32 1.1754944e-38, %v780
  %v782 = vsel %vm779, %v781, %v777
  %v783 = vmul.f32 1.0, %v782
  %v784 = vmul.f32 %v763, %v631
  %v785 = vmul.f32 %v744, %v764
  %v786 = vadd.f32 %v784, %v785
  %v787 = vtanh.pop %v786
  %v788 = vmul.f32 %v783, %v787
  %s789 = scalar_lea.vmem [#allocation2], 8
  %790 = vst [vmem:[%s789] sm:$0xff] %v788
  %s791 = smul.u32 2, 4
  %s792 = smul.addr %s791, 8
  %s793 = scalar_lea.vmem [#allocation3], %s792
  %v794 = vld [vmem:[%s793] sm:$0xff]
  %v795 = vld [vmem:[%s793 + $0x8] sm:$0xff]
  %v796 = vld [vmem:[%s793 + $0x10] sm:$0xff]
  %v797 = vld [vmem:[%s793 + $0x18] sm:$0xff]
  %798 = vmatpush.msra.mxu0 %v476
  %799 = vmatpush.msra.mxu0 %v472
  %800 = vmatpush.msra.mxu0 %v468
  %801 = vmatpush.msra.mxu0 %v464
  %802 = vmatpush.msra.mxu0 %v460
  %803 = vmatpush.msra.mxu0 %v456
  %804 = vmatpush.msra.mxu0 %v452
  %805 = vmatpush.msra.mxu0 %v448
  %806 = vmatpush.msra.mxu0 %v444
  %807 = vmatpush.msra.mxu0 %v440
  %808 = vmatpush.msra.mxu0 %v436
  %809 = vmatpush.msra.mxu0 %v432
  %810 = vmatpush.msra.mxu0 %v428
  %811 = vmatpush.msra.mxu0 %v424
  %812 = vmatpush.msra.mxu0 %v420
  %813 = vmatpush.msra.mxu0 %v416
  %814 = vmatmul.f32.gmra.mxu0 %v788
  %v815 = vpop.f32.mrf.mxu0
  %v816 = vadd.f32 0.0, %v815
  %817 = vdwg.mxu0
  %818 = vmatpush.msra.mxu0 %v477
  %819 = vmatpush.msra.mxu0 %v473
  %820 = vmatpush.msra.mxu0 %v469
  %821 = vmatpush.msra.mxu0 %v465
  %822 = vmatpush.msra.mxu0 %v461
  %823 = vmatpush.msra.mxu0 %v457
  %824 = vmatpush.msra.mxu0 %v453
  %825 = vmatpush.msra.mxu0 %v449
  %826 = vmatpush.msra.mxu0 %v445
  %827 = vmatpush.msra.mxu0 %v441
  %828 = vmatpush.msra.mxu0 %v437
  %829 = vmatpush.msra.mxu0 %v433
  %830 = vmatpush.msra.mxu0 %v429
  %831 = vmatpush.msra.mxu0 %v425
  %832 = vmatpush.msra.mxu0 %v421
  %833 = vmatpush.msra.mxu0 %v417
  %834 = vmatmul.f32.gmra.mxu0 %v788
  %v835 = vpop.f32.mrf.mxu0
  %v836 = vadd.f32 0.0, %v835
  %837 = vdwg.mxu0
  %838 = vmatpush.msra.mxu0 %v478
  %839 = vmatpush.msra.mxu0 %v474
  %840 = vmatpush.msra.mxu0 %v470
  %841 = vmatpush.msra.mxu0 %v466
  %842 = vmatpush.msra.mxu0 %v462
  %843 = vmatpush.msra.mxu0 %v458
  %844 = vmatpush.msra.mxu0 %v454
  %845 = vmatpush.msra.mxu0 %v450
  %846 = vmatpush.msra.mxu0 %v446
  %847 = vmatpush.msra.mxu0 %v442
  %848 = vmatpush.msra.mxu0 %v438
  %849 = vmatpush.msra.mxu0 %v434
  %850 = vmatpush.msra.mxu0 %v430
  %851 = vmatpush.msra.mxu0 %v426
  %852 = vmatpush.msra.mxu0 %v422
  %853 = vmatpush.msra.mxu0 %v418
  %854 = vmatmul.f32.gmra.mxu0 %v788
  %v855 = vpop.f32.mrf.mxu0
  %v856 = vadd.f32 0.0, %v855
  %857 = vdwg.mxu0
  %858 = vmatpush.msra.mxu0 %v479
  %859 = vmatpush.msra.mxu0 %v475
  %860 = vmatpush.msra.mxu0 %v471
  %861 = vmatpush.msra.mxu0 %v467
  %862 = vmatpush.msra.mxu0 %v463
  %863 = vmatpush.msra.mxu0 %v459
  %864 = vmatpush.msra.mxu0 %v455
  %865 = vmatpush.msra.mxu0 %v451
  %866 = vmatpush.msra.mxu0 %v447
  %867 = vmatpush.msra.mxu0 %v443
  %868 = vmatpush.msra.mxu0 %v439
  %869 = vmatpush.msra.mxu0 %v435
  %870 = vmatpush.msra.mxu0 %v431
  %871 = vmatpush.msra.mxu0 %v427
  %872 = vmatpush.msra.mxu0 %v423
  %873 = vmatpush.msra.mxu0 %v419
  %874 = vmatmul.f32.gmra.mxu0 %v788
  %v875 = vpop.f32.mrf.mxu0
  %v876 = vadd.f32 0.0, %v875
  %877 = vdwg.mxu0
  %v878 = vadd.f32 %v794, %v816
  %v879 = vadd.f32 %v795, %v836
  %v880 = vadd.f32 %v796, %v856
  %v881 = vadd.f32 %v797, %v876
  %v882 = vxor.u32 %v878, 2147483648
  %v883 = vmul.f32 %v882, 1.442695
  %v884 = vpow.pop %v883
  %v885 = vadd.f32 %v884, 1.0
  %v886 = vrcp.pop %v885
  %v887 = vmul.f32 %v885, %v886
  %v888 = vsub.f32 1.0, %v887
  %v889 = vmul.f32 %v886, %v888
  %v890 = vadd.f32 %v886, %v889
  %vm891 = vweird.f32 %v885
  %vm892 = vweird.f32 %v886
  %vm893 = vmor %vm891, %vm892
  %v894 = vsel %vm893, %v886, %v890
  %v895 = vand.u32 2147483647, %v885
  %vm896 = vcmp.eq.f32.partialorder %v895, 8.507059e+37
  %v897 = vand.u32 %v885, 2147483648
  %v898 = vor.u32 1.1754944e-38, %v897
  %v899 = vsel %vm896, %v898, %v894
  %v900 = vmul.f32 1.0, %v899
  %v901 = vxor.u32 %v879, 2147483648
  %v902 = vmul.f32 %v901, 1.442695
  %v903 = vpow.pop %v902
  %v904 = vadd.f32 %v903, 1.0
  %v905 = vrcp.pop %v904
  %v906 = vmul.f32 %v904, %v905
  %v907 = vsub.f32 1.0, %v906
  %v908 = vmul.f32 %v905, %v907
  %v909 = vadd.f32 %v905, %v908
  %vm910 = vweird.f32 %v904
  %vm911 = vweird.f32 %v905
  %vm912 = vmor %vm910, %vm911
  %v913 = vsel %vm912, %v905, %v909
  %v914 = vand.u32 2147483647, %v904
  %vm915 = vcmp.eq.f32.partialorder %v914, 8.507059e+37
  %v916 = vand.u32 %v904, 2147483648
  %v917 = vor.u32 1.1754944e-38, %v916
  %v918 = vsel %vm915, %v917, %v913
  %v919 = vmul.f32 1.0, %v918
  %v920 = vtanh.pop %v880
  %v921 = vxor.u32 %v881, 2147483648
  %v922 = vmul.f32 %v921, 1.442695
  %v923 = vpow.pop %v922
  %v924 = vadd.f32 %v923, 1.0
  %v925 = vrcp.pop %v924
  %v926 = vmul.f32 %v924, %v925
  %v927 = vsub.f32 1.0, %v926
  %v928 = vmul.f32 %v925, %v927
  %v929 = vadd.f32 %v925, %v928
  %vm930 = vweird.f32 %v924
  %vm931 = vweird.f32 %v925
  %vm932 = vmor %vm930, %vm931
  %v933 = vsel %vm932, %v925, %v929
  %v934 = vand.u32 2147483647, %v924
  %vm935 = vcmp.eq.f32.partialorder %v934, 8.507059e+37
  %v936 = vand.u32 %v924, 2147483648
  %v937 = vor.u32 1.1754944e-38, %v936
  %v938 = vsel %vm935, %v937, %v933
  %v939 = vmul.f32 1.0, %v938
  %v940 = vmul.f32 %v919, %v786
  %v941 = vmul.f32 %v900, %v920
  %v942 = vadd.f32 %v940, %v941
  %v943 = vtanh.pop %v942
  %v944 = vmul.f32 %v939, %v943
  %s945 = scalar_lea.vmem [#allocation2], 16
  %946 = vst [vmem:[%s945] sm:$0xff] %v944
  %s947 = smul.u32 3, 4
  %s948 = smul.addr %s947, 8
  %s949 = scalar_lea.vmem [#allocation3], %s948
  %v950 = vld [vmem:[%s949] sm:$0xff]
  %v951 = vld [vmem:[%s949 + $0x8] sm:$0xff]
  %v952 = vld [vmem:[%s949 + $0x10] sm:$0xff]
  %v953 = vld [vmem:[%s949 + $0x18] sm:$0xff]
  %954 = vmatpush.msra.mxu0 %v476
  %955 = vmatpush.msra.mxu0 %v472
  %956 = vmatpush.msra.mxu0 %v468
  %957 = vmatpush.msra.mxu0 %v464
  %958 = vmatpush.msra.mxu0 %v460
  %959 = vmatpush.msra.mxu0 %v456
  %960 = vmatpush.msra.mxu0 %v452
  %961 = vmatpush.msra.mxu0 %v448
  %962 = vmatpush.msra.mxu0 %v444
  %963 = vmatpush.msra.mxu0 %v440
  %964 = vmatpush.msra.mxu0 %v436
  %965 = vmatpush.msra.mxu0 %v432
  %966 = vmatpush.msra.mxu0 %v428
  %967 = vmatpush.msra.mxu0 %v424
  %968 = vmatpush.msra.mxu0 %v420
  %969 = vmatpush.msra.mxu0 %v416
  %970 = vmatmul.f32.gmra.mxu0 %v944
  %v971 = vpop.f32.mrf.mxu0
  %v972 = vadd.f32 0.0, %v971
  %973 = vdwg.mxu0
  %974 = vmatpush.msra.mxu0 %v477
  %975 = vmatpush.msra.mxu0 %v473
  %976 = vmatpush.msra.mxu0 %v469
  %977 = vmatpush.msra.mxu0 %v465
  %978 = vmatpush.msra.mxu0 %v461
  %979 = vmatpush.msra.mxu0 %v457
  %980 = vmatpush.msra.mxu0 %v453
  %981 = vmatpush.msra.mxu0 %v449
  %982 = vmatpush.msra.mxu0 %v445
  %983 = vmatpush.msra.mxu0 %v441
  %984 = vmatpush.msra.mxu0 %v437
  %985 = vmatpush.msra.mxu0 %v433
  %986 = vmatpush.msra.mxu0 %v429
  %987 = vmatpush.msra.mxu0 %v425
  %988 = vmatpush.msra.mxu0 %v421
  %989 = vmatpush.msra.mxu0 %v417
  %990 = vmatmul.f32.gmra.mxu0 %v944
  %v991 = vpop.f32.mrf.mxu0
  %v992 = vadd.f32 0.0, %v991
  %993 = vdwg.mxu0
  %994 = vmatpush.msra.mxu0 %v478
  %995 = vmatpush.msra.mxu0 %v474
  %996 = vmatpush.msra.mxu0 %v470
  %997 = vmatpush.msra.mxu0 %v466
  %998 = vmatpush.msra.mxu0 %v462
  %999 = vmatpush.msra.mxu0 %v458
  %1000 = vmatpush.msra.mxu0 %v454
  %1001 = vmatpush.msra.mxu0 %v450
  %1002 = vmatpush.msra.mxu0 %v446
  %1003 = vmatpush.msra.mxu0 %v442
  %1004 = vmatpush.msra.mxu0 %v438
  %1005 = vmatpush.msra.mxu0 %v434
  %1006 = vmatpush.msra.mxu0 %v430
  %1007 = vmatpush.msra.mxu0 %v426
  %1008 = vmatpush.msra.mxu0 %v422
  %1009 = vmatpush.msra.mxu0 %v418
  %1010 = vmatmul.f32.gmra.mxu0 %v944
  %v1011 = vpop.f32.mrf.mxu0
  %v1012 = vadd.f32 0.0, %v1011
  %1013 = vdwg.mxu0
  %1014 = vmatpush.msra.mxu0 %v479
  %1015 = vmatpush.msra.mxu0 %v475
  %1016 = vmatpush.msra.mxu0 %v471
  %1017 = vmatpush.msra.mxu0 %v467
  %1018 = vmatpush.msra.mxu0 %v463
  %1019 = vmatpush.msra.mxu0 %v459
  %1020 = vmatpush.msra.mxu0 %v455
  %1021 = vmatpush.msra.mxu0 %v451
  %1022 = vmatpush.msra.mxu0 %v447
  %1023 = vmatpush.msra.mxu0 %v443
  %1024 = vmatpush.msra.mxu0 %v439
  %1025 = vmatpush.msra.mxu0 %v435
  %1026 = vmatpush.msra.mxu0 %v431
  %1027 = vmatpush.msra.mxu0 %v427
  %1028 = vmatpush.msra.mxu0 %v423
  %1029 = vmatpush.msra.mxu0 %v419
  %1030 = vmatmul.f32.gmra.mxu0 %v944
  %v1031 = vpop.f32.mrf.mxu0
  %v1032 = vadd.f32 0.0, %v1031
  %1033 = vdwg.mxu0
  %v1034 = vadd.f32 %v950, %v972
  %v1035 = vadd.f32 %v951, %v992
  %v1036 = vadd.f32 %v952, %v1012
  %v1037 = vadd.f32 %v953, %v1032
  %v1038 = vxor.u32 %v1034, 2147483648
  %v1039 = vmul.f32 %v1038, 1.442695
  %v1040 = vpow.pop %v1039
  %v1041 = vadd.f32 %v1040, 1.0
  %v1042 = vrcp.pop %v1041
  %v1043 = vmul.f32 %v1041, %v1042
  %v1044 = vsub.f32 1.0, %v1043
  %v1045 = vmul.f32 %v1042, %v1044
  %v1046 = vadd.f32 %v1042, %v1045
  %vm1047 = vweird.f32 %v1041
  %vm1048 = vweird.f32 %v1042
  %vm1049 = vmor %vm1047, %vm1048
  %v1050 = vsel %vm1049, %v1042, %v1046
  %v1051 = vand.u32 2147483647, %v1041
  %vm1052 = vcmp.eq.f32.partialorder %v1051, 8.507059e+37
  %v1053 = vand.u32 %v1041, 2147483648
  %v1054 = vor.u32 1.1754944e-38, %v1053
  %v1055 = vsel %vm1052, %v1054, %v1050
  %v1056 = vmul.f32 1.0, %v1055
  %v1057 = vxor.u32 %v1035, 2147483648
  %v1058 = vmul.f32 %v1057, 1.442695
  %v1059 = vpow.pop %v1058
  %v1060 = vadd.f32 %v1059, 1.0
  %v1061 = vrcp.pop %v1060
  %v1062 = vmul.f32 %v1060, %v1061
  %v1063 = vsub.f32 1.0, %v1062
  %v1064 = vmul.f32 %v1061, %v1063
  %v1065 = vadd.f32 %v1061, %v1064
  %vm1066 = vweird.f32 %v1060
  %vm1067 = vweird.f32 %v1061
  %vm1068 = vmor %vm1066, %vm1067
  %v1069 = vsel %vm1068, %v1061, %v1065
  %v1070 = vand.u32 2147483647, %v1060
  %vm1071 = vcmp.eq.f32.partialorder %v1070, 8.507059e+37
  %v1072 = vand.u32 %v1060, 2147483648
  %v1073 = vor.u32 1.1754944e-38, %v1072
  %v1074 = vsel %vm1071, %v1073, %v1069
  %v1075 = vmul.f32 1.0, %v1074
  %v1076 = vtanh.pop %v1036
  %v1077 = vxor.u32 %v1037, 2147483648
  %v1078 = vmul.f32 %v1077, 1.442695
  %v1079 = vpow.pop %v1078
  %v1080 = vadd.f32 %v1079, 1.0
  %v1081 = vrcp.pop %v1080
  %v1082 = vmul.f32 %v1080, %v1081
  %v1083 = vsub.f32 1.0, %v1082
  %v1084 = vmul.f32 %v1081, %v1083
  %v1085 = vadd.f32 %v1081, %v1084
  %vm1086 = vweird.f32 %v1080
  %vm1087 = vweird.f32 %v1081
  %vm1088 = vmor %vm1086, %vm1087
  %v1089 = vsel %vm1088, %v1081, %v1085
  %v1090 = vand.u32 2147483647, %v1080
  %vm1091 = vcmp.eq.f32.partialorder %v1090, 8.507059e+37
  %v1092 = vand.u32 %v1080, 2147483648
  %v1093 = vor.u32 1.1754944e-38, %v1092
  %v1094 = vsel %vm1091, %v1093, %v1089
  %v1095 = vmul.f32 1.0, %v1094
  %v1096 = vmul.f32 %v1075, %v942
  %v1097 = vmul.f32 %v1056, %v1076
  %v1098 = vadd.f32 %v1096, %v1097
  %v1099 = vtanh.pop %v1098
  %v1100 = vmul.f32 %v1095, %v1099
  %s1101 = scalar_lea.vmem [#allocation2], 24
  %1102 = vst [vmem:[%s1101] sm:$0xff] %v1100
  %s1103 = smul.u32 4, 4
  %s1104 = smul.addr %s1103, 8
  %s1105 = scalar_lea.vmem [#allocation3], %s1104
  %v1106 = vld [vmem:[%s1105] sm:$0xff]
  %v1107 = vld [vmem:[%s1105 + $0x8] sm:$0xff]
  %v1108 = vld [vmem:[%s1105 + $0x10] sm:$0xff]
  %v1109 = vld [vmem:[%s1105 + $0x18] sm:$0xff]
  %1110 = vmatpush.msra.mxu0 %v476
  %1111 = vmatpush.msra.mxu0 %v472
  %1112 = vmatpush.msra.mxu0 %v468
  %1113 = vmatpush.msra.mxu0 %v464
  %1114 = vmatpush.msra.mxu0 %v460
  %1115 = vmatpush.msra.mxu0 %v456
  %1116 = vmatpush.msra.mxu0 %v452
  %1117 = vmatpush.msra.mxu0 %v448
  %1118 = vmatpush.msra.mxu0 %v444
  %1119 = vmatpush.msra.mxu0 %v440
  %1120 = vmatpush.msra.mxu0 %v436
  %1121 = vmatpush.msra.mxu0 %v432
  %1122 = vmatpush.msra.mxu0 %v428
  %1123 = vmatpush.msra.mxu0 %v424
  %1124 = vmatpush.msra.mxu0 %v420
  %1125 = vmatpush.msra.mxu0 %v416
  %1126 = vmatmul.f32.gmra.mxu0 %v1100
  %v1127 = vpop.f32.mrf.mxu0
  %v1128 = vadd.f32 0.0, %v1127
  %1129 = vdwg.mxu0
  %1130 = vmatpush.msra.mxu0 %v477
  %1131 = vmatpush.msra.mxu0 %v473
  %1132 = vmatpush.msra.mxu0 %v469
  %1133 = vmatpush.msra.mxu0 %v465
  %1134 = vmatpush.msra.mxu0 %v461
  %1135 = vmatpush.msra.mxu0 %v457
  %1136 = vmatpush.msra.mxu0 %v453
  %1137 = vmatpush.msra.mxu0 %v449
  %1138 = vmatpush.msra.mxu0 %v445
  %1139 = vmatpush.msra.mxu0 %v441
  %1140 = vmatpush.msra.mxu0 %v437
  %1141 = vmatpush.msra.mxu0 %v433
  %1142 = vmatpush.msra.mxu0 %v429
  %1143 = vmatpush.msra.mxu0 %v425
  %1144 = vmatpush.msra.mxu0 %v421
  %1145 = vmatpush.msra.mxu0 %v417
  %1146 = vmatmul.f32.gmra.mxu0 %v1100
  %v1147 = vpop.f32.mrf.mxu0
  %v1148 = vadd.f32 0.0, %v1147
  %1149 = vdwg.mxu0
  %1150 = vmatpush.msra.mxu0 %v478
  %1151 = vmatpush.msra.mxu0 %v474
  %1152 = vmatpush.msra.mxu0 %v470
  %1153 = vmatpush.msra.mxu0 %v466
  %1154 = vmatpush.msra.mxu0 %v462
  %1155 = vmatpush.msra.mxu0 %v458
  %1156 = vmatpush.msra.mxu0 %v454
  %1157 = vmatpush.msra.mxu0 %v450
  %1158 = vmatpush.msra.mxu0 %v446
  %1159 = vmatpush.msra.mxu0 %v442
  %1160 = vmatpush.msra.mxu0 %v438
  %1161 = vmatpush.msra.mxu0 %v434
  %1162 = vmatpush.msra.mxu0 %v430
  %1163 = vmatpush.msra.mxu0 %v426
  %1164 = vmatpush.msra.mxu0 %v422
  %1165 = vmatpush.msra.mxu0 %v418
  %1166 = vmatmul.f32.gmra.mxu0 %v1100
  %v1167 = vpop.f32.mrf.mxu0
  %v1168 = vadd.f32 0.0, %v1167
  %1169 = vdwg.mxu0
  %1170 = vmatpush.msra.mxu0 %v479
  %1171 = vmatpush.msra.mxu0 %v475
  %1172 = vmatpush.msra.mxu0 %v471
  %1173 = vmatpush.msra.mxu0 %v467
  %1174 = vmatpush.msra.mxu0 %v463
  %1175 = vmatpush.msra.mxu0 %v459
  %1176 = vmatpush.msra.mxu0 %v455
  %1177 = vmatpush.msra.mxu0 %v451
  %1178 = vmatpush.msra.mxu0 %v447
  %1179 = vmatpush.msra.mxu0 %v443
  %1180 = vmatpush.msra.mxu0 %v439
  %1181 = vmatpush.msra.mxu0 %v435
  %1182 = vmatpush.msra.mxu0 %v431
  %1183 = vmatpush.msra.mxu0 %v427
  %1184 = vmatpush.msra.mxu0 %v423
  %1185 = vmatpush.msra.mxu0 %v419
  %1186 = vmatmul.f32.gmra.mxu0 %v1100
  %v1187 = vpop.f32.mrf.mxu0
  %v1188 = vadd.f32 0.0, %v1187
  %1189 = vdwg.mxu0
  %v1190 = vadd.f32 %v1106, %v1128
  %v1191 = vadd.f32 %v1107, %v1148
  %v1192 = vadd.f32 %v1108, %v1168
  %v1193 = vadd.f32 %v1109, %v1188
  %v1194 = vxor.u32 %v1190, 2147483648
  %v1195 = vmul.f32 %v1194, 1.442695
  %v1196 = vpow.pop %v1195
  %v1197 = vadd.f32 %v1196, 1.0
  %v1198 = vrcp.pop %v1197
  %v1199 = vmul.f32 %v1197, %v1198
  %v1200 = vsub.f32 1.0, %v1199
  %v1201 = vmul.f32 %v1198, %v1200
  %v1202 = vadd.f32 %v1198, %v1201
  %vm1203 = vweird.f32 %v1197
  %vm1204 = vweird.f32 %v1198
  %vm1205 = vmor %vm1203, %vm1204
  %v1206 = vsel %vm1205, %v1198, %v1202
  %v1207 = vand.u32 2147483647, %v1197
  %vm1208 = vcmp.eq.f32.partialorder %v1207, 8.507059e+37
  %v1209 = vand.u32 %v1197, 2147483648
  %v1210 = vor.u32 1.1754944e-38, %v1209
  %v1211 = vsel %vm1208, %v1210, %v1206
  %v1212 = vmul.f32 1.0, %v1211
  %v1213 = vxor.u32 %v1191, 2147483648
  %v1214 = vmul.f32 %v1213, 1.442695
  %v1215 = vpow.pop %v1214
  %v1216 = vadd.f32 %v1215, 1.0
  %v1217 = vrcp.pop %v1216
  %v1218 = vmul.f32 %v1216, %v1217
  %v1219 = vsub.f32 1.0, %v1218
  %v1220 = vmul.f32 %v1217, %v1219
  %v1221 = vadd.f32 %v1217, %v1220
  %vm1222 = vweird.f32 %v1216
  %vm1223 = vweird.f32 %v1217
  %vm1224 = vmor %vm1222, %vm1223
  %v1225 = vsel %vm1224, %v1217, %v1221
  %v1226 = vand.u32 2147483647, %v1216
  %vm1227 = vcmp.eq.f32.partialorder %v1226, 8.507059e+37
  %v1228 = vand.u32 %v1216, 2147483648
  %v1229 = vor.u32 1.1754944e-38, %v1228
  %v1230 = vsel %vm1227, %v1229, %v1225
  %v1231 = vmul.f32 1.0, %v1230
  %v1232 = vtanh.pop %v1192
  %v1233 = vxor.u32 %v1193, 2147483648
  %v1234 = vmul.f32 %v1233, 1.442695
  %v1235 = vpow.pop %v1234
  %v1236 = vadd.f32 %v1235, 1.0
  %v1237 = vrcp.pop %v1236
  %v1238 = vmul.f32 %v1236, %v1237
  %v1239 = vsub.f32 1.0, %v1238
  %v1240 = vmul.f32 %v1237, %v1239
  %v1241 = vadd.f32 %v1237, %v1240
  %vm1242 = vweird.f32 %v1236
  %vm1243 = vweird.f32 %v1237
  %vm1244 = vmor %vm1242, %vm1243
  %v1245 = vsel %vm1244, %v1237, %v1241
  %v1246 = vand.u32 2147483647, %v1236
  %vm1247 = vcmp.eq.f32.partialorder %v1246, 8.507059e+37
  %v1248 = vand.u32 %v1236, 2147483648
  %v1249 = vor.u32 1.1754944e-38, %v1248
  %v1250 = vsel %vm1247, %v1249, %v1245
  %v1251 = vmul.f32 1.0, %v1250
  %v1252 = vmul.f32 %v1231, %v1098
  %v1253 = vmul.f32 %v1212, %v1232
  %v1254 = vadd.f32 %v1252, %v1253
  %v1255 = vtanh.pop %v1254
  %v1256 = vmul.f32 %v1251, %v1255
  %s1257 = scalar_lea.vmem [#allocation2], 32
  %1258 = vst [vmem:[%s1257] sm:$0xff] %v1256
  %s1259 = smul.u32 5, 4
  %s1260 = smul.addr %s1259, 8
  %s1261 = scalar_lea.vmem [#allocation3], %s1260
  %v1262 = vld [vmem:[%s1261] sm:$0xff]
  %v1263 = vld [vmem:[%s1261 + $0x8] sm:$0xff]
  %v1264 = vld [vmem:[%s1261 + $0x10] sm:$0xff]
  %v1265 = vld [vmem:[%s1261 + $0x18] sm:$0xff]
  %1266 = vmatpush.msra.mxu0 %v476
  %1267 = vmatpush.msra.mxu0 %v472
  %1268 = vmatpush.msra.mxu0 %v468
  %1269 = vmatpush.msra.mxu0 %v464
  %1270 = vmatpush.msra.mxu0 %v460
  %1271 = vmatpush.msra.mxu0 %v456
  %1272 = vmatpush.msra.mxu0 %v452
  %1273 = vmatpush.msra.mxu0 %v448
  %1274 = vmatpush.msra.mxu0 %v444
  %1275 = vmatpush.msra.mxu0 %v440
  %1276 = vmatpush.msra.mxu0 %v436
  %1277 = vmatpush.msra.mxu0 %v432
  %1278 = vmatpush.msra.mxu0 %v428
  %1279 = vmatpush.msra.mxu0 %v424
  %1280 = vmatpush.msra.mxu0 %v420
  %1281 = vmatpush.msra.mxu0 %v416
  %1282 = vmatmul.f32.gmra.mxu0 %v1256
  %v1283 = vpop.f32.mrf.mxu0
  %v1284 = vadd.f32 0.0, %v1283
  %1285 = vdwg.mxu0
  %1286 = vmatpush.msra.mxu0 %v477
  %1287 = vmatpush.msra.mxu0 %v473
  %1288 = vmatpush.msra.mxu0 %v469
  %1289 = vmatpush.msra.mxu0 %v465
  %1290 = vmatpush.msra.mxu0 %v461
  %1291 = vmatpush.msra.mxu0 %v457
  %1292 = vmatpush.msra.mxu0 %v453
  %1293 = vmatpush.msra.mxu0 %v449
  %1294 = vmatpush.msra.mxu0 %v445
  %1295 = vmatpush.msra.mxu0 %v441
  %1296 = vmatpush.msra.mxu0 %v437
  %1297 = vmatpush.msra.mxu0 %v433
  %1298 = vmatpush.msra.mxu0 %v429
  %1299 = vmatpush.msra.mxu0 %v425
  %1300 = vmatpush.msra.mxu0 %v421
  %1301 = vmatpush.msra.mxu0 %v417
  %1302 = vmatmul.f32.gmra.mxu0 %v1256
  %v1303 = vpop.f32.mrf.mxu0
  %v1304 = vadd.f32 0.0, %v1303
  %1305 = vdwg.mxu0
  %1306 = vmatpush.msra.mxu0 %v478
  %1307 = vmatpush.msra.mxu0 %v474
  %1308 = vmatpush.msra.mxu0 %v470
  %1309 = vmatpush.msra.mxu0 %v466
  %1310 = vmatpush.msra.mxu0 %v462
  %1311 = vmatpush.msra.mxu0 %v458
  %1312 = vmatpush.msra.mxu0 %v454
  %1313 = vmatpush.msra.mxu0 %v450
  %1314 = vmatpush.msra.mxu0 %v446
  %1315 = vmatpush.msra.mxu0 %v442
  %1316 = vmatpush.msra.mxu0 %v438
  %1317 = vmatpush.msra.mxu0 %v434
  %1318 = vmatpush.msra.mxu0 %v430
  %1319 = vmatpush.msra.mxu0 %v426
  %1320 = vmatpush.msra.mxu0 %v422
  %1321 = vmatpush.msra.mxu0 %v418
  %1322 = vmatmul.f32.gmra.mxu0 %v1256
  %v1323 = vpop.f32.mrf.mxu0
  %v1324 = vadd.f32 0.0, %v1323
  %1325 = vdwg.mxu0
  %1326 = vmatpush.msra.mxu0 %v479
  %1327 = vmatpush.msra.mxu0 %v475
  %1328 = vmatpush.msra.mxu0 %v471
  %1329 = vmatpush.msra.mxu0 %v467
  %1330 = vmatpush.msra.mxu0 %v463
  %1331 = vmatpush.msra.mxu0 %v459
  %1332 = vmatpush.msra.mxu0 %v455
  %1333 = vmatpush.msra.mxu0 %v451
  %1334 = vmatpush.msra.mxu0 %v447
  %1335 = vmatpush.msra.mxu0 %v443
  %1336 = vmatpush.msra.mxu0 %v439
  %1337 = vmatpush.msra.mxu0 %v435
  %1338 = vmatpush.msra.mxu0 %v431
  %1339 = vmatpush.msra.mxu0 %v427
  %1340 = vmatpush.msra.mxu0 %v423
  %1341 = vmatpush.msra.mxu0 %v419
  %1342 = vmatmul.f32.gmra.mxu0 %v1256
  %v1343 = vpop.f32.mrf.mxu0
  %v1344 = vadd.f32 0.0, %v1343
  %1345 = vdwg.mxu0
  %v1346 = vadd.f32 %v1262, %v1284
  %v1347 = vadd.f32 %v1263, %v1304
  %v1348 = vadd.f32 %v1264, %v1324
  %v1349 = vadd.f32 %v1265, %v1344
  %v1350 = vxor.u32 %v1346, 2147483648
  %v1351 = vmul.f32 %v1350, 1.442695
  %v1352 = vpow.pop %v1351
  %v1353 = vadd.f32 %v1352, 1.0
  %v1354 = vrcp.pop %v1353
  %v1355 = vmul.f32 %v1353, %v1354
  %v1356 = vsub.f32 1.0, %v1355
  %v1357 = vmul.f32 %v1354, %v1356
  %v1358 = vadd.f32 %v1354, %v1357
  %vm1359 = vweird.f32 %v1353
  %vm1360 = vweird.f32 %v1354
  %vm1361 = vmor %vm1359, %vm1360
  %v1362 = vsel %vm1361, %v1354, %v1358
  %v1363 = vand.u32 2147483647, %v1353
  %vm1364 = vcmp.eq.f32.partialorder %v1363, 8.507059e+37
  %v1365 = vand.u32 %v1353, 2147483648
  %v1366 = vor.u32 1.1754944e-38, %v1365
  %v1367 = vsel %vm1364, %v1366, %v1362
  %v1368 = vmul.f32 1.0, %v1367
  %v1369 = vxor.u32 %v1347, 2147483648
  %v1370 = vmul.f32 %v1369, 1.442695
  %v1371 = vpow.pop %v1370
  %v1372 = vadd.f32 %v1371, 1.0
  %v1373 = vrcp.pop %v1372
  %v1374 = vmul.f32 %v1372, %v1373
  %v1375 = vsub.f32 1.0, %v1374
  %v1376 = vmul.f32 %v1373, %v1375
  %v1377 = vadd.f32 %v1373, %v1376
  %vm1378 = vweird.f32 %v1372
  %vm1379 = vweird.f32 %v1373
  %vm1380 = vmor %vm1378, %vm1379
  %v1381 = vsel %vm1380, %v1373, %v1377
  %v1382 = vand.u32 2147483647, %v1372
  %vm1383 = vcmp.eq.f32.partialorder %v1382, 8.507059e+37
  %v1384 = vand.u32 %v1372, 2147483648
  %v1385 = vor.u32 1.1754944e-38, %v1384
  %v1386 = vsel %vm1383, %v1385, %v1381
  %v1387 = vmul.f32 1.0, %v1386
  %v1388 = vtanh.pop %v1348
  %v1389 = vxor.u32 %v1349, 2147483648
  %v1390 = vmul.f32 %v1389, 1.442695
  %v1391 = vpow.pop %v1390
  %v1392 = vadd.f32 %v1391, 1.0
  %v1393 = vrcp.pop %v1392
  %v1394 = vmul.f32 %v1392, %v1393
  %v1395 = vsub.f32 1.0, %v1394
  %v1396 = vmul.f32 %v1393, %v1395
  %v1397 = vadd.f32 %v1393, %v1396
  %vm1398 = vweird.f32 %v1392
  %vm1399 = vweird.f32 %v1393
  %vm1400 = vmor %vm1398, %vm1399
  %v1401 = vsel %vm1400, %v1393, %v1397
  %v1402 = vand.u32 2147483647, %v1392
  %vm1403 = vcmp.eq.f32.partialorder %v1402, 8.507059e+37
  %v1404 = vand.u32 %v1392, 2147483648
  %v1405 = vor.u32 1.1754944e-38, %v1404
  %v1406 = vsel %vm1403, %v1405, %v1401
  %v1407 = vmul.f32 1.0, %v1406
  %v1408 = vmul.f32 %v1387, %v1254
  %v1409 = vmul.f32 %v1368, %v1388
  %v1410 = vadd.f32 %v1408, %v1409
  %v1411 = vtanh.pop %v1410
  %v1412 = vmul.f32 %v1407, %v1411
  %s1413 = scalar_lea.vmem [#allocation2], 40
  %1414 = vst [vmem:[%s1413] sm:$0xff] %v1412
  %s1415 = smul.u32 6, 4
  %s1416 = smul.addr %s1415, 8
  %s1417 = scalar_lea.vmem [#allocation3], %s1416
  %v1418 = vld [vmem:[%s1417] sm:$0xff]
  %v1419 = vld [vmem:[%s1417 + $0x8] sm:$0xff]
  %v1420 = vld [vmem:[%s1417 + $0x10] sm:$0xff]
  %v1421 = vld [vmem:[%s1417 + $0x18] sm:$0xff]
  %1422 = vmatpush.msra.mxu0 %v476
  %1423 = vmatpush.msra.mxu0 %v472
  %1424 = vmatpush.msra.mxu0 %v468
  %1425 = vmatpush.msra.mxu0 %v464
  %1426 = vmatpush.msra.mxu0 %v460
  %1427 = vmatpush.msra.mxu0 %v456
  %1428 = vmatpush.msra.mxu0 %v452
  %1429 = vmatpush.msra.mxu0 %v448
  %1430 = vmatpush.msra.mxu0 %v444
  %1431 = vmatpush.msra.mxu0 %v440
  %1432 = vmatpush.msra.mxu0 %v436
  %1433 = vmatpush.msra.mxu0 %v432
  %1434 = vmatpush.msra.mxu0 %v428
  %1435 = vmatpush.msra.mxu0 %v424
  %1436 = vmatpush.msra.mxu0 %v420
  %1437 = vmatpush.msra.mxu0 %v416
  %1438 = vmatmul.f32.gmra.mxu0 %v1412
  %v1439 = vpop.f32.mrf.mxu0
  %v1440 = vadd.f32 0.0, %v1439
  %1441 = vdwg.mxu0
  %1442 = vmatpush.msra.mxu0 %v477
  %1443 = vmatpush.msra.mxu0 %v473
  %1444 = vmatpush.msra.mxu0 %v469
  %1445 = vmatpush.msra.mxu0 %v465
  %1446 = vmatpush.msra.mxu0 %v461
  %1447 = vmatpush.msra.mxu0 %v457
  %1448 = vmatpush.msra.mxu0 %v453
  %1449 = vmatpush.msra.mxu0 %v449
  %1450 = vmatpush.msra.mxu0 %v445
  %1451 = vmatpush.msra.mxu0 %v441
  %1452 = vmatpush.msra.mxu0 %v437
  %1453 = vmatpush.msra.mxu0 %v433
  %1454 = vmatpush.msra.mxu0 %v429
  %1455 = vmatpush.msra.mxu0 %v425
  %1456 = vmatpush.msra.mxu0 %v421
  %1457 = vmatpush.msra.mxu0 %v417
  %1458 = vmatmul.f32.gmra.mxu0 %v1412
  %v1459 = vpop.f32.mrf.mxu0
  %v1460 = vadd.f32 0.0, %v1459
  %1461 = vdwg.mxu0
  %1462 = vmatpush.msra.mxu0 %v478
  %1463 = vmatpush.msra.mxu0 %v474
  %1464 = vmatpush.msra.mxu0 %v470
  %1465 = vmatpush.msra.mxu0 %v466
  %1466 = vmatpush.msra.mxu0 %v462
  %1467 = vmatpush.msra.mxu0 %v458
  %1468 = vmatpush.msra.mxu0 %v454
  %1469 = vmatpush.msra.mxu0 %v450
  %1470 = vmatpush.msra.mxu0 %v446
  %1471 = vmatpush.msra.mxu0 %v442
  %1472 = vmatpush.msra.mxu0 %v438
  %1473 = vmatpush.msra.mxu0 %v434
  %1474 = vmatpush.msra.mxu0 %v430
  %1475 = vmatpush.msra.mxu0 %v426
  %1476 = vmatpush.msra.mxu0 %v422
  %1477 = vmatpush.msra.mxu0 %v418
  %1478 = vmatmul.f32.gmra.mxu0 %v1412
  %v1479 = vpop.f32.mrf.mxu0
  %v1480 = vadd.f32 0.0, %v1479
  %1481 = vdwg.mxu0
  %1482 = vmatpush.msra.mxu0 %v479
  %1483 = vmatpush.msra.mxu0 %v475
  %1484 = vmatpush.msra.mxu0 %v471
  %1485 = vmatpush.msra.mxu0 %v467
  %1486 = vmatpush.msra.mxu0 %v463
  %1487 = vmatpush.msra.mxu0 %v459
  %1488 = vmatpush.msra.mxu0 %v455
  %1489 = vmatpush.msra.mxu0 %v451
  %1490 = vmatpush.msra.mxu0 %v447
  %1491 = vmatpush.msra.mxu0 %v443
  %1492 = vmatpush.msra.mxu0 %v439
  %1493 = vmatpush.msra.mxu0 %v435
  %1494 = vmatpush.msra.mxu0 %v431
  %1495 = vmatpush.msra.mxu0 %v427
  %1496 = vmatpush.msra.mxu0 %v423
  %1497 = vmatpush.msra.mxu0 %v419
  %1498 = vmatmul.f32.gmra.mxu0 %v1412
  %v1499 = vpop.f32.mrf.mxu0
  %v1500 = vadd.f32 0.0, %v1499
  %1501 = vdwg.mxu0
  %v1502 = vadd.f32 %v1418, %v1440
  %v1503 = vadd.f32 %v1419, %v1460
  %v1504 = vadd.f32 %v1420, %v1480
  %v1505 = vadd.f32 %v1421, %v1500
  %v1506 = vxor.u32 %v1502, 2147483648
  %v1507 = vmul.f32 %v1506, 1.442695
  %v1508 = vpow.pop %v1507
  %v1509 = vadd.f32 %v1508, 1.0
  %v1510 = vrcp.pop %v1509
  %v1511 = vmul.f32 %v1509, %v1510
  %v1512 = vsub.f32 1.0, %v1511
  %v1513 = vmul.f32 %v1510, %v1512
  %v1514 = vadd.f32 %v1510, %v1513
  %vm1515 = vweird.f32 %v1509
  %vm1516 = vweird.f32 %v1510
  %vm1517 = vmor %vm1515, %vm1516
  %v1518 = vsel %vm1517, %v1510, %v1514
  %v1519 = vand.u32 2147483647, %v1509
  %vm1520 = vcmp.eq.f32.partialorder %v1519, 8.507059e+37
  %v1521 = vand.u32 %v1509, 2147483648
  %v1522 = vor.u32 1.1754944e-38, %v1521
  %v1523 = vsel %vm1520, %v1522, %v1518
  %v1524 = vmul.f32 1.0, %v1523
  %v1525 = vxor.u32 %v1503, 2147483648
  %v1526 = vmul.f32 %v1525, 1.442695
  %v1527 = vpow.pop %v1526
  %v1528 = vadd.f32 %v1527, 1.0
  %v1529 = vrcp.pop %v1528
  %v1530 = vmul.f32 %v1528, %v1529
  %v1531 = vsub.f32 1.0, %v1530
  %v1532 = vmul.f32 %v1529, %v1531
  %v1533 = vadd.f32 %v1529, %v1532
  %vm1534 = vweird.f32 %v1528
  %vm1535 = vweird.f32 %v1529
  %vm1536 = vmor %vm1534, %vm1535
  %v1537 = vsel %vm1536, %v1529, %v1533
  %v1538 = vand.u32 2147483647, %v1528
  %vm1539 = vcmp.eq.f32.partialorder %v1538, 8.507059e+37
  %v1540 = vand.u32 %v1528, 2147483648
  %v1541 = vor.u32 1.1754944e-38, %v1540
  %v1542 = vsel %vm1539, %v1541, %v1537
  %v1543 = vmul.f32 1.0, %v1542
  %v1544 = vtanh.pop %v1504
  %v1545 = vxor.u32 %v1505, 2147483648
  %v1546 = vmul.f32 %v1545, 1.442695
  %v1547 = vpow.pop %v1546
  %v1548 = vadd.f32 %v1547, 1.0
  %v1549 = vrcp.pop %v1548
  %v1550 = vmul.f32 %v1548, %v1549
  %v1551 = vsub.f32 1.0, %v1550
  %v1552 = vmul.f32 %v1549, %v1551
  %v1553 = vadd.f32 %v1549, %v1552
  %vm1554 = vweird.f32 %v1548
  %vm1555 = vweird.f32 %v1549
  %vm1556 = vmor %vm1554, %vm1555
  %v1557 = vsel %vm1556, %v1549, %v1553
  %v1558 = vand.u32 2147483647, %v1548
  %vm1559 = vcmp.eq.f32.partialorder %v1558, 8.507059e+37
  %v1560 = vand.u32 %v1548, 2147483648
  %v1561 = vor.u32 1.1754944e-38, %v1560
  %v1562 = vsel %vm1559, %v1561, %v1557
  %v1563 = vmul.f32 1.0, %v1562
  %v1564 = vmul.f32 %v1543, %v1410
  %v1565 = vmul.f32 %v1524, %v1544
  %v1566 = vadd.f32 %v1564, %v1565
  %v1567 = vtanh.pop %v1566
  %v1568 = vmul.f32 %v1563, %v1567
  %s1569 = scalar_lea.vmem [#allocation2], 48
  %1570 = vst [vmem:[%s1569] sm:$0xff] %v1568
  %s1571 = smul.u32 7, 4
  %s1572 = smul.addr %s1571, 8
  %s1573 = scalar_lea.vmem [#allocation3], %s1572
  %v1574 = vld [vmem:[%s1573] sm:$0xff]
  %v1575 = vld [vmem:[%s1573 + $0x8] sm:$0xff]
  %v1576 = vld [vmem:[%s1573 + $0x10] sm:$0xff]
  %v1577 = vld [vmem:[%s1573 + $0x18] sm:$0xff]
  %1578 = vmatpush.msra.mxu0 %v476
  %1579 = vmatpush.msra.mxu0 %v472
  %1580 = vmatpush.msra.mxu0 %v468
  %1581 = vmatpush.msra.mxu0 %v464
  %1582 = vmatpush.msra.mxu0 %v460
  %1583 = vmatpush.msra.mxu0 %v456
  %1584 = vmatpush.msra.mxu0 %v452
  %1585 = vmatpush.msra.mxu0 %v448
  %1586 = vmatpush.msra.mxu0 %v444
  %1587 = vmatpush.msra.mxu0 %v440
  %1588 = vmatpush.msra.mxu0 %v436
  %1589 = vmatpush.msra.mxu0 %v432
  %1590 = vmatpush.msra.mxu0 %v428
  %1591 = vmatpush.msra.mxu0 %v424
  %1592 = vmatpush.msra.mxu0 %v420
  %1593 = vmatpush.msra.mxu0 %v416
  %1594 = vmatmul.f32.gmra.mxu0 %v1568
  %v1595 = vpop.f32.mrf.mxu0
  %v1596 = vadd.f32 0.0, %v1595
  %1597 = vdwg.mxu0
  %1598 = vmatpush.msra.mxu0 %v477
  %1599 = vmatpush.msra.mxu0 %v473
  %1600 = vmatpush.msra.mxu0 %v469
  %1601 = vmatpush.msra.mxu0 %v465
  %1602 = vmatpush.msra.mxu0 %v461
  %1603 = vmatpush.msra.mxu0 %v457
  %1604 = vmatpush.msra.mxu0 %v453
  %1605 = vmatpush.msra.mxu0 %v449
  %1606 = vmatpush.msra.mxu0 %v445
  %1607 = vmatpush.msra.mxu0 %v441
  %1608 = vmatpush.msra.mxu0 %v437
  %1609 = vmatpush.msra.mxu0 %v433
  %1610 = vmatpush.msra.mxu0 %v429
  %1611 = vmatpush.msra.mxu0 %v425
  %1612 = vmatpush.msra.mxu0 %v421
  %1613 = vmatpush.msra.mxu0 %v417
  %1614 = vmatmul.f32.gmra.mxu0 %v1568
  %v1615 = vpop.f32.mrf.mxu0
  %v1616 = vadd.f32 0.0, %v1615
  %1617 = vdwg.mxu0
  %1618 = vmatpush.msra.mxu0 %v478
  %1619 = vmatpush.msra.mxu0 %v474
  %1620 = vmatpush.msra.mxu0 %v470
  %1621 = vmatpush.msra.mxu0 %v466
  %1622 = vmatpush.msra.mxu0 %v462
  %1623 = vmatpush.msra.mxu0 %v458
  %1624 = vmatpush.msra.mxu0 %v454
  %1625 = vmatpush.msra.mxu0 %v450
  %1626 = vmatpush.msra.mxu0 %v446
  %1627 = vmatpush.msra.mxu0 %v442
  %1628 = vmatpush.msra.mxu0 %v438
  %1629 = vmatpush.msra.mxu0 %v434
  %1630 = vmatpush.msra.mxu0 %v430
  %1631 = vmatpush.msra.mxu0 %v426
  %1632 = vmatpush.msra.mxu0 %v422
  %1633 = vmatpush.msra.mxu0 %v418
  %1634 = vmatmul.f32.gmra.mxu0 %v1568
  %v1635 = vpop.f32.mrf.mxu0
  %v1636 = vadd.f32 0.0, %v1635
  %1637 = vdwg.mxu0
  %1638 = vmatpush.msra.mxu0 %v479
  %1639 = vmatpush.msra.mxu0 %v475
  %1640 = vmatpush.msra.mxu0 %v471
  %1641 = vmatpush.msra.mxu0 %v467
  %1642 = vmatpush.msra.mxu0 %v463
  %1643 = vmatpush.msra.mxu0 %v459
  %1644 = vmatpush.msra.mxu0 %v455
  %1645 = vmatpush.msra.mxu0 %v451
  %1646 = vmatpush.msra.mxu0 %v447
  %1647 = vmatpush.msra.mxu0 %v443
  %1648 = vmatpush.msra.mxu0 %v439
  %1649 = vmatpush.msra.mxu0 %v435
  %1650 = vmatpush.msra.mxu0 %v431
  %1651 = vmatpush.msra.mxu0 %v427
  %1652 = vmatpush.msra.mxu0 %v423
  %1653 = vmatpush.msra.mxu0 %v419
  %1654 = vmatmul.f32.gmra.mxu0 %v1568
  %v1655 = vpop.f32.mrf.mxu0
  %v1656 = vadd.f32 0.0, %v1655
  %1657 = vdwg.mxu0
  %v1658 = vadd.f32 %v1574, %v1596
  %v1659 = vadd.f32 %v1575, %v1616
  %v1660 = vadd.f32 %v1576, %v1636
  %v1661 = vadd.f32 %v1577, %v1656
  %v1662 = vxor.u32 %v1658, 2147483648
  %v1663 = vmul.f32 %v1662, 1.442695
  %v1664 = vpow.pop %v1663
  %v1665 = vadd.f32 %v1664, 1.0
  %v1666 = vrcp.pop %v1665
  %v1667 = vmul.f32 %v1665, %v1666
  %v1668 = vsub.f32 1.0, %v1667
  %v1669 = vmul.f32 %v1666, %v1668
  %v1670 = vadd.f32 %v1666, %v1669
  %vm1671 = vweird.f32 %v1665
  %vm1672 = vweird.f32 %v1666
  %vm1673 = vmor %vm1671, %vm1672
  %v1674 = vsel %vm1673, %v1666, %v1670
  %v1675 = vand.u32 2147483647, %v1665
  %vm1676 = vcmp.eq.f32.partialorder %v1675, 8.507059e+37
  %v1677 = vand.u32 %v1665, 2147483648
  %v1678 = vor.u32 1.1754944e-38, %v1677
  %v1679 = vsel %vm1676, %v1678, %v1674
  %v1680 = vmul.f32 1.0, %v1679
  %v1681 = vxor.u32 %v1659, 2147483648
  %v1682 = vmul.f32 %v1681, 1.442695
  %v1683 = vpow.pop %v1682
  %v1684 = vadd.f32 %v1683, 1.0
  %v1685 = vrcp.pop %v1684
  %v1686 = vmul.f32 %v1684, %v1685
  %v1687 = vsub.f32 1.0, %v1686
  %v1688 = vmul.f32 %v1685, %v1687
  %v1689 = vadd.f32 %v1685, %v1688
  %vm1690 = vweird.f32 %v1684
  %vm1691 = vweird.f32 %v1685
  %vm1692 = vmor %vm1690, %vm1691
  %v1693 = vsel %vm1692, %v1685, %v1689
  %v1694 = vand.u32 2147483647, %v1684
  %vm1695 = vcmp.eq.f32.partialorder %v1694, 8.507059e+37
  %v1696 = vand.u32 %v1684, 2147483648
  %v1697 = vor.u32 1.1754944e-38, %v1696
  %v1698 = vsel %vm1695, %v1697, %v1693
  %v1699 = vmul.f32 1.0, %v1698
  %v1700 = vtanh.pop %v1660
  %v1701 = vxor.u32 %v1661, 2147483648
  %v1702 = vmul.f32 %v1701, 1.442695
  %v1703 = vpow.pop %v1702
  %v1704 = vadd.f32 %v1703, 1.0
  %v1705 = vrcp.pop %v1704
  %v1706 = vmul.f32 %v1704, %v1705
  %v1707 = vsub.f32 1.0, %v1706
  %v1708 = vmul.f32 %v1705, %v1707
  %v1709 = vadd.f32 %v1705, %v1708
  %vm1710 = vweird.f32 %v1704
  %vm1711 = vweird.f32 %v1705
  %vm1712 = vmor %vm1710, %vm1711
  %v1713 = vsel %vm1712, %v1705, %v1709
  %v1714 = vand.u32 2147483647, %v1704
  %vm1715 = vcmp.eq.f32.partialorder %v1714, 8.507059e+37
  %v1716 = vand.u32 %v1704, 2147483648
  %v1717 = vor.u32 1.1754944e-38, %v1716
  %v1718 = vsel %vm1715, %v1717, %v1713
  %v1719 = vmul.f32 1.0, %v1718
  %v1720 = vmul.f32 %v1699, %v1566
  %v1721 = vmul.f32 %v1680, %v1700
  %v1722 = vadd.f32 %v1720, %v1721
  %v1723 = vtanh.pop %v1722
  %v1724 = vmul.f32 %v1719, %v1723
  %s1725 = scalar_lea.vmem [#allocation2], 56
  %1726 = vst [vmem:[%s1725] sm:$0xff] %v1724
  %s1727 = smul.u32 8, 4
  %s1728 = smul.addr %s1727, 8
  %s1729 = scalar_lea.vmem [#allocation3], %s1728
  %v1730 = vld [vmem:[%s1729] sm:$0xff]
  %v1731 = vld [vmem:[%s1729 + $0x8] sm:$0xff]
  %v1732 = vld [vmem:[%s1729 + $0x10] sm:$0xff]
  %v1733 = vld [vmem:[%s1729 + $0x18] sm:$0xff]
  %1734 = vmatpush.msra.mxu0 %v476
  %1735 = vmatpush.msra.mxu0 %v472
  %1736 = vmatpush.msra.mxu0 %v468
  %1737 = vmatpush.msra.mxu0 %v464
  %1738 = vmatpush.msra.mxu0 %v460
  %1739 = vmatpush.msra.mxu0 %v456
  %1740 = vmatpush.msra.mxu0 %v452
  %1741 = vmatpush.msra.mxu0 %v448
  %1742 = vmatpush.msra.mxu0 %v444
  %1743 = vmatpush.msra.mxu0 %v440
  %1744 = vmatpush.msra.mxu0 %v436
  %1745 = vmatpush.msra.mxu0 %v432
  %1746 = vmatpush.msra.mxu0 %v428
  %1747 = vmatpush.msra.mxu0 %v424
  %1748 = vmatpush.msra.mxu0 %v420
  %1749 = vmatpush.msra.mxu0 %v416
  %1750 = vmatmul.f32.gmra.mxu0 %v1724
  %v1751 = vpop.f32.mrf.mxu0
  %v1752 = vadd.f32 0.0, %v1751
  %1753 = vdwg.mxu0
  %1754 = vmatpush.msra.mxu0 %v477
  %1755 = vmatpush.msra.mxu0 %v473
  %1756 = vmatpush.msra.mxu0 %v469
  %1757 = vmatpush.msra.mxu0 %v465
  %1758 = vmatpush.msra.mxu0 %v461
  %1759 = vmatpush.msra.mxu0 %v457
  %1760 = vmatpush.msra.mxu0 %v453
  %1761 = vmatpush.msra.mxu0 %v449
  %1762 = vmatpush.msra.mxu0 %v445
  %1763 = vmatpush.msra.mxu0 %v441
  %1764 = vmatpush.msra.mxu0 %v437
  %1765 = vmatpush.msra.mxu0 %v433
  %1766 = vmatpush.msra.mxu0 %v429
  %1767 = vmatpush.msra.mxu0 %v425
  %1768 = vmatpush.msra.mxu0 %v421
  %1769 = vmatpush.msra.mxu0 %v417
  %1770 = vmatmul.f32.gmra.mxu0 %v1724
  %v1771 = vpop.f32.mrf.mxu0
  %v1772 = vadd.f32 0.0, %v1771
  %1773 = vdwg.mxu0
  %1774 = vmatpush.msra.mxu0 %v478
  %1775 = vmatpush.msra.mxu0 %v474
  %1776 = vmatpush.msra.mxu0 %v470
  %1777 = vmatpush.msra.mxu0 %v466
  %1778 = vmatpush.msra.mxu0 %v462
  %1779 = vmatpush.msra.mxu0 %v458
  %1780 = vmatpush.msra.mxu0 %v454
  %1781 = vmatpush.msra.mxu0 %v450
  %1782 = vmatpush.msra.mxu0 %v446
  %1783 = vmatpush.msra.mxu0 %v442
  %1784 = vmatpush.msra.mxu0 %v438
  %1785 = vmatpush.msra.mxu0 %v434
  %1786 = vmatpush.msra.mxu0 %v430
  %1787 = vmatpush.msra.mxu0 %v426
  %1788 = vmatpush.msra.mxu0 %v422
  %1789 = vmatpush.msra.mxu0 %v418
  %1790 = vmatmul.f32.gmra.mxu0 %v1724
  %v1791 = vpop.f32.mrf.mxu0
  %v1792 = vadd.f32 0.0, %v1791
  %1793 = vdwg.mxu0
  %1794 = vmatpush.msra.mxu0 %v479
  %1795 = vmatpush.msra.mxu0 %v475
  %1796 = vmatpush.msra.mxu0 %v471
  %1797 = vmatpush.msra.mxu0 %v467
  %1798 = vmatpush.msra.mxu0 %v463
  %1799 = vmatpush.msra.mxu0 %v459
  %1800 = vmatpush.msra.mxu0 %v455
  %1801 = vmatpush.msra.mxu0 %v451
  %1802 = vmatpush.msra.mxu0 %v447
  %1803 = vmatpush.msra.mxu0 %v443
  %1804 = vmatpush.msra.mxu0 %v439
  %1805 = vmatpush.msra.mxu0 %v435
  %1806 = vmatpush.msra.mxu0 %v431
  %1807 = vmatpush.msra.mxu0 %v427
  %1808 = vmatpush.msra.mxu0 %v423
  %1809 = vmatpush.msra.mxu0 %v419
  %1810 = vmatmul.f32.gmra.mxu0 %v1724
  %v1811 = vpop.f32.mrf.mxu0
  %v1812 = vadd.f32 0.0, %v1811
  %1813 = vdwg.mxu0
  %v1814 = vadd.f32 %v1730, %v1752
  %v1815 = vadd.f32 %v1731, %v1772
  %v1816 = vadd.f32 %v1732, %v1792
  %v1817 = vadd.f32 %v1733, %v1812
  %v1818 = vxor.u32 %v1814, 2147483648
  %v1819 = vmul.f32 %v1818, 1.442695
  %v1820 = vpow.pop %v1819
  %v1821 = vadd.f32 %v1820, 1.0
  %v1822 = vrcp.pop %v1821
  %v1823 = vmul.f32 %v1821, %v1822
  %v1824 = vsub.f32 1.0, %v1823
  %v1825 = vmul.f32 %v1822, %v1824
  %v1826 = vadd.f32 %v1822, %v1825
  %vm1827 = vweird.f32 %v1821
  %vm1828 = vweird.f32 %v1822
  %vm1829 = vmor %vm1827, %vm1828
  %v1830 = vsel %vm1829, %v1822, %v1826
  %v1831 = vand.u32 2147483647, %v1821
  %vm1832 = vcmp.eq.f32.partialorder %v1831, 8.507059e+37
  %v1833 = vand.u32 %v1821, 2147483648
  %v1834 = vor.u32 1.1754944e-38, %v1833
  %v1835 = vsel %vm1832, %v1834, %v1830
  %v1836 = vmul.f32 1.0, %v1835
  %v1837 = vxor.u32 %v1815, 2147483648
  %v1838 = vmul.f32 %v1837, 1.442695
  %v1839 = vpow.pop %v1838
  %v1840 = vadd.f32 %v1839, 1.0
  %v1841 = vrcp.pop %v1840
  %v1842 = vmul.f32 %v1840, %v1841
  %v1843 = vsub.f32 1.0, %v1842
  %v1844 = vmul.f32 %v1841, %v1843
  %v1845 = vadd.f32 %v1841, %v1844
  %vm1846 = vweird.f32 %v1840
  %vm1847 = vweird.f32 %v1841
  %vm1848 = vmor %vm1846, %vm1847
  %v1849 = vsel %vm1848, %v1841, %v1845
  %v1850 = vand.u32 2147483647, %v1840
  %vm1851 = vcmp.eq.f32.partialorder %v1850, 8.507059e+37
  %v1852 = vand.u32 %v1840, 2147483648
  %v1853 = vor.u32 1.1754944e-38, %v1852
  %v1854 = vsel %vm1851, %v1853, %v1849
  %v1855 = vmul.f32 1.0, %v1854
  %v1856 = vtanh.pop %v1816
  %v1857 = vxor.u32 %v1817, 2147483648
  %v1858 = vmul.f32 %v1857, 1.442695
  %v1859 = vpow.pop %v1858
  %v1860 = vadd.f32 %v1859, 1.0
  %v1861 = vrcp.pop %v1860
  %v1862 = vmul.f32 %v1860, %v1861
  %v1863 = vsub.f32 1.0, %v1862
  %v1864 = vmul.f32 %v1861, %v1863
  %v1865 = vadd.f32 %v1861, %v1864
  %vm1866 = vweird.f32 %v1860
  %vm1867 = vweird.f32 %v1861
  %vm1868 = vmor %vm1866, %vm1867
  %v1869 = vsel %vm1868, %v1861, %v1865
  %v1870 = vand.u32 2147483647, %v1860
  %vm1871 = vcmp.eq.f32.partialorder %v1870, 8.507059e+37
  %v1872 = vand.u32 %v1860, 2147483648
  %v1873 = vor.u32 1.1754944e-38, %v1872
  %v1874 = vsel %vm1871, %v1873, %v1869
  %v1875 = vmul.f32 1.0, %v1874
  %v1876 = vmul.f32 %v1855, %v1722
  %v1877 = vmul.f32 %v1836, %v1856
  %v1878 = vadd.f32 %v1876, %v1877
  %v1879 = vtanh.pop %v1878
  %v1880 = vmul.f32 %v1875, %v1879
  %s1881 = scalar_lea.vmem [#allocation2], 64
  %1882 = vst [vmem:[%s1881] sm:$0xff] %v1880
  %v1883 = vld [vmem:[#allocation2] sm:$0xff]
  %v1884 = vld [vmem:[#allocation2 + $0x8] sm:$0xff]
  %v1885 = vld [vmem:[#allocation2 + $0x10] sm:$0xff]
  %v1886 = vld [vmem:[#allocation2 + $0x18] sm:$0xff]
  %v1887 = vld [vmem:[#allocation2 + $0x20] sm:$0xff]
  %v1888 = vld [vmem:[#allocation2 + $0x28] sm:$0xff]
  %v1889 = vld [vmem:[#allocation2 + $0x30] sm:$0xff]
  %v1890 = vld [vmem:[#allocation2 + $0x38] sm:$0xff]
  %v1891 = vld [vmem:[#allocation2 + $0x40] sm:$0xff]
  %v1892 = vpack.c.bf16 %v1884, %v1883
  %v1893 = vpack.c.bf16 %v1886, %v1885
  %v1894 = vpack.c.bf16 %v1888, %v1887
  %v1895 = vpack.c.bf16 %v1890, %v1889
  %v1896 = vpack.c.bf16 %v1891, %v1891
  %v1897 = vld [vmem:[%s4] sm:$0xff]
  %v1898 = vld [vmem:[%s4 + $0x8] sm:$0xff]
  %v1899 = vld [vmem:[%s4 + $0x10] sm:$0xff]
  %v1900 = vld [vmem:[%s4 + $0x18] sm:$0xff]
  %v1901 = vld [vmem:[%s4 + $0x20] sm:$0xff]
  %v1902 = vld [vmem:[%s4 + $0x28] sm:$0xff]
  %v1903 = vld [vmem:[%s4 + $0x30] sm:$0xff]
  %v1904 = vld [vmem:[%s4 + $0x38] sm:$0xff]
  %v1905 = vld [vmem:[%s4 + $0x40] sm:$0xff]
  %v1906 = vld [vmem:[%s4 + $0x48] sm:$0xff]
  %v1907 = vld [vmem:[%s4 + $0x50] sm:$0xff]
  %v1908 = vld [vmem:[%s4 + $0x58] sm:$0xff]
  %v1909 = vld [vmem:[%s4 + $0x60] sm:$0xff]
  %v1910 = vld [vmem:[%s4 + $0x68] sm:$0xff]
  %v1911 = vld [vmem:[%s4 + $0x70] sm:$0xff]
  %v1912 = vld [vmem:[%s4 + $0x78] sm:$0xff]
  %v1913 = vld [vmem:[%s4 + $0x80] sm:$0xff]
  %v1914 = vld [vmem:[%s4 + $0x88] sm:$0xff]
  %v1915 = vld [vmem:[%s4 + $0x90] sm:$0xff]
  %v1916 = vld [vmem:[%s4 + $0x98] sm:$0xff]
  %v1917 = vld [vmem:[%s4 + $0xa0] sm:$0xff]
  %v1918 = vld [vmem:[%s4 + $0xa8] sm:$0xff]
  %v1919 = vld [vmem:[%s4 + $0xb0] sm:$0xff]
  %v1920 = vld [vmem:[%s4 + $0xb8] sm:$0xff]
  %v1921 = vld [vmem:[%s4 + $0xc0] sm:$0xff]
  %v1922 = vld [vmem:[%s4 + $0xc8] sm:$0xff]
  %v1923 = vld [vmem:[%s4 + $0xd0] sm:$0xff]
  %v1924 = vld [vmem:[%s4 + $0xd8] sm:$0xff]
  %v1925 = vld [vmem:[%s4 + $0xe0] sm:$0xff]
  %v1926 = vld [vmem:[%s4 + $0xe8] sm:$0xff]
  %v1927 = vld [vmem:[%s4 + $0xf0] sm:$0xff]
  %v1928 = vld [vmem:[%s4 + $0xf8] sm:$0xff]
  %v1929 = vld [vmem:[%s6] sm:$0xf]
  %v1931 = vperm.slane %v1929, 0
  %v1932 = vperm.slane %v1929, 1
  %v1933 = vperm.slane %v1929, 2
  %v1934 = vperm.slane %v1929, 3
  %v1971 = vunpack.c.l.b16 %v1897
  %v1972 = vunpack.c.h.b16 %v1897
  %v1973 = vunpack.c.l.b16 %v1898
  %v1974 = vunpack.c.h.b16 %v1898
  %v1975 = vunpack.c.l.b16 %v1899
  %v1976 = vunpack.c.h.b16 %v1899
  %v1977 = vunpack.c.l.b16 %v1900
  %v1978 = vunpack.c.h.b16 %v1900
  %v1979 = vunpack.c.l.b16 %v1901
  %v1980 = vunpack.c.h.b16 %v1901
  %v1981 = vunpack.c.l.b16 %v1902
  %v1982 = vunpack.c.h.b16 %v1902
  %v1983 = vunpack.c.l.b16 %v1903
  %v1984 = vunpack.c.h.b16 %v1903
  %v1985 = vunpack.c.l.b16 %v1904
  %v1986 = vunpack.c.h.b16 %v1904
  %v1987 = vunpack.c.l.b16 %v1905
  %v1988 = vunpack.c.h.b16 %v1905
  %v1989 = vunpack.c.l.b16 %v1906
  %v1990 = vunpack.c.h.b16 %v1906
  %v1991 = vunpack.c.l.b16 %v1907
  %v1992 = vunpack.c.h.b16 %v1907
  %v1993 = vunpack.c.l.b16 %v1908
  %v1994 = vunpack.c.h.b16 %v1908
  %v1995 = vunpack.c.l.b16 %v1909
  %v1996 = vunpack.c.h.b16 %v1909
  %v1997 = vunpack.c.l.b16 %v1910
  %v1998 = vunpack.c.h.b16 %v1910
  %v1999 = vunpack.c.l.b16 %v1911
  %v2000 = vunpack.c.h.b16 %v1911
  %v2001 = vunpack.c.l.b16 %v1912
  %v2002 = vunpack.c.h.b16 %v1912
  %v2003 = vunpack.c.l.b16 %v1913
  %v2004 = vunpack.c.h.b16 %v1913
  %v2005 = vunpack.c.l.b16 %v1914
  %v2006 = vunpack.c.h.b16 %v1914
  %v2007 = vunpack.c.l.b16 %v1915
  %v2008 = vunpack.c.h.b16 %v1915
  %v2009 = vunpack.c.l.b16 %v1916
  %v2010 = vunpack.c.h.b16 %v1916
  %v2011 = vunpack.c.l.b16 %v1917
  %v2012 = vunpack.c.h.b16 %v1917
  %v2013 = vunpack.c.l.b16 %v1918
  %v2014 = vunpack.c.h.b16 %v1918
  %v2015 = vunpack.c.l.b16 %v1919
  %v2016 = vunpack.c.h.b16 %v1919
  %v2017 = vunpack.c.l.b16 %v1920
  %v2018 = vunpack.c.h.b16 %v1920
  %v2019 = vunpack.c.l.b16 %v1921
  %v2020 = vunpack.c.h.b16 %v1921
  %v2021 = vunpack.c.l.b16 %v1922
  %v2022 = vunpack.c.h.b16 %v1922
  %v2023 = vunpack.c.l.b16 %v1923
  %v2024 = vunpack.c.h.b16 %v1923
  %v2025 = vunpack.c.l.b16 %v1924
  %v2026 = vunpack.c.h.b16 %v1924
  %v2027 = vunpack.c.l.b16 %v1925
  %v2028 = vunpack.c.h.b16 %v1925
  %v2029 = vunpack.c.l.b16 %v1926
  %v2030 = vunpack.c.h.b16 %v1926
  %v2031 = vunpack.c.l.b16 %v1927
  %v2032 = vunpack.c.h.b16 %v1927
  %v2033 = vunpack.c.l.b16 %v1928
  %v2034 = vunpack.c.h.b16 %v1928
  %v2035 = vpack.c.b16 %v1975, %v1971
  %v2036 = vpack.c.b16 %v1976, %v1972
  %v2037 = vpack.c.b16 %v1977, %v1973
  %v2038 = vpack.c.b16 %v1978, %v1974
  %v2039 = vpack.c.b16 %v1983, %v1979
  %v2040 = vpack.c.b16 %v1984, %v1980
  %v2041 = vpack.c.b16 %v1985, %v1981
  %v2042 = vpack.c.b16 %v1986, %v1982
  %v2043 = vpack.c.b16 %v1991, %v1987
  %v2044 = vpack.c.b16 %v1992, %v1988
  %v2045 = vpack.c.b16 %v1993, %v1989
  %v2046 = vpack.c.b16 %v1994, %v1990
  %v2047 = vpack.c.b16 %v1999, %v1995
  %v2048 = vpack.c.b16 %v2000, %v1996
  %v2049 = vpack.c.b16 %v2001, %v1997
  %v2050 = vpack.c.b16 %v2002, %v1998
  %v2051 = vpack.c.b16 %v2007, %v2003
  %v2052 = vpack.c.b16 %v2008, %v2004
  %v2053 = vpack.c.b16 %v2009, %v2005
  %v2054 = vpack.c.b16 %v2010, %v2006
  %v2055 = vpack.c.b16 %v2015, %v2011
  %v2056 = vpack.c.b16 %v2016, %v2012
  %v2057 = vpack.c.b16 %v2017, %v2013
  %v2058 = vpack.c.b16 %v2018, %v2014
  %v2059 = vpack.c.b16 %v2023, %v2019
  %v2060 = vpack.c.b16 %v2024, %v2020
  %v2061 = vpack.c.b16 %v2025, %v2021
  %v2062 = vpack.c.b16 %v2026, %v2022
  %v2063 = vpack.c.b16 %v2031, %v2027
  %v2064 = vpack.c.b16 %v2032, %v2028
  %v2065 = vpack.c.b16 %v2033, %v2029
  %v2066 = vpack.c.b16 %v2034, %v2030
  %2099 = vmatpush.bf16.msra.mxu0 %v2063
  %2100 = vmatpush.bf16.msra.mxu0 %v2059
  %2101 = vmatpush.bf16.msra.mxu0 %v2055
  %2102 = vmatpush.bf16.msra.mxu0 %v2051
  %2103 = vmatpush.bf16.msra.mxu0 %v2047
  %2104 = vmatpush.bf16.msra.mxu0 %v2043
  %2105 = vmatpush.bf16.msra.mxu0 %v2039
  %2106 = vmatpush.bf16.msra.mxu0 %v2035
  %2107 = vmatmul.bf16.gmra.mxu0 %v1892
  %v2108 = vpop.f32.mrf.mxu0
  %v2109 = vadd.f32 %v1931, %v2108
  %v2110 = vpop.f32.mrf.mxu0
  %v2111 = vadd.f32 %v1931, %v2110
  %2112 = vmatmul.bf16.gmra.mxu0 %v1893
  %v2113 = vpop.f32.mrf.mxu0
  %v2114 = vadd.f32 %v1931, %v2113
  %v2115 = vpop.f32.mrf.mxu0
  %v2116 = vadd.f32 %v1931, %v2115
  %2117 = vmatmul.bf16.gmra.mxu0 %v1894
  %v2118 = vpop.f32.mrf.mxu0
  %v2119 = vadd.f32 %v1931, %v2118
  %v2120 = vpop.f32.mrf.mxu0
  %v2121 = vadd.f32 %v1931, %v2120
  %2122 = vmatmul.bf16.gmra.mxu0 %v1895
  %v2123 = vpop.f32.mrf.mxu0
  %v2124 = vadd.f32 %v1931, %v2123
  %v2125 = vpop.f32.mrf.mxu0
  %v2126 = vadd.f32 %v1931, %v2125
  %2127 = vmatmul.bf16.gmra.mxu0 %v1896
  %v2128 = vpop.f32.mrf.mxu0
  %v2129 = vadd.f32 %v1931, %v2128
  %v2130 = vpop.f32.mrf.mxu0
  %2131 = vdwg.mxu0
  %2132 = vmatpush.bf16.msra.mxu0 %v2064
  %2133 = vmatpush.bf16.msra.mxu0 %v2060
  %2134 = vmatpush.bf16.msra.mxu0 %v2056
  %2135 = vmatpush.bf16.msra.mxu0 %v2052
  %2136 = vmatpush.bf16.msra.mxu0 %v2048
  %2137 = vmatpush.bf16.msra.mxu0 %v2044
  %2138 = vmatpush.bf16.msra.mxu0 %v2040
  %2139 = vmatpush.bf16.msra.mxu0 %v2036
  %2140 = vmatmul.bf16.gmra.mxu0 %v1892
  %v2141 = vpop.f32.mrf.mxu0
  %v2142 = vadd.f32 %v1932, %v2141
  %v2143 = vpop.f32.mrf.mxu0
  %v2144 = vadd.f32 %v1932, %v2143
  %2145 = vmatmul.bf16.gmra.mxu0 %v1893
  %v2146 = vpop.f32.mrf.mxu0
  %v2147 = vadd.f32 %v1932, %v2146
  %v2148 = vpop.f32.mrf.mxu0
  %v2149 = vadd.f32 %v1932, %v2148
  %2150 = vmatmul.bf16.gmra.mxu0 %v1894
  %v2151 = vpop.f32.mrf.mxu0
  %v2152 = vadd.f32 %v1932, %v2151
  %v2153 = vpop.f32.mrf.mxu0
  %v2154 = vadd.f32 %v1932, %v2153
  %2155 = vmatmul.bf16.gmra.mxu0 %v1895
  %v2156 = vpop.f32.mrf.mxu0
  %v2157 = vadd.f32 %v1932, %v2156
  %v2158 = vpop.f32.mrf.mxu0
  %v2159 = vadd.f32 %v1932, %v2158
  %2160 = vmatmul.bf16.gmra.mxu0 %v1896
  %v2161 = vpop.f32.mrf.mxu0
  %v2162 = vadd.f32 %v1932, %v2161
  %v2163 = vpop.f32.mrf.mxu0
  %2164 = vdwg.mxu0
  %2165 = vmatpush.bf16.msra.mxu0 %v2065
  %2166 = vmatpush.bf16.msra.mxu0 %v2061
  %2167 = vmatpush.bf16.msra.mxu0 %v2057
  %2168 = vmatpush.bf16.msra.mxu0 %v2053
  %2169 = vmatpush.bf16.msra.mxu0 %v2049
  %2170 = vmatpush.bf16.msra.mxu0 %v2045
  %2171 = vmatpush.bf16.msra.mxu0 %v2041
  %2172 = vmatpush.bf16.msra.mxu0 %v2037
  %2173 = vmatmul.bf16.gmra.mxu0 %v1892
  %v2174 = vpop.f32.mrf.mxu0
  %v2175 = vadd.f32 %v1933, %v2174
  %v2176 = vpop.f32.mrf.mxu0
  %v2177 = vadd.f32 %v1933, %v2176
  %2178 = vmatmul.bf16.gmra.mxu0 %v1893
  %v2179 = vpop.f32.mrf.mxu0
  %v2180 = vadd.f32 %v1933, %v2179
  %v2181 = vpop.f32.mrf.mxu0
  %v2182 = vadd.f32 %v1933, %v2181
  %2183 = vmatmul.bf16.gmra.mxu0 %v1894
  %v2184 = vpop.f32.mrf.mxu0
  %v2185 = vadd.f32 %v1933, %v2184
  %v2186 = vpop.f32.mrf.mxu0
  %v2187 = vadd.f32 %v1933, %v2186
  %2188 = vmatmul.bf16.gmra.mxu0 %v1895
  %v2189 = vpop.f32.mrf.mxu0
  %v2190 = vadd.f32 %v1933, %v2189
  %v2191 = vpop.f32.mrf.mxu0
  %v2192 = vadd.f32 %v1933, %v2191
  %2193 = vmatmul.bf16.gmra.mxu0 %v1896
  %v2194 = vpop.f32.mrf.mxu0
  %v2195 = vadd.f32 %v1933, %v2194
  %v2196 = vpop.f32.mrf.mxu0
  %2197 = vdwg.mxu0
  %2198 = vmatpush.bf16.msra.mxu0 %v2066
  %2199 = vmatpush.bf16.msra.mxu0 %v2062
  %2200 = vmatpush.bf16.msra.mxu0 %v2058
  %2201 = vmatpush.bf16.msra.mxu0 %v2054
  %2202 = vmatpush.bf16.msra.mxu0 %v2050
  %2203 = vmatpush.bf16.msra.mxu0 %v2046
  %2204 = vmatpush.bf16.msra.mxu0 %v2042
  %2205 = vmatpush.bf16.msra.mxu0 %v2038
  %2206 = vmatmul.bf16.gmra.mxu0 %v1892
  %v2207 = vpop.f32.mrf.mxu0
  %v2208 = vadd.f32 %v1934, %v2207
  %v2209 = vpop.f32.mrf.mxu0
  %v2210 = vadd.f32 %v1934, %v2209
  %2211 = vmatmul.bf16.gmra.mxu0 %v1893
  %v2212 = vpop.f32.mrf.mxu0
  %v2213 = vadd.f32 %v1934, %v2212
  %v2214 = vpop.f32.mrf.mxu0
  %v2215 = vadd.f32 %v1934, %v2214
  %2216 = vmatmul.bf16.gmra.mxu0 %v1894
  %v2217 = vpop.f32.mrf.mxu0
  %v2218 = vadd.f32 %v1934, %v2217
  %v2219 = vpop.f32.mrf.mxu0
  %v2220 = vadd.f32 %v1934, %v2219
  %2221 = vmatmul.bf16.gmra.mxu0 %v1895
  %v2222 = vpop.f32.mrf.mxu0
  %v2223 = vadd.f32 %v1934, %v2222
  %v2224 = vpop.f32.mrf.mxu0
  %v2225 = vadd.f32 %v1934, %v2224
  %2226 = vmatmul.bf16.gmra.mxu0 %v1896
  %v2227 = vpop.f32.mrf.mxu0
  %v2228 = vadd.f32 %v1934, %v2227
  %v2229 = vpop.f32.mrf.mxu0
  %2230 = vdwg.mxu0
  %2231 = vst [vmem:[#allocation3] sm:$0xff] %v2109
  %2232 = vst [vmem:[#allocation3 + $0x8] sm:$0xff] %v2142
  %2233 = vst [vmem:[#allocation3 + $0x10] sm:$0xff] %v2175
  %2234 = vst [vmem:[#allocation3 + $0x18] sm:$0xff] %v2208
  %2235 = vst [vmem:[#allocation3 + $0x20] sm:$0xff] %v2111
  %2236 = vst [vmem:[#allocation3 + $0x28] sm:$0xff] %v2144
  %2237 = vst [vmem:[#allocation3 + $0x30] sm:$0xff] %v2177
  %2238 = vst [vmem:[#allocation3 + $0x38] sm:$0xff] %v2210
  %2239 = vst [vmem:[#allocation3 + $0x40] sm:$0xff] %v2114
  %2240 = vst [vmem:[#allocation3 + $0x48] sm:$0xff] %v2147
  %2241 = vst [vmem:[#allocation3 + $0x50] sm:$0xff] %v2180
  %2242 = vst [vmem:[#allocation3 + $0x58] sm:$0xff] %v2213
  %2243 = vst [vmem:[#allocation3 + $0x60] sm:$0xff] %v2116
  %2244 = vst [vmem:[#allocation3 + $0x68] sm:$0xff] %v2149
  %2245 = vst [vmem:[#allocation3 + $0x70] sm:$0xff] %v2182
  %2246 = vst [vmem:[#allocation3 + $0x78] sm:$0xff] %v2215
  %2247 = vst [vmem:[#allocation3 + $0x80] sm:$0xff] %v2119
  %2248 = vst [vmem:[#allocation3 + $0x88] sm:$0xff] %v2152
  %2249 = vst [vmem:[#allocation3 + $0x90] sm:$0xff] %v2185
  %2250 = vst [vmem:[#allocation3 + $0x98] sm:$0xff] %v2218
  %2251 = vst [vmem:[#allocation3 + $0xa0] sm:$0xff] %v2121
  %2252 = vst [vmem:[#allocation3 + $0xa8] sm:$0xff] %v2154
  %2253 = vst [vmem:[#allocation3 + $0xb0] sm:$0xff] %v2187
  %2254 = vst [vmem:[#allocation3 + $0xb8] sm:$0xff] %v2220
  %2255 = vst [vmem:[#allocation3 + $0xc0] sm:$0xff] %v2124
  %2256 = vst [vmem:[#allocation3 + $0xc8] sm:$0xff] %v2157
  %2257 = vst [vmem:[#allocation3 + $0xd0] sm:$0xff] %v2190
  %2258 = vst [vmem:[#allocation3 + $0xd8] sm:$0xff] %v2223
  %2259 = vst [vmem:[#allocation3 + $0xe0] sm:$0xff] %v2126
  %2260 = vst [vmem:[#allocation3 + $0xe8] sm:$0xff] %v2159
  %2261 = vst [vmem:[#allocation3 + $0xf0] sm:$0xff] %v2192
  %2262 = vst [vmem:[#allocation3 + $0xf8] sm:$0xff] %v2225
  %2263 = vst [vmem:[#allocation3 + $0x100] sm:$0xff] %v2129
  %2264 = vst [vmem:[#allocation3 + $0x108] sm:$0xff] %v2162
  %2265 = vst [vmem:[#allocation3 + $0x110] sm:$0xff] %v2195
  %2266 = vst [vmem:[#allocation3 + $0x118] sm:$0xff] %v2228
  %v2267 = vld [vmem:[%s5] sm:$0xff]
  %v2268 = vld [vmem:[%s5 + $0x8] sm:$0xff]
  %v2269 = vld [vmem:[%s5 + $0x10] sm:$0xff]
  %v2270 = vld [vmem:[%s5 + $0x18] sm:$0xff]
  %v2271 = vld [vmem:[%s5 + $0x20] sm:$0xff]
  %v2272 = vld [vmem:[%s5 + $0x28] sm:$0xff]
  %v2273 = vld [vmem:[%s5 + $0x30] sm:$0xff]
  %v2274 = vld [vmem:[%s5 + $0x38] sm:$0xff]
  %v2275 = vld [vmem:[%s5 + $0x40] sm:$0xff]
  %v2276 = vld [vmem:[%s5 + $0x48] sm:$0xff]
  %v2277 = vld [vmem:[%s5 + $0x50] sm:$0xff]
  %v2278 = vld [vmem:[%s5 + $0x58] sm:$0xff]
  %v2279 = vld [vmem:[%s5 + $0x60] sm:$0xff]
  %v2280 = vld [vmem:[%s5 + $0x68] sm:$0xff]
  %v2281 = vld [vmem:[%s5 + $0x70] sm:$0xff]
  %v2282 = vld [vmem:[%s5 + $0x78] sm:$0xff]
  %v2283 = vld [vmem:[%s5 + $0x80] sm:$0xff]
  %v2284 = vld [vmem:[%s5 + $0x88] sm:$0xff]
  %v2285 = vld [vmem:[%s5 + $0x90] sm:$0xff]
  %v2286 = vld [vmem:[%s5 + $0x98] sm:$0xff]
  %v2287 = vld [vmem:[%s5 + $0xa0] sm:$0xff]
  %v2288 = vld [vmem:[%s5 + $0xa8] sm:$0xff]
  %v2289 = vld [vmem:[%s5 + $0xb0] sm:$0xff]
  %v2290 = vld [vmem:[%s5 + $0xb8] sm:$0xff]
  %v2291 = vld [vmem:[%s5 + $0xc0] sm:$0xff]
  %v2292 = vld [vmem:[%s5 + $0xc8] sm:$0xff]
  %v2293 = vld [vmem:[%s5 + $0xd0] sm:$0xff]
  %v2294 = vld [vmem:[%s5 + $0xd8] sm:$0xff]
  %v2295 = vld [vmem:[%s5 + $0xe0] sm:$0xff]
  %v2296 = vld [vmem:[%s5 + $0xe8] sm:$0xff]
  %v2297 = vld [vmem:[%s5 + $0xf0] sm:$0xff]
  %v2298 = vld [vmem:[%s5 + $0xf8] sm:$0xff]
  %v2299 = vld [vmem:[%s5 + $0x100] sm:$0xff]
  %v2300 = vld [vmem:[%s5 + $0x108] sm:$0xff]
  %v2301 = vld [vmem:[%s5 + $0x110] sm:$0xff]
  %v2302 = vld [vmem:[%s5 + $0x118] sm:$0xff]
  %v2303 = vld [vmem:[%s5 + $0x120] sm:$0xff]
  %v2304 = vld [vmem:[%s5 + $0x128] sm:$0xff]
  %v2305 = vld [vmem:[%s5 + $0x130] sm:$0xff]
  %v2306 = vld [vmem:[%s5 + $0x138] sm:$0xff]
  %v2307 = vld [vmem:[%s5 + $0x140] sm:$0xff]
  %v2308 = vld [vmem:[%s5 + $0x148] sm:$0xff]
  %v2309 = vld [vmem:[%s5 + $0x150] sm:$0xff]
  %v2310 = vld [vmem:[%s5 + $0x158] sm:$0xff]
  %v2311 = vld [vmem:[%s5 + $0x160] sm:$0xff]
  %v2312 = vld [vmem:[%s5 + $0x168] sm:$0xff]
  %v2313 = vld [vmem:[%s5 + $0x170] sm:$0xff]
  %v2314 = vld [vmem:[%s5 + $0x178] sm:$0xff]
  %v2315 = vld [vmem:[%s5 + $0x180] sm:$0xff]
  %v2316 = vld [vmem:[%s5 + $0x188] sm:$0xff]
  %v2317 = vld [vmem:[%s5 + $0x190] sm:$0xff]
  %v2318 = vld [vmem:[%s5 + $0x198] sm:$0xff]
  %v2319 = vld [vmem:[%s5 + $0x1a0] sm:$0xff]
  %v2320 = vld [vmem:[%s5 + $0x1a8] sm:$0xff]
  %v2321 = vld [vmem:[%s5 + $0x1b0] sm:$0xff]
  %v2322 = vld [vmem:[%s5 + $0x1b8] sm:$0xff]
  %v2323 = vld [vmem:[%s5 + $0x1c0] sm:$0xff]
  %v2324 = vld [vmem:[%s5 + $0x1c8] sm:$0xff]
  %v2325 = vld [vmem:[%s5 + $0x1d0] sm:$0xff]
  %v2326 = vld [vmem:[%s5 + $0x1d8] sm:$0xff]
  %v2327 = vld [vmem:[%s5 + $0x1e0] sm:$0xff]
  %v2328 = vld [vmem:[%s5 + $0x1e8] sm:$0xff]
  %v2329 = vld [vmem:[%s5 + $0x1f0] sm:$0xff]
  %v2330 = vld [vmem:[%s5 + $0x1f8] sm:$0xff]
  %v2331 = vld [vmem:[%s482] sm:$0xff]
  %v2332 = vld [vmem:[%s482 + $0x8] sm:$0xff]
  %v2333 = vld [vmem:[%s482 + $0x10] sm:$0xff]
  %v2334 = vld [vmem:[%s482 + $0x18] sm:$0xff]
  %2335 = vmatpush.msra.mxu0 %v2327
  %2336 = vmatpush.msra.mxu0 %v2323
  %2337 = vmatpush.msra.mxu0 %v2319
  %2338 = vmatpush.msra.mxu0 %v2315
  %2339 = vmatpush.msra.mxu0 %v2311
  %2340 = vmatpush.msra.mxu0 %v2307
  %2341 = vmatpush.msra.mxu0 %v2303
  %2342 = vmatpush.msra.mxu0 %v2299
  %2343 = vmatpush.msra.mxu0 %v2295
  %2344 = vmatpush.msra.mxu0 %v2291
  %2345 = vmatpush.msra.mxu0 %v2287
  %2346 = vmatpush.msra.mxu0 %v2283
  %2347 = vmatpush.msra.mxu0 %v2279
  %2348 = vmatpush.msra.mxu0 %v2275
  %2349 = vmatpush.msra.mxu0 %v2271
  %2350 = vmatpush.msra.mxu0 %v2267
  %2351 = vmatmul.f32.gmra.mxu0 0.0
  %v2352 = vpop.f32.mrf.mxu0
  %v2353 = vadd.f32 0.0, %v2352
  %2354 = vdwg.mxu0
  %2355 = vmatpush.msra.mxu0 %v2328
  %2356 = vmatpush.msra.mxu0 %v2324
  %2357 = vmatpush.msra.mxu0 %v2320
  %2358 = vmatpush.msra.mxu0 %v2316
  %2359 = vmatpush.msra.mxu0 %v2312
  %2360 = vmatpush.msra.mxu0 %v2308
  %2361 = vmatpush.msra.mxu0 %v2304
  %2362 = vmatpush.msra.mxu0 %v2300
  %2363 = vmatpush.msra.mxu0 %v2296
  %2364 = vmatpush.msra.mxu0 %v2292
  %2365 = vmatpush.msra.mxu0 %v2288
  %2366 = vmatpush.msra.mxu0 %v2284
  %2367 = vmatpush.msra.mxu0 %v2280
  %2368 = vmatpush.msra.mxu0 %v2276
  %2369 = vmatpush.msra.mxu0 %v2272
  %2370 = vmatpush.msra.mxu0 %v2268
  %2371 = vmatmul.f32.gmra.mxu0 0.0
  %v2372 = vpop.f32.mrf.mxu0
  %v2373 = vadd.f32 0.0, %v2372
  %2374 = vdwg.mxu0
  %2375 = vmatpush.msra.mxu0 %v2329
  %2376 = vmatpush.msra.mxu0 %v2325
  %2377 = vmatpush.msra.mxu0 %v2321
  %2378 = vmatpush.msra.mxu0 %v2317
  %2379 = vmatpush.msra.mxu0 %v2313
  %2380 = vmatpush.msra.mxu0 %v2309
  %2381 = vmatpush.msra.mxu0 %v2305
  %2382 = vmatpush.msra.mxu0 %v2301
  %2383 = vmatpush.msra.mxu0 %v2297
  %2384 = vmatpush.msra.mxu0 %v2293
  %2385 = vmatpush.msra.mxu0 %v2289
  %2386 = vmatpush.msra.mxu0 %v2285
  %2387 = vmatpush.msra.mxu0 %v2281
  %2388 = vmatpush.msra.mxu0 %v2277
  %2389 = vmatpush.msra.mxu0 %v2273
  %2390 = vmatpush.msra.mxu0 %v2269
  %2391 = vmatmul.f32.gmra.mxu0 0.0
  %v2392 = vpop.f32.mrf.mxu0
  %v2393 = vadd.f32 0.0, %v2392
  %2394 = vdwg.mxu0
  %2395 = vmatpush.msra.mxu0 %v2330
  %2396 = vmatpush.msra.mxu0 %v2326
  %2397 = vmatpush.msra.mxu0 %v2322
  %2398 = vmatpush.msra.mxu0 %v2318
  %2399 = vmatpush.msra.mxu0 %v2314
  %2400 = vmatpush.msra.mxu0 %v2310
  %2401 = vmatpush.msra.mxu0 %v2306
  %2402 = vmatpush.msra.mxu0 %v2302
  %2403 = vmatpush.msra.mxu0 %v2298
  %2404 = vmatpush.msra.mxu0 %v2294
  %2405 = vmatpush.msra.mxu0 %v2290
  %2406 = vmatpush.msra.mxu0 %v2286
  %2407 = vmatpush.msra.mxu0 %v2282
  %2408 = vmatpush.msra.mxu0 %v2278
  %2409 = vmatpush.msra.mxu0 %v2274
  %2410 = vmatpush.msra.mxu0 %v2270
  %2411 = vmatmul.f32.gmra.mxu0 0.0
  %v2412 = vpop.f32.mrf.mxu0
  %v2413 = vadd.f32 0.0, %v2412
  %2414 = vdwg.mxu0
  %v2415 = vadd.f32 %v2331, %v2353
  %v2416 = vadd.f32 %v2332, %v2373
  %v2417 = vadd.f32 %v2333, %v2393
  %v2418 = vadd.f32 %v2334, %v2413
  %v2419 = vxor.u32 %v2415, 2147483648
  %v2420 = vmul.f32 %v2419, 1.442695
  %v2421 = vpow.pop %v2420
  %v2422 = vadd.f32 %v2421, 1.0
  %v2423 = vrcp.pop %v2422
  %v2424 = vmul.f32 %v2422, %v2423
  %v2425 = vsub.f32 1.0, %v2424
  %v2426 = vmul.f32 %v2423, %v2425
  %v2427 = vadd.f32 %v2423, %v2426
  %vm2428 = vweird.f32 %v2422
  %vm2429 = vweird.f32 %v2423
  %vm2430 = vmor %vm2428, %vm2429
  %v2431 = vsel %vm2430, %v2423, %v2427
  %v2432 = vand.u32 2147483647, %v2422
  %vm2433 = vcmp.eq.f32.partialorder %v2432, 8.507059e+37
  %v2434 = vand.u32 %v2422, 2147483648
  %v2435 = vor.u32 1.1754944e-38, %v2434
  %v2436 = vsel %vm2433, %v2435, %v2431
  %v2437 = vmul.f32 1.0, %v2436
  %v2438 = vxor.u32 %v2416, 2147483648
  %v2439 = vmul.f32 %v2438, 1.442695
  %v2440 = vpow.pop %v2439
  %v2441 = vadd.f32 %v2440, 1.0
  %v2442 = vrcp.pop %v2441
  %v2443 = vmul.f32 %v2441, %v2442
  %v2444 = vsub.f32 1.0, %v2443
  %v2445 = vmul.f32 %v2442, %v2444
  %v2446 = vadd.f32 %v2442, %v2445
  %vm2447 = vweird.f32 %v2441
  %vm2448 = vweird.f32 %v2442
  %vm2449 = vmor %vm2447, %vm2448
  %v2450 = vsel %vm2449, %v2442, %v2446
  %v2451 = vand.u32 2147483647, %v2441
  %vm2452 = vcmp.eq.f32.partialorder %v2451, 8.507059e+37
  %v2453 = vand.u32 %v2441, 2147483648
  %v2454 = vor.u32 1.1754944e-38, %v2453
  %v2455 = vsel %vm2452, %v2454, %v2450
  %v2456 = vmul.f32 1.0, %v2455
  %v2457 = vtanh.pop %v2417
  %v2458 = vxor.u32 %v2418, 2147483648
  %v2459 = vmul.f32 %v2458, 1.442695
  %v2460 = vpow.pop %v2459
  %v2461 = vadd.f32 %v2460, 1.0
  %v2462 = vrcp.pop %v2461
  %v2463 = vmul.f32 %v2461, %v2462
  %v2464 = vsub.f32 1.0, %v2463
  %v2465 = vmul.f32 %v2462, %v2464
  %v2466 = vadd.f32 %v2462, %v2465
  %vm2467 = vweird.f32 %v2461
  %vm2468 = vweird.f32 %v2462
  %vm2469 = vmor %vm2467, %vm2468
  %v2470 = vsel %vm2469, %v2462, %v2466
  %v2471 = vand.u32 2147483647, %v2461
  %vm2472 = vcmp.eq.f32.partialorder %v2471, 8.507059e+37
  %v2473 = vand.u32 %v2461, 2147483648
  %v2474 = vor.u32 1.1754944e-38, %v2473
  %v2475 = vsel %vm2472, %v2474, %v2470
  %v2476 = vmul.f32 1.0, %v2475
  %v2477 = vmul.f32 %v2456, 0.0
  %v2478 = vmul.f32 %v2437, %v2457
  %v2479 = vadd.f32 %v2477, %v2478
  %v2480 = vtanh.pop %v2479
  %v2481 = vmul.f32 %v2476, %v2480
  %2482 = vst [vmem:[#allocation2] sm:$0xff] %v2481
  %v2483 = vld [vmem:[%s637] sm:$0xff]
  %v2484 = vld [vmem:[%s637 + $0x8] sm:$0xff]
  %v2485 = vld [vmem:[%s637 + $0x10] sm:$0xff]
  %v2486 = vld [vmem:[%s637 + $0x18] sm:$0xff]
  %2487 = vmatpush.msra.mxu0 %v2327
  %2488 = vmatpush.msra.mxu0 %v2323
  %2489 = vmatpush.msra.mxu0 %v2319
  %2490 = vmatpush.msra.mxu0 %v2315
  %2491 = vmatpush.msra.mxu0 %v2311
  %2492 = vmatpush.msra.mxu0 %v2307
  %2493 = vmatpush.msra.mxu0 %v2303
  %2494 = vmatpush.msra.mxu0 %v2299
  %2495 = vmatpush.msra.mxu0 %v2295
  %2496 = vmatpush.msra.mxu0 %v2291
  %2497 = vmatpush.msra.mxu0 %v2287
  %2498 = vmatpush.msra.mxu0 %v2283
  %2499 = vmatpush.msra.mxu0 %v2279
  %2500 = vmatpush.msra.mxu0 %v2275
  %2501 = vmatpush.msra.mxu0 %v2271
  %2502 = vmatpush.msra.mxu0 %v2267
  %2503 = vmatmul.f32.gmra.mxu0 %v2481
  %v2504 = vpop.f32.mrf.mxu0
  %v2505 = vadd.f32 0.0, %v2504
  %2506 = vdwg.mxu0
  %2507 = vmatpush.msra.mxu0 %v2328
  %2508 = vmatpush.msra.mxu0 %v2324
  %2509 = vmatpush.msra.mxu0 %v2320
  %2510 = vmatpush.msra.mxu0 %v2316
  %2511 = vmatpush.msra.mxu0 %v2312
  %2512 = vmatpush.msra.mxu0 %v2308
  %2513 = vmatpush.msra.mxu0 %v2304
  %2514 = vmatpush.msra.mxu0 %v2300
  %2515 = vmatpush.msra.mxu0 %v2296
  %2516 = vmatpush.msra.mxu0 %v2292
  %2517 = vmatpush.msra.mxu0 %v2288
  %2518 = vmatpush.msra.mxu0 %v2284
  %2519 = vmatpush.msra.mxu0 %v2280
  %2520 = vmatpush.msra.mxu0 %v2276
  %2521 = vmatpush.msra.mxu0 %v2272
  %2522 = vmatpush.msra.mxu0 %v2268
  %2523 = vmatmul.f32.gmra.mxu0 %v2481
  %v2524 = vpop.f32.mrf.mxu0
  %v2525 = vadd.f32 0.0, %v2524
  %2526 = vdwg.mxu0
  %2527 = vmatpush.msra.mxu0 %v2329
  %2528 = vmatpush.msra.mxu0 %v2325
  %2529 = vmatpush.msra.mxu0 %v2321
  %2530 = vmatpush.msra.mxu0 %v2317
  %2531 = vmatpush.msra.mxu0 %v2313
  %2532 = vmatpush.msra.mxu0 %v2309
  %2533 = vmatpush.msra.mxu0 %v2305
  %2534 = vmatpush.msra.mxu0 %v2301
  %2535 = vmatpush.msra.mxu0 %v2297
  %2536 = vmatpush.msra.mxu0 %v2293
  %2537 = vmatpush.msra.mxu0 %v2289
  %2538 = vmatpush.msra.mxu0 %v2285
  %2539 = vmatpush.msra.mxu0 %v2281
  %2540 = vmatpush.msra.mxu0 %v2277
  %2541 = vmatpush.msra.mxu0 %v2273
  %2542 = vmatpush.msra.mxu0 %v2269
  %2543 = vmatmul.f32.gmra.mxu0 %v2481
  %v2544 = vpop.f32.mrf.mxu0
  %v2545 = vadd.f32 0.0, %v2544
  %2546 = vdwg.mxu0
  %2547 = vmatpush.msra.mxu0 %v2330
  %2548 = vmatpush.msra.mxu0 %v2326
  %2549 = vmatpush.msra.mxu0 %v2322
  %2550 = vmatpush.msra.mxu0 %v2318
  %2551 = vmatpush.msra.mxu0 %v2314
  %2552 = vmatpush.msra.mxu0 %v2310
  %2553 = vmatpush.msra.mxu0 %v2306
  %2554 = vmatpush.msra.mxu0 %v2302
  %2555 = vmatpush.msra.mxu0 %v2298
  %2556 = vmatpush.msra.mxu0 %v2294
  %2557 = vmatpush.msra.mxu0 %v2290
  %2558 = vmatpush.msra.mxu0 %v2286
  %2559 = vmatpush.msra.mxu0 %v2282
  %2560 = vmatpush.msra.mxu0 %v2278
  %2561 = vmatpush.msra.mxu0 %v2274
  %2562 = vmatpush.msra.mxu0 %v2270
  %2563 = vmatmul.f32.gmra.mxu0 %v2481
  %v2564 = vpop.f32.mrf.mxu0
  %v2565 = vadd.f32 0.0, %v2564
  %2566 = vdwg.mxu0
  %v2567 = vadd.f32 %v2483, %v2505
  %v2568 = vadd.f32 %v2484, %v2525
  %v2569 = vadd.f32 %v2485, %v2545
  %v2570 = vadd.f32 %v2486, %v2565
  %v2571 = vxor.u32 %v2567, 2147483648
  %v2572 = vmul.f32 %v2571, 1.442695
  %v2573 = vpow.pop %v2572
  %v2574 = vadd.f32 %v2573, 1.0
  %v2575 = vrcp.pop %v2574
  %v2576 = vmul.f32 %v2574, %v2575
  %v2577 = vsub.f32 1.0, %v2576
  %v2578 = vmul.f32 %v2575, %v2577
  %v2579 = vadd.f32 %v2575, %v2578
  %vm2580 = vweird.f32 %v2574
  %vm2581 = vweird.f32 %v2575
  %vm2582 = vmor %vm2580, %vm2581
  %v2583 = vsel %vm2582, %v2575, %v2579
  %v2584 = vand.u32 2147483647, %v2574
  %vm2585 = vcmp.eq.f32.partialorder %v2584, 8.507059e+37
  %v2586 = vand.u32 %v2574, 2147483648
  %v2587 = vor.u32 1.1754944e-38, %v2586
  %v2588 = vsel %vm2585, %v2587, %v2583
  %v2589 = vmul.f32 1.0, %v2588
  %v2590 = vxor.u32 %v2568, 2147483648
  %v2591 = vmul.f32 %v2590, 1.442695
  %v2592 = vpow.pop %v2591
  %v2593 = vadd.f32 %v2592, 1.0
  %v2594 = vrcp.pop %v2593
  %v2595 = vmul.f32 %v2593, %v2594
  %v2596 = vsub.f32 1.0, %v2595
  %v2597 = vmul.f32 %v2594, %v2596
  %v2598 = vadd.f32 %v2594, %v2597
  %vm2599 = vweird.f32 %v2593
  %vm2600 = vweird.f32 %v2594
  %vm2601 = vmor %vm2599, %vm2600
  %v2602 = vsel %vm2601, %v2594, %v2598
  %v2603 = vand.u32 2147483647, %v2593
  %vm2604 = vcmp.eq.f32.partialorder %v2603, 8.507059e+37
  %v2605 = vand.u32 %v2593, 2147483648
  %v2606 = vor.u32 1.1754944e-38, %v2605
  %v2607 = vsel %vm2604, %v2606, %v2602
  %v2608 = vmul.f32 1.0, %v2607
  %v2609 = vtanh.pop %v2569
  %v2610 = vxor.u32 %v2570, 2147483648
  %v2611 = vmul.f32 %v2610, 1.442695
  %v2612 = vpow.pop %v2611
  %v2613 = vadd.f32 %v2612, 1.0
  %v2614 = vrcp.pop %v2613
  %v2615 = vmul.f32 %v2613, %v2614
  %v2616 = vsub.f32 1.0, %v2615
  %v2617 = vmul.f32 %v2614, %v2616
  %v2618 = vadd.f32 %v2614, %v2617
  %vm2619 = vweird.f32 %v2613
  %vm2620 = vweird.f32 %v2614
  %vm2621 = vmor %vm2619, %vm2620
  %v2622 = vsel %vm2621, %v2614, %v2618
  %v2623 = vand.u32 2147483647, %v2613
  %vm2624 = vcmp.eq.f32.partialorder %v2623, 8.507059e+37
  %v2625 = vand.u32 %v2613, 2147483648
  %v2626 = vor.u32 1.1754944e-38, %v2625
  %v2627 = vsel %vm2624, %v2626, %v2622
  %v2628 = vmul.f32 1.0, %v2627
  %v2629 = vmul.f32 %v2608, %v2479
  %v2630 = vmul.f32 %v2589, %v2609
  %v2631 = vadd.f32 %v2629, %v2630
  %v2632 = vtanh.pop %v2631
  %v2633 = vmul.f32 %v2628, %v2632
  %2634 = vst [vmem:[%s789] sm:$0xff] %v2633
  %v2635 = vld [vmem:[%s793] sm:$0xff]
  %v2636 = vld [vmem:[%s793 + $0x8] sm:$0xff]
  %v2637 = vld [vmem:[%s793 + $0x10] sm:$0xff]
  %v2638 = vld [vmem:[%s793 + $0x18] sm:$0xff]
  %2639 = vmatpush.msra.mxu0 %v2327
  %2640 = vmatpush.msra.mxu0 %v2323
  %2641 = vmatpush.msra.mxu0 %v2319
  %2642 = vmatpush.msra.mxu0 %v2315
  %2643 = vmatpush.msra.mxu0 %v2311
  %2644 = vmatpush.msra.mxu0 %v2307
  %2645 = vmatpush.msra.mxu0 %v2303
  %2646 = vmatpush.msra.mxu0 %v2299
  %2647 = vmatpush.msra.mxu0 %v2295
  %2648 = vmatpush.msra.mxu0 %v2291
  %2649 = vmatpush.msra.mxu0 %v2287
  %2650 = vmatpush.msra.mxu0 %v2283
  %2651 = vmatpush.msra.mxu0 %v2279
  %2652 = vmatpush.msra.mxu0 %v2275
  %2653 = vmatpush.msra.mxu0 %v2271
  %2654 = vmatpush.msra.mxu0 %v2267
  %2655 = vmatmul.f32.gmra.mxu0 %v2633
  %v2656 = vpop.f32.mrf.mxu0
  %v2657 = vadd.f32 0.0, %v2656
  %2658 = vdwg.mxu0
  %2659 = vmatpush.msra.mxu0 %v2328
  %2660 = vmatpush.msra.mxu0 %v2324
  %2661 = vmatpush.msra.mxu0 %v2320
  %2662 = vmatpush.msra.mxu0 %v2316
  %2663 = vmatpush.msra.mxu0 %v2312
  %2664 = vmatpush.msra.mxu0 %v2308
  %2665 = vmatpush.msra.mxu0 %v2304
  %2666 = vmatpush.msra.mxu0 %v2300
  %2667 = vmatpush.msra.mxu0 %v2296
  %2668 = vmatpush.msra.mxu0 %v2292
  %2669 = vmatpush.msra.mxu0 %v2288
  %2670 = vmatpush.msra.mxu0 %v2284
  %2671 = vmatpush.msra.mxu0 %v2280
  %2672 = vmatpush.msra.mxu0 %v2276
  %2673 = vmatpush.msra.mxu0 %v2272
  %2674 = vmatpush.msra.mxu0 %v2268
  %2675 = vmatmul.f32.gmra.mxu0 %v2633
  %v2676 = vpop.f32.mrf.mxu0
  %v2677 = vadd.f32 0.0, %v2676
  %2678 = vdwg.mxu0
  %2679 = vmatpush.msra.mxu0 %v2329
  %2680 = vmatpush.msra.mxu0 %v2325
  %2681 = vmatpush.msra.mxu0 %v2321
  %2682 = vmatpush.msra.mxu0 %v2317
  %2683 = vmatpush.msra.mxu0 %v2313
  %2684 = vmatpush.msra.mxu0 %v2309
  %2685 = vmatpush.msra.mxu0 %v2305
  %2686 = vmatpush.msra.mxu0 %v2301
  %2687 = vmatpush.msra.mxu0 %v2297
  %2688 = vmatpush.msra.mxu0 %v2293
  %2689 = vmatpush.msra.mxu0 %v2289
  %2690 = vmatpush.msra.mxu0 %v2285
  %2691 = vmatpush.msra.mxu0 %v2281
  %2692 = vmatpush.msra.mxu0 %v2277
  %2693 = vmatpush.msra.mxu0 %v2273
  %2694 = vmatpush.msra.mxu0 %v2269
  %2695 = vmatmul.f32.gmra.mxu0 %v2633
  %v2696 = vpop.f32.mrf.mxu0
  %v2697 = vadd.f32 0.0, %v2696
  %2698 = vdwg.mxu0
  %2699 = vmatpush.msra.mxu0 %v2330
  %2700 = vmatpush.msra.mxu0 %v2326
  %2701 = vmatpush.msra.mxu0 %v2322
  %2702 = vmatpush.msra.mxu0 %v2318
  %2703 = vmatpush.msra.mxu0 %v2314
  %2704 = vmatpush.msra.mxu0 %v2310
  %2705 = vmatpush.msra.mxu0 %v2306
  %2706 = vmatpush.msra.mxu0 %v2302
  %2707 = vmatpush.msra.mxu0 %v2298
  %2708 = vmatpush.msra.mxu0 %v2294
  %2709 = vmatpush.msra.mxu0 %v2290
  %2710 = vmatpush.msra.mxu0 %v2286
  %2711 = vmatpush.msra.mxu0 %v2282
  %2712 = vmatpush.msra.mxu0 %v2278
  %2713 = vmatpush.msra.mxu0 %v2274
  %2714 = vmatpush.msra.mxu0 %v2270
  %2715 = vmatmul.f32.gmra.mxu0 %v2633
  %v2716 = vpop.f32.mrf.mxu0
  %v2717 = vadd.f32 0.0, %v2716
  %2718 = vdwg.mxu0
  %v2719 = vadd.f32 %v2635, %v2657
  %v2720 = vadd.f32 %v2636, %v2677
  %v2721 = vadd.f32 %v2637, %v2697
  %v2722 = vadd.f32 %v2638, %v2717
  %v2723 = vxor.u32 %v2719, 2147483648
  %v2724 = vmul.f32 %v2723, 1.442695
  %v2725 = vpow.pop %v2724
  %v2726 = vadd.f32 %v2725, 1.0
  %v2727 = vrcp.pop %v2726
  %v2728 = vmul.f32 %v2726, %v2727
  %v2729 = vsub.f32 1.0, %v2728
  %v2730 = vmul.f32 %v2727, %v2729
  %v2731 = vadd.f32 %v2727, %v2730
  %vm2732 = vweird.f32 %v2726
  %vm2733 = vweird.f32 %v2727
  %vm2734 = vmor %vm2732, %vm2733
  %v2735 = vsel %vm2734, %v2727, %v2731
  %v2736 = vand.u32 2147483647, %v2726
  %vm2737 = vcmp.eq.f32.partialorder %v2736, 8.507059e+37
  %v2738 = vand.u32 %v2726, 2147483648
  %v2739 = vor.u32 1.1754944e-38, %v2738
  %v2740 = vsel %vm2737, %v2739, %v2735
  %v2741 = vmul.f32 1.0, %v2740
  %v2742 = vxor.u32 %v2720, 2147483648
  %v2743 = vmul.f32 %v2742, 1.442695
  %v2744 = vpow.pop %v2743
  %v2745 = vadd.f32 %v2744, 1.0
  %v2746 = vrcp.pop %v2745
  %v2747 = vmul.f32 %v2745, %v2746
  %v2748 = vsub.f32 1.0, %v2747
  %v2749 = vmul.f32 %v2746, %v2748
  %v2750 = vadd.f32 %v2746, %v2749
  %vm2751 = vweird.f32 %v2745
  %vm2752 = vweird.f32 %v2746
  %vm2753 = vmor %vm2751, %vm2752
  %v2754 = vsel %vm2753, %v2746, %v2750
  %v2755 = vand.u32 2147483647, %v2745
  %vm2756 = vcmp.eq.f32.partialorder %v2755, 8.507059e+37
  %v2757 = vand.u32 %v2745, 2147483648
  %v2758 = vor.u32 1.1754944e-38, %v2757
  %v2759 = vsel %vm2756, %v2758, %v2754
  %v2760 = vmul.f32 1.0, %v2759
  %v2761 = vtanh.pop %v2721
  %v2762 = vxor.u32 %v2722, 2147483648
  %v2763 = vmul.f32 %v2762, 1.442695
  %v2764 = vpow.pop %v2763
  %v2765 = vadd.f32 %v2764, 1.0
  %v2766 = vrcp.pop %v2765
  %v2767 = vmul.f32 %v2765, %v2766
  %v2768 = vsub.f32 1.0, %v2767
  %v2769 = vmul.f32 %v2766, %v2768
  %v2770 = vadd.f32 %v2766, %v2769
  %vm2771 = vweird.f32 %v2765
  %vm2772 = vweird.f32 %v2766
  %vm2773 = vmor %vm2771, %vm2772
  %v2774 = vsel %vm2773, %v2766, %v2770
  %v2775 = vand.u32 2147483647, %v2765
  %vm2776 = vcmp.eq.f32.partialorder %v2775, 8.507059e+37
  %v2777 = vand.u32 %v2765, 2147483648
  %v2778 = vor.u32 1.1754944e-38, %v2777
  %v2779 = vsel %vm2776, %v2778, %v2774
  %v2780 = vmul.f32 1.0, %v2779
  %v2781 = vmul.f32 %v2760, %v2631
  %v2782 = vmul.f32 %v2741, %v2761
  %v2783 = vadd.f32 %v2781, %v2782
  %v2784 = vtanh.pop %v2783
  %v2785 = vmul.f32 %v2780, %v2784
  %2786 = vst [vmem:[%s945] sm:$0xff] %v2785
  %v2787 = vld [vmem:[%s949] sm:$0xff]
  %v2788 = vld [vmem:[%s949 + $0x8] sm:$0xff]
  %v2789 = vld [vmem:[%s949 + $0x10] sm:$0xff]
  %v2790 = vld [vmem:[%s949 + $0x18] sm:$0xff]
  %2791 = vmatpush.msra.mxu0 %v2327
  %2792 = vmatpush.msra.mxu0 %v2323
  %2793 = vmatpush.msra.mxu0 %v2319
  %2794 = vmatpush.msra.mxu0 %v2315
  %2795 = vmatpush.msra.mxu0 %v2311
  %2796 = vmatpush.msra.mxu0 %v2307
  %2797 = vmatpush.msra.mxu0 %v2303
  %2798 = vmatpush.msra.mxu0 %v2299
  %2799 = vmatpush.msra.mxu0 %v2295
  %2800 = vmatpush.msra.mxu0 %v2291
  %2801 = vmatpush.msra.mxu0 %v2287
  %2802 = vmatpush.msra.mxu0 %v2283
  %2803 = vmatpush.msra.mxu0 %v2279
  %2804 = vmatpush.msra.mxu0 %v2275
  %2805 = vmatpush.msra.mxu0 %v2271
  %2806 = vmatpush.msra.mxu0 %v2267
  %2807 = vmatmul.f32.gmra.mxu0 %v2785
  %v2808 = vpop.f32.mrf.mxu0
  %v2809 = vadd.f32 0.0, %v2808
  %2810 = vdwg.mxu0
  %2811 = vmatpush.msra.mxu0 %v2328
  %2812 = vmatpush.msra.mxu0 %v2324
  %2813 = vmatpush.msra.mxu0 %v2320
  %2814 = vmatpush.msra.mxu0 %v2316
  %2815 = vmatpush.msra.mxu0 %v2312
  %2816 = vmatpush.msra.mxu0 %v2308
  %2817 = vmatpush.msra.mxu0 %v2304
  %2818 = vmatpush.msra.mxu0 %v2300
  %2819 = vmatpush.msra.mxu0 %v2296
  %2820 = vmatpush.msra.mxu0 %v2292
  %2821 = vmatpush.msra.mxu0 %v2288
  %2822 = vmatpush.msra.mxu0 %v2284
  %2823 = vmatpush.msra.mxu0 %v2280
  %2824 = vmatpush.msra.mxu0 %v2276
  %2825 = vmatpush.msra.mxu0 %v2272
  %2826 = vmatpush.msra.mxu0 %v2268
  %2827 = vmatmul.f32.gmra.mxu0 %v2785
  %v2828 = vpop.f32.mrf.mxu0
  %v2829 = vadd.f32 0.0, %v2828
  %2830 = vdwg.mxu0
  %2831 = vmatpush.msra.mxu0 %v2329
  %2832 = vmatpush.msra.mxu0 %v2325
  %2833 = vmatpush.msra.mxu0 %v2321
  %2834 = vmatpush.msra.mxu0 %v2317
  %2835 = vmatpush.msra.mxu0 %v2313
  %2836 = vmatpush.msra.mxu0 %v2309
  %2837 = vmatpush.msra.mxu0 %v2305
  %2838 = vmatpush.msra.mxu0 %v2301
  %2839 = vmatpush.msra.mxu0 %v2297
  %2840 = vmatpush.msra.mxu0 %v2293
  %2841 = vmatpush.msra.mxu0 %v2289
  %2842 = vmatpush.msra.mxu0 %v2285
  %2843 = vmatpush.msra.mxu0 %v2281
  %2844 = vmatpush.msra.mxu0 %v2277
  %2845 = vmatpush.msra.mxu0 %v2273
  %2846 = vmatpush.msra.mxu0 %v2269
  %2847 = vmatmul.f32.gmra.mxu0 %v2785
  %v2848 = vpop.f32.mrf.mxu0
  %v2849 = vadd.f32 0.0, %v2848
  %2850 = vdwg.mxu0
  %2851 = vmatpush.msra.mxu0 %v2330
  %2852 = vmatpush.msra.mxu0 %v2326
  %2853 = vmatpush.msra.mxu0 %v2322
  %2854 = vmatpush.msra.mxu0 %v2318
  %2855 = vmatpush.msra.mxu0 %v2314
  %2856 = vmatpush.msra.mxu0 %v2310
  %2857 = vmatpush.msra.mxu0 %v2306
  %2858 = vmatpush.msra.mxu0 %v2302
  %2859 = vmatpush.msra.mxu0 %v2298
  %2860 = vmatpush.msra.mxu0 %v2294
  %2861 = vmatpush.msra.mxu0 %v2290
  %2862 = vmatpush.msra.mxu0 %v2286
  %2863 = vmatpush.msra.mxu0 %v2282
  %2864 = vmatpush.msra.mxu0 %v2278
  %2865 = vmatpush.msra.mxu0 %v2274
  %2866 = vmatpush.msra.mxu0 %v2270
  %2867 = vmatmul.f32.gmra.mxu0 %v2785
  %v2868 = vpop.f32.mrf.mxu0
  %v2869 = vadd.f32 0.0, %v2868
  %2870 = vdwg.mxu0
  %v2871 = vadd.f32 %v2787, %v2809
  %v2872 = vadd.f32 %v2788, %v2829
  %v2873 = vadd.f32 %v2789, %v2849
  %v2874 = vadd.f32 %v2790, %v2869
  %v2875 = vxor.u32 %v2871, 2147483648
  %v2876 = vmul.f32 %v2875, 1.442695
  %v2877 = vpow.pop %v2876
  %v2878 = vadd.f32 %v2877, 1.0
  %v2879 = vrcp.pop %v2878
  %v2880 = vmul.f32 %v2878, %v2879
  %v2881 = vsub.f32 1.0, %v2880
  %v2882 = vmul.f32 %v2879, %v2881
  %v2883 = vadd.f32 %v2879, %v2882
  %vm2884 = vweird.f32 %v2878
  %vm2885 = vweird.f32 %v2879
  %vm2886 = vmor %vm2884, %vm2885
  %v2887 = vsel %vm2886, %v2879, %v2883
  %v2888 = vand.u32 2147483647, %v2878
  %vm2889 = vcmp.eq.f32.partialorder %v2888, 8.507059e+37
  %v2890 = vand.u32 %v2878, 2147483648
  %v2891 = vor.u32 1.1754944e-38, %v2890
  %v2892 = vsel %vm2889, %v2891, %v2887
  %v2893 = vmul.f32 1.0, %v2892
  %v2894 = vxor.u32 %v2872, 2147483648
  %v2895 = vmul.f32 %v2894, 1.442695
  %v2896 = vpow.pop %v2895
  %v2897 = vadd.f32 %v2896, 1.0
  %v2898 = vrcp.pop %v2897
  %v2899 = vmul.f32 %v2897, %v2898
  %v2900 = vsub.f32 1.0, %v2899
  %v2901 = vmul.f32 %v2898, %v2900
  %v2902 = vadd.f32 %v2898, %v2901
  %vm2903 = vweird.f32 %v2897
  %vm2904 = vweird.f32 %v2898
  %vm2905 = vmor %vm2903, %vm2904
  %v2906 = vsel %vm2905, %v2898, %v2902
  %v2907 = vand.u32 2147483647, %v2897
  %vm2908 = vcmp.eq.f32.partialorder %v2907, 8.507059e+37
  %v2909 = vand.u32 %v2897, 2147483648
  %v2910 = vor.u32 1.1754944e-38, %v2909
  %v2911 = vsel %vm2908, %v2910, %v2906
  %v2912 = vmul.f32 1.0, %v2911
  %v2913 = vtanh.pop %v2873
  %v2914 = vxor.u32 %v2874, 2147483648
  %v2915 = vmul.f32 %v2914, 1.442695
  %v2916 = vpow.pop %v2915
  %v2917 = vadd.f32 %v2916, 1.0
  %v2918 = vrcp.pop %v2917
  %v2919 = vmul.f32 %v2917, %v2918
  %v2920 = vsub.f32 1.0, %v2919
  %v2921 = vmul.f32 %v2918, %v2920
  %v2922 = vadd.f32 %v2918, %v2921
  %vm2923 = vweird.f32 %v2917
  %vm2924 = vweird.f32 %v2918
  %vm2925 = vmor %vm2923, %vm2924
  %v2926 = vsel %vm2925, %v2918, %v2922
  %v2927 = vand.u32 2147483647, %v2917
  %vm2928 = vcmp.eq.f32.partialorder %v2927, 8.507059e+37
  %v2929 = vand.u32 %v2917, 2147483648
  %v2930 = vor.u32 1.1754944e-38, %v2929
  %v2931 = vsel %vm2928, %v2930, %v2926
  %v2932 = vmul.f32 1.0, %v2931
  %v2933 = vmul.f32 %v2912, %v2783
  %v2934 = vmul.f32 %v2893, %v2913
  %v2935 = vadd.f32 %v2933, %v2934
  %v2936 = vtanh.pop %v2935
  %v2937 = vmul.f32 %v2932, %v2936
  %2938 = vst [vmem:[%s1101] sm:$0xff] %v2937
  %v2939 = vld [vmem:[%s1105] sm:$0xff]
  %v2940 = vld [vmem:[%s1105 + $0x8] sm:$0xff]
  %v2941 = vld [vmem:[%s1105 + $0x10] sm:$0xff]
  %v2942 = vld [vmem:[%s1105 + $0x18] sm:$0xff]
  %2943 = vmatpush.msra.mxu0 %v2327
  %2944 = vmatpush.msra.mxu0 %v2323
  %2945 = vmatpush.msra.mxu0 %v2319
  %2946 = vmatpush.msra.mxu0 %v2315
  %2947 = vmatpush.msra.mxu0 %v2311
  %2948 = vmatpush.msra.mxu0 %v2307
  %2949 = vmatpush.msra.mxu0 %v2303
  %2950 = vmatpush.msra.mxu0 %v2299
  %2951 = vmatpush.msra.mxu0 %v2295
  %2952 = vmatpush.msra.mxu0 %v2291
  %2953 = vmatpush.msra.mxu0 %v2287
  %2954 = vmatpush.msra.mxu0 %v2283
  %2955 = vmatpush.msra.mxu0 %v2279
  %2956 = vmatpush.msra.mxu0 %v2275
  %2957 = vmatpush.msra.mxu0 %v2271
  %2958 = vmatpush.msra.mxu0 %v2267
  %2959 = vmatmul.f32.gmra.mxu0 %v2937
  %v2960 = vpop.f32.mrf.mxu0
  %v2961 = vadd.f32 0.0, %v2960
  %2962 = vdwg.mxu0
  %2963 = vmatpush.msra.mxu0 %v2328
  %2964 = vmatpush.msra.mxu0 %v2324
  %2965 = vmatpush.msra.mxu0 %v2320
  %2966 = vmatpush.msra.mxu0 %v2316
  %2967 = vmatpush.msra.mxu0 %v2312
  %2968 = vmatpush.msra.mxu0 %v2308
  %2969 = vmatpush.msra.mxu0 %v2304
  %2970 = vmatpush.msra.mxu0 %v2300
  %2971 = vmatpush.msra.mxu0 %v2296
  %2972 = vmatpush.msra.mxu0 %v2292
  %2973 = vmatpush.msra.mxu0 %v2288
  %2974 = vmatpush.msra.mxu0 %v2284
  %2975 = vmatpush.msra.mxu0 %v2280
  %2976 = vmatpush.msra.mxu0 %v2276
  %2977 = vmatpush.msra.mxu0 %v2272
  %2978 = vmatpush.msra.mxu0 %v2268
  %2979 = vmatmul.f32.gmra.mxu0 %v2937
  %v2980 = vpop.f32.mrf.mxu0
  %v2981 = vadd.f32 0.0, %v2980
  %2982 = vdwg.mxu0
  %2983 = vmatpush.msra.mxu0 %v2329
  %2984 = vmatpush.msra.mxu0 %v2325
  %2985 = vmatpush.msra.mxu0 %v2321
  %2986 = vmatpush.msra.mxu0 %v2317
  %2987 = vmatpush.msra.mxu0 %v2313
  %2988 = vmatpush.msra.mxu0 %v2309
  %2989 = vmatpush.msra.mxu0 %v2305
  %2990 = vmatpush.msra.mxu0 %v2301
  %2991 = vmatpush.msra.mxu0 %v2297
  %2992 = vmatpush.msra.mxu0 %v2293
  %2993 = vmatpush.msra.mxu0 %v2289
  %2994 = vmatpush.msra.mxu0 %v2285
  %2995 = vmatpush.msra.mxu0 %v2281
  %2996 = vmatpush.msra.mxu0 %v2277
  %2997 = vmatpush.msra.mxu0 %v2273
  %2998 = vmatpush.msra.mxu0 %v2269
  %2999 = vmatmul.f32.gmra.mxu0 %v2937
  %v3000 = vpop.f32.mrf.mxu0
  %v3001 = vadd.f32 0.0, %v3000
  %3002 = vdwg.mxu0
  %3003 = vmatpush.msra.mxu0 %v2330
  %3004 = vmatpush.msra.mxu0 %v2326
  %3005 = vmatpush.msra.mxu0 %v2322
  %3006 = vmatpush.msra.mxu0 %v2318
  %3007 = vmatpush.msra.mxu0 %v2314
  %3008 = vmatpush.msra.mxu0 %v2310
  %3009 = vmatpush.msra.mxu0 %v2306
  %3010 = vmatpush.msra.mxu0 %v2302
  %3011 = vmatpush.msra.mxu0 %v2298
  %3012 = vmatpush.msra.mxu0 %v2294
  %3013 = vmatpush.msra.mxu0 %v2290
  %3014 = vmatpush.msra.mxu0 %v2286
  %3015 = vmatpush.msra.mxu0 %v2282
  %3016 = vmatpush.msra.mxu0 %v2278
  %3017 = vmatpush.msra.mxu0 %v2274
  %3018 = vmatpush.msra.mxu0 %v2270
  %3019 = vmatmul.f32.gmra.mxu0 %v2937
  %v3020 = vpop.f32.mrf.mxu0
  %v3021 = vadd.f32 0.0, %v3020
  %3022 = vdwg.mxu0
  %v3023 = vadd.f32 %v2939, %v2961
  %v3024 = vadd.f32 %v2940, %v2981
  %v3025 = vadd.f32 %v2941, %v3001
  %v3026 = vadd.f32 %v2942, %v3021
  %v3027 = vxor.u32 %v3023, 2147483648
  %v3028 = vmul.f32 %v3027, 1.442695
  %v3029 = vpow.pop %v3028
  %v3030 = vadd.f32 %v3029, 1.0
  %v3031 = vrcp.pop %v3030
  %v3032 = vmul.f32 %v3030, %v3031
  %v3033 = vsub.f32 1.0, %v3032
  %v3034 = vmul.f32 %v3031, %v3033
  %v3035 = vadd.f32 %v3031, %v3034
  %vm3036 = vweird.f32 %v3030
  %vm3037 = vweird.f32 %v3031
  %vm3038 = vmor %vm3036, %vm3037
  %v3039 = vsel %vm3038, %v3031, %v3035
  %v3040 = vand.u32 2147483647, %v3030
  %vm3041 = vcmp.eq.f32.partialorder %v3040, 8.507059e+37
  %v3042 = vand.u32 %v3030, 2147483648
  %v3043 = vor.u32 1.1754944e-38, %v3042
  %v3044 = vsel %vm3041, %v3043, %v3039
  %v3045 = vmul.f32 1.0, %v3044
  %v3046 = vxor.u32 %v3024, 2147483648
  %v3047 = vmul.f32 %v3046, 1.442695
  %v3048 = vpow.pop %v3047
  %v3049 = vadd.f32 %v3048, 1.0
  %v3050 = vrcp.pop %v3049
  %v3051 = vmul.f32 %v3049, %v3050
  %v3052 = vsub.f32 1.0, %v3051
  %v3053 = vmul.f32 %v3050, %v3052
  %v3054 = vadd.f32 %v3050, %v3053
  %vm3055 = vweird.f32 %v3049
  %vm3056 = vweird.f32 %v3050
  %vm3057 = vmor %vm3055, %vm3056
  %v3058 = vsel %vm3057, %v3050, %v3054
  %v3059 = vand.u32 2147483647, %v3049
  %vm3060 = vcmp.eq.f32.partialorder %v3059, 8.507059e+37
  %v3061 = vand.u32 %v3049, 2147483648
  %v3062 = vor.u32 1.1754944e-38, %v3061
  %v3063 = vsel %vm3060, %v3062, %v3058
  %v3064 = vmul.f32 1.0, %v3063
  %v3065 = vtanh.pop %v3025
  %v3066 = vxor.u32 %v3026, 2147483648
  %v3067 = vmul.f32 %v3066, 1.442695
  %v3068 = vpow.pop %v3067
  %v3069 = vadd.f32 %v3068, 1.0
  %v3070 = vrcp.pop %v3069
  %v3071 = vmul.f32 %v3069, %v3070
  %v3072 = vsub.f32 1.0, %v3071
  %v3073 = vmul.f32 %v3070, %v3072
  %v3074 = vadd.f32 %v3070, %v3073
  %vm3075 = vweird.f32 %v3069
  %vm3076 = vweird.f32 %v3070
  %vm3077 = vmor %vm3075, %vm3076
  %v3078 = vsel %vm3077, %v3070, %v3074
  %v3079 = vand.u32 2147483647, %v3069
  %vm3080 = vcmp.eq.f32.partialorder %v3079, 8.507059e+37
  %v3081 = vand.u32 %v3069, 2147483648
  %v3082 = vor.u32 1.1754944e-38, %v3081
  %v3083 = vsel %vm3080, %v3082, %v3078
  %v3084 = vmul.f32 1.0, %v3083
  %v3085 = vmul.f32 %v3064, %v2935
  %v3086 = vmul.f32 %v3045, %v3065
  %v3087 = vadd.f32 %v3085, %v3086
  %v3088 = vtanh.pop %v3087
  %v3089 = vmul.f32 %v3084, %v3088
  %3090 = vst [vmem:[%s1257] sm:$0xff] %v3089
  %v3091 = vld [vmem:[%s1261] sm:$0xff]
  %v3092 = vld [vmem:[%s1261 + $0x8] sm:$0xff]
  %v3093 = vld [vmem:[%s1261 + $0x10] sm:$0xff]
  %v3094 = vld [vmem:[%s1261 + $0x18] sm:$0xff]
  %3095 = vmatpush.msra.mxu0 %v2327
  %3096 = vmatpush.msra.mxu0 %v2323
  %3097 = vmatpush.msra.mxu0 %v2319
  %3098 = vmatpush.msra.mxu0 %v2315
  %3099 = vmatpush.msra.mxu0 %v2311
  %3100 = vmatpush.msra.mxu0 %v2307
  %3101 = vmatpush.msra.mxu0 %v2303
  %3102 = vmatpush.msra.mxu0 %v2299
  %3103 = vmatpush.msra.mxu0 %v2295
  %3104 = vmatpush.msra.mxu0 %v2291
  %3105 = vmatpush.msra.mxu0 %v2287
  %3106 = vmatpush.msra.mxu0 %v2283
  %3107 = vmatpush.msra.mxu0 %v2279
  %3108 = vmatpush.msra.mxu0 %v2275
  %3109 = vmatpush.msra.mxu0 %v2271
  %3110 = vmatpush.msra.mxu0 %v2267
  %3111 = vmatmul.f32.gmra.mxu0 %v3089
  %v3112 = vpop.f32.mrf.mxu0
  %v3113 = vadd.f32 0.0, %v3112
  %3114 = vdwg.mxu0
  %3115 = vmatpush.msra.mxu0 %v2328
  %3116 = vmatpush.msra.mxu0 %v2324
  %3117 = vmatpush.msra.mxu0 %v2320
  %3118 = vmatpush.msra.mxu0 %v2316
  %3119 = vmatpush.msra.mxu0 %v2312
  %3120 = vmatpush.msra.mxu0 %v2308
  %3121 = vmatpush.msra.mxu0 %v2304
  %3122 = vmatpush.msra.mxu0 %v2300
  %3123 = vmatpush.msra.mxu0 %v2296
  %3124 = vmatpush.msra.mxu0 %v2292
  %3125 = vmatpush.msra.mxu0 %v2288
  %3126 = vmatpush.msra.mxu0 %v2284
  %3127 = vmatpush.msra.mxu0 %v2280
  %3128 = vmatpush.msra.mxu0 %v2276
  %3129 = vmatpush.msra.mxu0 %v2272
  %3130 = vmatpush.msra.mxu0 %v2268
  %3131 = vmatmul.f32.gmra.mxu0 %v3089
  %v3132 = vpop.f32.mrf.mxu0
  %v3133 = vadd.f32 0.0, %v3132
  %3134 = vdwg.mxu0
  %3135 = vmatpush.msra.mxu0 %v2329
  %3136 = vmatpush.msra.mxu0 %v2325
  %3137 = vmatpush.msra.mxu0 %v2321
  %3138 = vmatpush.msra.mxu0 %v2317
  %3139 = vmatpush.msra.mxu0 %v2313
  %3140 = vmatpush.msra.mxu0 %v2309
  %3141 = vmatpush.msra.mxu0 %v2305
  %3142 = vmatpush.msra.mxu0 %v2301
  %3143 = vmatpush.msra.mxu0 %v2297
  %3144 = vmatpush.msra.mxu0 %v2293
  %3145 = vmatpush.msra.mxu0 %v2289
  %3146 = vmatpush.msra.mxu0 %v2285
  %3147 = vmatpush.msra.mxu0 %v2281
  %3148 = vmatpush.msra.mxu0 %v2277
  %3149 = vmatpush.msra.mxu0 %v2273
  %3150 = vmatpush.msra.mxu0 %v2269
  %3151 = vmatmul.f32.gmra.mxu0 %v3089
  %v3152 = vpop.f32.mrf.mxu0
  %v3153 = vadd.f32 0.0, %v3152
  %3154 = vdwg.mxu0
  %3155 = vmatpush.msra.mxu0 %v2330
  %3156 = vmatpush.msra.mxu0 %v2326
  %3157 = vmatpush.msra.mxu0 %v2322
  %3158 = vmatpush.msra.mxu0 %v2318
  %3159 = vmatpush.msra.mxu0 %v2314
  %3160 = vmatpush.msra.mxu0 %v2310
  %3161 = vmatpush.msra.mxu0 %v2306
  %3162 = vmatpush.msra.mxu0 %v2302
  %3163 = vmatpush.msra.mxu0 %v2298
  %3164 = vmatpush.msra.mxu0 %v2294
  %3165 = vmatpush.msra.mxu0 %v2290
  %3166 = vmatpush.msra.mxu0 %v2286
  %3167 = vmatpush.msra.mxu0 %v2282
  %3168 = vmatpush.msra.mxu0 %v2278
  %3169 = vmatpush.msra.mxu0 %v2274
  %3170 = vmatpush.msra.mxu0 %v2270
  %3171 = vmatmul.f32.gmra.mxu0 %v3089
  %v3172 = vpop.f32.mrf.mxu0
  %v3173 = vadd.f32 0.0, %v3172
  %3174 = vdwg.mxu0
  %v3175 = vadd.f32 %v3091, %v3113
  %v3176 = vadd.f32 %v3092, %v3133
  %v3177 = vadd.f32 %v3093, %v3153
  %v3178 = vadd.f32 %v3094, %v3173
  %v3179 = vxor.u32 %v3175, 2147483648
  %v3180 = vmul.f32 %v3179, 1.442695
  %v3181 = vpow.pop %v3180
  %v3182 = vadd.f32 %v3181, 1.0
  %v3183 = vrcp.pop %v3182
  %v3184 = vmul.f32 %v3182, %v3183
  %v3185 = vsub.f32 1.0, %v3184
  %v3186 = vmul.f32 %v3183, %v3185
  %v3187 = vadd.f32 %v3183, %v3186
  %vm3188 = vweird.f32 %v3182
  %vm3189 = vweird.f32 %v3183
  %vm3190 = vmor %vm3188, %vm3189
  %v3191 = vsel %vm3190, %v3183, %v3187
  %v3192 = vand.u32 2147483647, %v3182
  %vm3193 = vcmp.eq.f32.partialorder %v3192, 8.507059e+37
  %v3194 = vand.u32 %v3182, 2147483648
  %v3195 = vor.u32 1.1754944e-38, %v3194
  %v3196 = vsel %vm3193, %v3195, %v3191
  %v3197 = vmul.f32 1.0, %v3196
  %v3198 = vxor.u32 %v3176, 2147483648
  %v3199 = vmul.f32 %v3198, 1.442695
  %v3200 = vpow.pop %v3199
  %v3201 = vadd.f32 %v3200, 1.0
  %v3202 = vrcp.pop %v3201
  %v3203 = vmul.f32 %v3201, %v3202
  %v3204 = vsub.f32 1.0, %v3203
  %v3205 = vmul.f32 %v3202, %v3204
  %v3206 = vadd.f32 %v3202, %v3205
  %vm3207 = vweird.f32 %v3201
  %vm3208 = vweird.f32 %v3202
  %vm3209 = vmor %vm3207, %vm3208
  %v3210 = vsel %vm3209, %v3202, %v3206
  %v3211 = vand.u32 2147483647, %v3201
  %vm3212 = vcmp.eq.f32.partialorder %v3211, 8.507059e+37
  %v3213 = vand.u32 %v3201, 2147483648
  %v3214 = vor.u32 1.1754944e-38, %v3213
  %v3215 = vsel %vm3212, %v3214, %v3210
  %v3216 = vmul.f32 1.0, %v3215
  %v3217 = vtanh.pop %v3177
  %v3218 = vxor.u32 %v3178, 2147483648
  %v3219 = vmul.f32 %v3218, 1.442695
  %v3220 = vpow.pop %v3219
  %v3221 = vadd.f32 %v3220, 1.0
  %v3222 = vrcp.pop %v3221
  %v3223 = vmul.f32 %v3221, %v3222
  %v3224 = vsub.f32 1.0, %v3223
  %v3225 = vmul.f32 %v3222, %v3224
  %v3226 = vadd.f32 %v3222, %v3225
  %vm3227 = vweird.f32 %v3221
  %vm3228 = vweird.f32 %v3222
  %vm3229 = vmor %vm3227, %vm3228
  %v3230 = vsel %vm3229, %v3222, %v3226
  %v3231 = vand.u32 2147483647, %v3221
  %vm3232 = vcmp.eq.f32.partialorder %v3231, 8.507059e+37
  %v3233 = vand.u32 %v3221, 2147483648
  %v3234 = vor.u32 1.1754944e-38, %v3233
  %v3235 = vsel %vm3232, %v3234, %v3230
  %v3236 = vmul.f32 1.0, %v3235
  %v3237 = vmul.f32 %v3216, %v3087
  %v3238 = vmul.f32 %v3197, %v3217
  %v3239 = vadd.f32 %v3237, %v3238
  %v3240 = vtanh.pop %v3239
  %v3241 = vmul.f32 %v3236, %v3240
  %3242 = vst [vmem:[%s1413] sm:$0xff] %v3241
  %v3243 = vld [vmem:[%s1417] sm:$0xff]
  %v3244 = vld [vmem:[%s1417 + $0x8] sm:$0xff]
  %v3245 = vld [vmem:[%s1417 + $0x10] sm:$0xff]
  %v3246 = vld [vmem:[%s1417 + $0x18] sm:$0xff]
  %3247 = vmatpush.msra.mxu0 %v2327
  %3248 = vmatpush.msra.mxu0 %v2323
  %3249 = vmatpush.msra.mxu0 %v2319
  %3250 = vmatpush.msra.mxu0 %v2315
  %3251 = vmatpush.msra.mxu0 %v2311
  %3252 = vmatpush.msra.mxu0 %v2307
  %3253 = vmatpush.msra.mxu0 %v2303
  %3254 = vmatpush.msra.mxu0 %v2299
  %3255 = vmatpush.msra.mxu0 %v2295
  %3256 = vmatpush.msra.mxu0 %v2291
  %3257 = vmatpush.msra.mxu0 %v2287
  %3258 = vmatpush.msra.mxu0 %v2283
  %3259 = vmatpush.msra.mxu0 %v2279
  %3260 = vmatpush.msra.mxu0 %v2275
  %3261 = vmatpush.msra.mxu0 %v2271
  %3262 = vmatpush.msra.mxu0 %v2267
  %3263 = vmatmul.f32.gmra.mxu0 %v3241
  %v3264 = vpop.f32.mrf.mxu0
  %v3265 = vadd.f32 0.0, %v3264
  %3266 = vdwg.mxu0
  %3267 = vmatpush.msra.mxu0 %v2328
  %3268 = vmatpush.msra.mxu0 %v2324
  %3269 = vmatpush.msra.mxu0 %v2320
  %3270 = vmatpush.msra.mxu0 %v2316
  %3271 = vmatpush.msra.mxu0 %v2312
  %3272 = vmatpush.msra.mxu0 %v2308
  %3273 = vmatpush.msra.mxu0 %v2304
  %3274 = vmatpush.msra.mxu0 %v2300
  %3275 = vmatpush.msra.mxu0 %v2296
  %3276 = vmatpush.msra.mxu0 %v2292
  %3277 = vmatpush.msra.mxu0 %v2288
  %3278 = vmatpush.msra.mxu0 %v2284
  %3279 = vmatpush.msra.mxu0 %v2280
  %3280 = vmatpush.msra.mxu0 %v2276
  %3281 = vmatpush.msra.mxu0 %v2272
  %3282 = vmatpush.msra.mxu0 %v2268
  %3283 = vmatmul.f32.gmra.mxu0 %v3241
  %v3284 = vpop.f32.mrf.mxu0
  %v3285 = vadd.f32 0.0, %v3284
  %3286 = vdwg.mxu0
  %3287 = vmatpush.msra.mxu0 %v2329
  %3288 = vmatpush.msra.mxu0 %v2325
  %3289 = vmatpush.msra.mxu0 %v2321
  %3290 = vmatpush.msra.mxu0 %v2317
  %3291 = vmatpush.msra.mxu0 %v2313
  %3292 = vmatpush.msra.mxu0 %v2309
  %3293 = vmatpush.msra.mxu0 %v2305
  %3294 = vmatpush.msra.mxu0 %v2301
  %3295 = vmatpush.msra.mxu0 %v2297
  %3296 = vmatpush.msra.mxu0 %v2293
  %3297 = vmatpush.msra.mxu0 %v2289
  %3298 = vmatpush.msra.mxu0 %v2285
  %3299 = vmatpush.msra.mxu0 %v2281
  %3300 = vmatpush.msra.mxu0 %v2277
  %3301 = vmatpush.msra.mxu0 %v2273
  %3302 = vmatpush.msra.mxu0 %v2269
  %3303 = vmatmul.f32.gmra.mxu0 %v3241
  %v3304 = vpop.f32.mrf.mxu0
  %v3305 = vadd.f32 0.0, %v3304
  %3306 = vdwg.mxu0
  %3307 = vmatpush.msra.mxu0 %v2330
  %3308 = vmatpush.msra.mxu0 %v2326
  %3309 = vmatpush.msra.mxu0 %v2322
  %3310 = vmatpush.msra.mxu0 %v2318
  %3311 = vmatpush.msra.mxu0 %v2314
  %3312 = vmatpush.msra.mxu0 %v2310
  %3313 = vmatpush.msra.mxu0 %v2306
  %3314 = vmatpush.msra.mxu0 %v2302
  %3315 = vmatpush.msra.mxu0 %v2298
  %3316 = vmatpush.msra.mxu0 %v2294
  %3317 = vmatpush.msra.mxu0 %v2290
  %3318 = vmatpush.msra.mxu0 %v2286
  %3319 = vmatpush.msra.mxu0 %v2282
  %3320 = vmatpush.msra.mxu0 %v2278
  %3321 = vmatpush.msra.mxu0 %v2274
  %3322 = vmatpush.msra.mxu0 %v2270
  %3323 = vmatmul.f32.gmra.mxu0 %v3241
  %v3324 = vpop.f32.mrf.mxu0
  %v3325 = vadd.f32 0.0, %v3324
  %3326 = vdwg.mxu0
  %v3327 = vadd.f32 %v3243, %v3265
  %v3328 = vadd.f32 %v3244, %v3285
  %v3329 = vadd.f32 %v3245, %v3305
  %v3330 = vadd.f32 %v3246, %v3325
  %v3331 = vxor.u32 %v3327, 2147483648
  %v3332 = vmul.f32 %v3331, 1.442695
  %v3333 = vpow.pop %v3332
  %v3334 = vadd.f32 %v3333, 1.0
  %v3335 = vrcp.pop %v3334
  %v3336 = vmul.f32 %v3334, %v3335
  %v3337 = vsub.f32 1.0, %v3336
  %v3338 = vmul.f32 %v3335, %v3337
  %v3339 = vadd.f32 %v3335, %v3338
  %vm3340 = vweird.f32 %v3334
  %vm3341 = vweird.f32 %v3335
  %vm3342 = vmor %vm3340, %vm3341
  %v3343 = vsel %vm3342, %v3335, %v3339
  %v3344 = vand.u32 2147483647, %v3334
  %vm3345 = vcmp.eq.f32.partialorder %v3344, 8.507059e+37
  %v3346 = vand.u32 %v3334, 2147483648
  %v3347 = vor.u32 1.1754944e-38, %v3346
  %v3348 = vsel %vm3345, %v3347, %v3343
  %v3349 = vmul.f32 1.0, %v3348
  %v3350 = vxor.u32 %v3328, 2147483648
  %v3351 = vmul.f32 %v3350, 1.442695
  %v3352 = vpow.pop %v3351
  %v3353 = vadd.f32 %v3352, 1.0
  %v3354 = vrcp.pop %v3353
  %v3355 = vmul.f32 %v3353, %v3354
  %v3356 = vsub.f32 1.0, %v3355
  %v3357 = vmul.f32 %v3354, %v3356
  %v3358 = vadd.f32 %v3354, %v3357
  %vm3359 = vweird.f32 %v3353
  %vm3360 = vweird.f32 %v3354
  %vm3361 = vmor %vm3359, %vm3360
  %v3362 = vsel %vm3361, %v3354, %v3358
  %v3363 = vand.u32 2147483647, %v3353
  %vm3364 = vcmp.eq.f32.partialorder %v3363, 8.507059e+37
  %v3365 = vand.u32 %v3353, 2147483648
  %v3366 = vor.u32 1.1754944e-38, %v3365
  %v3367 = vsel %vm3364, %v3366, %v3362
  %v3368 = vmul.f32 1.0, %v3367
  %v3369 = vtanh.pop %v3329
  %v3370 = vxor.u32 %v3330, 2147483648
  %v3371 = vmul.f32 %v3370, 1.442695
  %v3372 = vpow.pop %v3371
  %v3373 = vadd.f32 %v3372, 1.0
  %v3374 = vrcp.pop %v3373
  %v3375 = vmul.f32 %v3373, %v3374
  %v3376 = vsub.f32 1.0, %v3375
  %v3377 = vmul.f32 %v3374, %v3376
  %v3378 = vadd.f32 %v3374, %v3377
  %vm3379 = vweird.f32 %v3373
  %vm3380 = vweird.f32 %v3374
  %vm3381 = vmor %vm3379, %vm3380
  %v3382 = vsel %vm3381, %v3374, %v3378
  %v3383 = vand.u32 2147483647, %v3373
  %vm3384 = vcmp.eq.f32.partialorder %v3383, 8.507059e+37
  %v3385 = vand.u32 %v3373, 2147483648
  %v3386 = vor.u32 1.1754944e-38, %v3385
  %v3387 = vsel %vm3384, %v3386, %v3382
  %v3388 = vmul.f32 1.0, %v3387
  %v3389 = vmul.f32 %v3368, %v3239
  %v3390 = vmul.f32 %v3349, %v3369
  %v3391 = vadd.f32 %v3389, %v3390
  %v3392 = vtanh.pop %v3391
  %v3393 = vmul.f32 %v3388, %v3392
  %3394 = vst [vmem:[%s1569] sm:$0xff] %v3393
  %v3395 = vld [vmem:[%s1573] sm:$0xff]
  %v3396 = vld [vmem:[%s1573 + $0x8] sm:$0xff]
  %v3397 = vld [vmem:[%s1573 + $0x10] sm:$0xff]
  %v3398 = vld [vmem:[%s1573 + $0x18] sm:$0xff]
  %3399 = vmatpush.msra.mxu0 %v2327
  %3400 = vmatpush.msra.mxu0 %v2323
  %3401 = vmatpush.msra.mxu0 %v2319
  %3402 = vmatpush.msra.mxu0 %v2315
  %3403 = vmatpush.msra.mxu0 %v2311
  %3404 = vmatpush.msra.mxu0 %v2307
  %3405 = vmatpush.msra.mxu0 %v2303
  %3406 = vmatpush.msra.mxu0 %v2299
  %3407 = vmatpush.msra.mxu0 %v2295
  %3408 = vmatpush.msra.mxu0 %v2291
  %3409 = vmatpush.msra.mxu0 %v2287
  %3410 = vmatpush.msra.mxu0 %v2283
  %3411 = vmatpush.msra.mxu0 %v2279
  %3412 = vmatpush.msra.mxu0 %v2275
  %3413 = vmatpush.msra.mxu0 %v2271
  %3414 = vmatpush.msra.mxu0 %v2267
  %3415 = vmatmul.f32.gmra.mxu0 %v3393
  %v3416 = vpop.f32.mrf.mxu0
  %v3417 = vadd.f32 0.0, %v3416
  %3418 = vdwg.mxu0
  %3419 = vmatpush.msra.mxu0 %v2328
  %3420 = vmatpush.msra.mxu0 %v2324
  %3421 = vmatpush.msra.mxu0 %v2320
  %3422 = vmatpush.msra.mxu0 %v2316
  %3423 = vmatpush.msra.mxu0 %v2312
  %3424 = vmatpush.msra.mxu0 %v2308
  %3425 = vmatpush.msra.mxu0 %v2304
  %3426 = vmatpush.msra.mxu0 %v2300
  %3427 = vmatpush.msra.mxu0 %v2296
  %3428 = vmatpush.msra.mxu0 %v2292
  %3429 = vmatpush.msra.mxu0 %v2288
  %3430 = vmatpush.msra.mxu0 %v2284
  %3431 = vmatpush.msra.mxu0 %v2280
  %3432 = vmatpush.msra.mxu0 %v2276
  %3433 = vmatpush.msra.mxu0 %v2272
  %3434 = vmatpush.msra.mxu0 %v2268
  %3435 = vmatmul.f32.gmra.mxu0 %v3393
  %v3436 = vpop.f32.mrf.mxu0
  %v3437 = vadd.f32 0.0, %v3436
  %3438 = vdwg.mxu0
  %3439 = vmatpush.msra.mxu0 %v2329
  %3440 = vmatpush.msra.mxu0 %v2325
  %3441 = vmatpush.msra.mxu0 %v2321
  %3442 = vmatpush.msra.mxu0 %v2317
  %3443 = vmatpush.msra.mxu0 %v2313
  %3444 = vmatpush.msra.mxu0 %v2309
  %3445 = vmatpush.msra.mxu0 %v2305
  %3446 = vmatpush.msra.mxu0 %v2301
  %3447 = vmatpush.msra.mxu0 %v2297
  %3448 = vmatpush.msra.mxu0 %v2293
  %3449 = vmatpush.msra.mxu0 %v2289
  %3450 = vmatpush.msra.mxu0 %v2285
  %3451 = vmatpush.msra.mxu0 %v2281
  %3452 = vmatpush.msra.mxu0 %v2277
  %3453 = vmatpush.msra.mxu0 %v2273
  %3454 = vmatpush.msra.mxu0 %v2269
  %3455 = vmatmul.f32.gmra.mxu0 %v3393
  %v3456 = vpop.f32.mrf.mxu0
  %v3457 = vadd.f32 0.0, %v3456
  %3458 = vdwg.mxu0
  %3459 = vmatpush.msra.mxu0 %v2330
  %3460 = vmatpush.msra.mxu0 %v2326
  %3461 = vmatpush.msra.mxu0 %v2322
  %3462 = vmatpush.msra.mxu0 %v2318
  %3463 = vmatpush.msra.mxu0 %v2314
  %3464 = vmatpush.msra.mxu0 %v2310
  %3465 = vmatpush.msra.mxu0 %v2306
  %3466 = vmatpush.msra.mxu0 %v2302
  %3467 = vmatpush.msra.mxu0 %v2298
  %3468 = vmatpush.msra.mxu0 %v2294
  %3469 = vmatpush.msra.mxu0 %v2290
  %3470 = vmatpush.msra.mxu0 %v2286
  %3471 = vmatpush.msra.mxu0 %v2282
  %3472 = vmatpush.msra.mxu0 %v2278
  %3473 = vmatpush.msra.mxu0 %v2274
  %3474 = vmatpush.msra.mxu0 %v2270
  %3475 = vmatmul.f32.gmra.mxu0 %v3393
  %v3476 = vpop.f32.mrf.mxu0
  %v3477 = vadd.f32 0.0, %v3476
  %3478 = vdwg.mxu0
  %v3479 = vadd.f32 %v3395, %v3417
  %v3480 = vadd.f32 %v3396, %v3437
  %v3481 = vadd.f32 %v3397, %v3457
  %v3482 = vadd.f32 %v3398, %v3477
  %v3483 = vxor.u32 %v3479, 2147483648
  %v3484 = vmul.f32 %v3483, 1.442695
  %v3485 = vpow.pop %v3484
  %v3486 = vadd.f32 %v3485, 1.0
  %v3487 = vrcp.pop %v3486
  %v3488 = vmul.f32 %v3486, %v3487
  %v3489 = vsub.f32 1.0, %v3488
  %v3490 = vmul.f32 %v3487, %v3489
  %v3491 = vadd.f32 %v3487, %v3490
  %vm3492 = vweird.f32 %v3486
  %vm3493 = vweird.f32 %v3487
  %vm3494 = vmor %vm3492, %vm3493
  %v3495 = vsel %vm3494, %v3487, %v3491
  %v3496 = vand.u32 2147483647, %v3486
  %vm3497 = vcmp.eq.f32.partialorder %v3496, 8.507059e+37
  %v3498 = vand.u32 %v3486, 2147483648
  %v3499 = vor.u32 1.1754944e-38, %v3498
  %v3500 = vsel %vm3497, %v3499, %v3495
  %v3501 = vmul.f32 1.0, %v3500
  %v3502 = vxor.u32 %v3480, 2147483648
  %v3503 = vmul.f32 %v3502, 1.442695
  %v3504 = vpow.pop %v3503
  %v3505 = vadd.f32 %v3504, 1.0
  %v3506 = vrcp.pop %v3505
  %v3507 = vmul.f32 %v3505, %v3506
  %v3508 = vsub.f32 1.0, %v3507
  %v3509 = vmul.f32 %v3506, %v3508
  %v3510 = vadd.f32 %v3506, %v3509
  %vm3511 = vweird.f32 %v3505
  %vm3512 = vweird.f32 %v3506
  %vm3513 = vmor %vm3511, %vm3512
  %v3514 = vsel %vm3513, %v3506, %v3510
  %v3515 = vand.u32 2147483647, %v3505
  %vm3516 = vcmp.eq.f32.partialorder %v3515, 8.507059e+37
  %v3517 = vand.u32 %v3505, 2147483648
  %v3518 = vor.u32 1.1754944e-38, %v3517
  %v3519 = vsel %vm3516, %v3518, %v3514
  %v3520 = vmul.f32 1.0, %v3519
  %v3521 = vtanh.pop %v3481
  %v3522 = vxor.u32 %v3482, 2147483648
  %v3523 = vmul.f32 %v3522, 1.442695
  %v3524 = vpow.pop %v3523
  %v3525 = vadd.f32 %v3524, 1.0
  %v3526 = vrcp.pop %v3525
  %v3527 = vmul.f32 %v3525, %v3526
  %v3528 = vsub.f32 1.0, %v3527
  %v3529 = vmul.f32 %v3526, %v3528
  %v3530 = vadd.f32 %v3526, %v3529
  %vm3531 = vweird.f32 %v3525
  %vm3532 = vweird.f32 %v3526
  %vm3533 = vmor %vm3531, %vm3532
  %v3534 = vsel %vm3533, %v3526, %v3530
  %v3535 = vand.u32 2147483647, %v3525
  %vm3536 = vcmp.eq.f32.partialorder %v3535, 8.507059e+37
  %v3537 = vand.u32 %v3525, 2147483648
  %v3538 = vor.u32 1.1754944e-38, %v3537
  %v3539 = vsel %vm3536, %v3538, %v3534
  %v3540 = vmul.f32 1.0, %v3539
  %v3541 = vmul.f32 %v3520, %v3391
  %v3542 = vmul.f32 %v3501, %v3521
  %v3543 = vadd.f32 %v3541, %v3542
  %v3544 = vtanh.pop %v3543
  %v3545 = vmul.f32 %v3540, %v3544
  %3546 = vst [vmem:[%s1725] sm:$0xff] %v3545
  %v3547 = vld [vmem:[%s1729] sm:$0xff]
  %v3548 = vld [vmem:[%s1729 + $0x8] sm:$0xff]
  %v3549 = vld [vmem:[%s1729 + $0x10] sm:$0xff]
  %v3550 = vld [vmem:[%s1729 + $0x18] sm:$0xff]
  %3551 = vmatpush.msra.mxu0 %v2327
  %3552 = vmatpush.msra.mxu0 %v2323
  %3553 = vmatpush.msra.mxu0 %v2319
  %3554 = vmatpush.msra.mxu0 %v2315
  %3555 = vmatpush.msra.mxu0 %v2311
  %3556 = vmatpush.msra.mxu0 %v2307
  %3557 = vmatpush.msra.mxu0 %v2303
  %3558 = vmatpush.msra.mxu0 %v2299
  %3559 = vmatpush.msra.mxu0 %v2295
  %3560 = vmatpush.msra.mxu0 %v2291
  %3561 = vmatpush.msra.mxu0 %v2287
  %3562 = vmatpush.msra.mxu0 %v2283
  %3563 = vmatpush.msra.mxu0 %v2279
  %3564 = vmatpush.msra.mxu0 %v2275
  %3565 = vmatpush.msra.mxu0 %v2271
  %3566 = vmatpush.msra.mxu0 %v2267
  %3567 = vmatmul.f32.gmra.mxu0 %v3545
  %v3568 = vpop.f32.mrf.mxu0
  %v3569 = vadd.f32 0.0, %v3568
  %3570 = vdwg.mxu0
  %3571 = vmatpush.msra.mxu0 %v2328
  %3572 = vmatpush.msra.mxu0 %v2324
  %3573 = vmatpush.msra.mxu0 %v2320
  %3574 = vmatpush.msra.mxu0 %v2316
  %3575 = vmatpush.msra.mxu0 %v2312
  %3576 = vmatpush.msra.mxu0 %v2308
  %3577 = vmatpush.msra.mxu0 %v2304
  %3578 = vmatpush.msra.mxu0 %v2300
  %3579 = vmatpush.msra.mxu0 %v2296
  %3580 = vmatpush.msra.mxu0 %v2292
  %3581 = vmatpush.msra.mxu0 %v2288
  %3582 = vmatpush.msra.mxu0 %v2284
  %3583 = vmatpush.msra.mxu0 %v2280
  %3584 = vmatpush.msra.mxu0 %v2276
  %3585 = vmatpush.msra.mxu0 %v2272
  %3586 = vmatpush.msra.mxu0 %v2268
  %3587 = vmatmul.f32.gmra.mxu0 %v3545
  %v3588 = vpop.f32.mrf.mxu0
  %v3589 = vadd.f32 0.0, %v3588
  %3590 = vdwg.mxu0
  %3591 = vmatpush.msra.mxu0 %v2329
  %3592 = vmatpush.msra.mxu0 %v2325
  %3593 = vmatpush.msra.mxu0 %v2321
  %3594 = vmatpush.msra.mxu0 %v2317
  %3595 = vmatpush.msra.mxu0 %v2313
  %3596 = vmatpush.msra.mxu0 %v2309
  %3597 = vmatpush.msra.mxu0 %v2305
  %3598 = vmatpush.msra.mxu0 %v2301
  %3599 = vmatpush.msra.mxu0 %v2297
  %3600 = vmatpush.msra.mxu0 %v2293
  %3601 = vmatpush.msra.mxu0 %v2289
  %3602 = vmatpush.msra.mxu0 %v2285
  %3603 = vmatpush.msra.mxu0 %v2281
  %3604 = vmatpush.msra.mxu0 %v2277
  %3605 = vmatpush.msra.mxu0 %v2273
  %3606 = vmatpush.msra.mxu0 %v2269
  %3607 = vmatmul.f32.gmra.mxu0 %v3545
  %v3608 = vpop.f32.mrf.mxu0
  %v3609 = vadd.f32 0.0, %v3608
  %3610 = vdwg.mxu0
  %3611 = vmatpush.msra.mxu0 %v2330
  %3612 = vmatpush.msra.mxu0 %v2326
  %3613 = vmatpush.msra.mxu0 %v2322
  %3614 = vmatpush.msra.mxu0 %v2318
  %3615 = vmatpush.msra.mxu0 %v2314
  %3616 = vmatpush.msra.mxu0 %v2310
  %3617 = vmatpush.msra.mxu0 %v2306
  %3618 = vmatpush.msra.mxu0 %v2302
  %3619 = vmatpush.msra.mxu0 %v2298
  %3620 = vmatpush.msra.mxu0 %v2294
  %3621 = vmatpush.msra.mxu0 %v2290
  %3622 = vmatpush.msra.mxu0 %v2286
  %3623 = vmatpush.msra.mxu0 %v2282
  %3624 = vmatpush.msra.mxu0 %v2278
  %3625 = vmatpush.msra.mxu0 %v2274
  %3626 = vmatpush.msra.mxu0 %v2270
  %3627 = vmatmul.f32.gmra.mxu0 %v3545
  %v3628 = vpop.f32.mrf.mxu0
  %v3629 = vadd.f32 0.0, %v3628
  %3630 = vdwg.mxu0
  %v3631 = vadd.f32 %v3547, %v3569
  %v3632 = vadd.f32 %v3548, %v3589
  %v3633 = vadd.f32 %v3549, %v3609
  %v3634 = vadd.f32 %v3550, %v3629
  %v3635 = vxor.u32 %v3631, 2147483648
  %v3636 = vmul.f32 %v3635, 1.442695
  %v3637 = vpow.pop %v3636
  %v3638 = vadd.f32 %v3637, 1.0
  %v3639 = vrcp.pop %v3638
  %v3640 = vmul.f32 %v3638, %v3639
  %v3641 = vsub.f32 1.0, %v3640
  %v3642 = vmul.f32 %v3639, %v3641
  %v3643 = vadd.f32 %v3639, %v3642
  %vm3644 = vweird.f32 %v3638
  %vm3645 = vweird.f32 %v3639
  %vm3646 = vmor %vm3644, %vm3645
  %v3647 = vsel %vm3646, %v3639, %v3643
  %v3648 = vand.u32 2147483647, %v3638
  %vm3649 = vcmp.eq.f32.partialorder %v3648, 8.507059e+37
  %v3650 = vand.u32 %v3638, 2147483648
  %v3651 = vor.u32 1.1754944e-38, %v3650
  %v3652 = vsel %vm3649, %v3651, %v3647
  %v3653 = vmul.f32 1.0, %v3652
  %v3654 = vxor.u32 %v3632, 2147483648
  %v3655 = vmul.f32 %v3654, 1.442695
  %v3656 = vpow.pop %v3655
  %v3657 = vadd.f32 %v3656, 1.0
  %v3658 = vrcp.pop %v3657
  %v3659 = vmul.f32 %v3657, %v3658
  %v3660 = vsub.f32 1.0, %v3659
  %v3661 = vmul.f32 %v3658, %v3660
  %v3662 = vadd.f32 %v3658, %v3661
  %vm3663 = vweird.f32 %v3657
  %vm3664 = vweird.f32 %v3658
  %vm3665 = vmor %vm3663, %vm3664
  %v3666 = vsel %vm3665, %v3658, %v3662
  %v3667 = vand.u32 2147483647, %v3657
  %vm3668 = vcmp.eq.f32.partialorder %v3667, 8.507059e+37
  %v3669 = vand.u32 %v3657, 2147483648
  %v3670 = vor.u32 1.1754944e-38, %v3669
  %v3671 = vsel %vm3668, %v3670, %v3666
  %v3672 = vmul.f32 1.0, %v3671
  %v3673 = vtanh.pop %v3633
  %v3674 = vxor.u32 %v3634, 2147483648
  %v3675 = vmul.f32 %v3674, 1.442695
  %v3676 = vpow.pop %v3675
  %v3677 = vadd.f32 %v3676, 1.0
  %v3678 = vrcp.pop %v3677
  %v3679 = vmul.f32 %v3677, %v3678
  %v3680 = vsub.f32 1.0, %v3679
  %v3681 = vmul.f32 %v3678, %v3680
  %v3682 = vadd.f32 %v3678, %v3681
  %vm3683 = vweird.f32 %v3677
  %vm3684 = vweird.f32 %v3678
  %vm3685 = vmor %vm3683, %vm3684
  %v3686 = vsel %vm3685, %v3678, %v3682
  %v3687 = vand.u32 2147483647, %v3677
  %vm3688 = vcmp.eq.f32.partialorder %v3687, 8.507059e+37
  %v3689 = vand.u32 %v3677, 2147483648
  %v3690 = vor.u32 1.1754944e-38, %v3689
  %v3691 = vsel %vm3688, %v3690, %v3686
  %v3692 = vmul.f32 1.0, %v3691
  %v3693 = vmul.f32 %v3672, %v3543
  %v3694 = vmul.f32 %v3653, %v3673
  %v3695 = vadd.f32 %v3693, %v3694
  %v3696 = vtanh.pop %v3695
  %v3697 = vmul.f32 %v3692, %v3696
  %3698 = vst [vmem:[%s1881] sm:$0xff] %v3697
  %v3699 = vld [vmem:[#allocation2] sm:$0xff]
  %v3700 = vld [vmem:[#allocation2 + $0x8] sm:$0xff]
  %v3701 = vld [vmem:[#allocation2 + $0x10] sm:$0xff]
  %v3702 = vld [vmem:[#allocation2 + $0x18] sm:$0xff]
  %v3703 = vld [vmem:[#allocation2 + $0x20] sm:$0xff]
  %v3704 = vld [vmem:[#allocation2 + $0x28] sm:$0xff]
  %v3705 = vld [vmem:[#allocation2 + $0x30] sm:$0xff]
  %v3706 = vld [vmem:[#allocation2 + $0x38] sm:$0xff]
  %v3707 = vld [vmem:[#allocation2 + $0x40] sm:$0xff]
  %v3708 = vpack.c.bf16 %v3700, %v3699
  %v3709 = vpack.c.bf16 %v3702, %v3701
  %v3710 = vpack.c.bf16 %v3704, %v3703
  %v3711 = vpack.c.bf16 %v3706, %v3705
  %v3712 = vpack.c.bf16 %v3707, %v3707
  %v3713 = vld [vmem:[%s7] sm:$0xf]
  %v3714 = vld [vmem:[%s7 + $0x4] sm:$0xf]
  %v3715 = vld [vmem:[%s7 + $0x8] sm:$0xf]
  %v3716 = vld [vmem:[%s7 + $0xc] sm:$0xf]
  %v3717 = vld [vmem:[%s7 + $0x10] sm:$0xf]
  %v3718 = vld [vmem:[%s7 + $0x14] sm:$0xf]
  %v3719 = vld [vmem:[%s7 + $0x18] sm:$0xf]
  %v3720 = vld [vmem:[%s7 + $0x1c] sm:$0xf]
  %v3721 = vld [vmem:[%s7 + $0x20] sm:$0xf]
  %v3722 = vld [vmem:[%s7 + $0x24] sm:$0xf]
  %v3723 = vld [vmem:[%s7 + $0x28] sm:$0xf]
  %v3724 = vld [vmem:[%s7 + $0x2c] sm:$0xf]
  %v3725 = vld [vmem:[%s7 + $0x30] sm:$0xf]
  %v3726 = vld [vmem:[%s7 + $0x34] sm:$0xf]
  %v3727 = vld [vmem:[%s7 + $0x38] sm:$0xf]
  %v3728 = vld [vmem:[%s7 + $0x3c] sm:$0xf]
  %v3729 = vld [vmem:[%s8] sm:$0x1]
  %v3731 = vperm.slane %v3729, 0
  %v3749 = vunpack.c.l.b16 %v3713
  %v3750 = vunpack.c.l.b16 %v3714
  %v3751 = vunpack.c.l.b16 %v3715
  %v3752 = vunpack.c.l.b16 %v3716
  %v3753 = vunpack.c.l.b16 %v3717
  %v3754 = vunpack.c.l.b16 %v3718
  %v3755 = vunpack.c.l.b16 %v3719
  %v3756 = vunpack.c.l.b16 %v3720
  %v3757 = vunpack.c.l.b16 %v3721
  %v3758 = vunpack.c.l.b16 %v3722
  %v3759 = vunpack.c.l.b16 %v3723
  %v3760 = vunpack.c.l.b16 %v3724
  %v3761 = vunpack.c.l.b16 %v3725
  %v3762 = vunpack.c.l.b16 %v3726
  %v3763 = vunpack.c.l.b16 %v3727
  %v3764 = vunpack.c.l.b16 %v3728
  %v3765 = vpack.c.b16 %v3750, %v3749
  %v3766 = vpack.c.b16 %v3752, %v3751
  %v3767 = vpack.c.b16 %v3754, %v3753
  %v3768 = vpack.c.b16 %v3756, %v3755
  %v3769 = vpack.c.b16 %v3758, %v3757
  %v3770 = vpack.c.b16 %v3760, %v3759
  %v3771 = vpack.c.b16 %v3762, %v3761
  %v3772 = vpack.c.b16 %v3764, %v3763
  %3781 = vmatpush.bf16.msra.mxu0 %v3772
  %3782 = vmatpush.bf16.msra.mxu0 %v3771
  %3783 = vmatpush.bf16.msra.mxu0 %v3770
  %3784 = vmatpush.bf16.msra.mxu0 %v3769
  %3785 = vmatpush.bf16.msra.mxu0 %v3768
  %3786 = vmatpush.bf16.msra.mxu0 %v3767
  %3787 = vmatpush.bf16.msra.mxu0 %v3766
  %3788 = vmatpush.bf16.msra.mxu0 %v3765
  %3789 = vmatmul.bf16.gmra.mxu0 %v3708
  %v3790 = vpop.f32.mrf.mxu0
  %v3791 = vadd.f32 %v3731, %v3790
  %v3792 = vpop.f32.mrf.mxu0
  %v3793 = vadd.f32 %v3731, %v3792
  %3794 = vmatmul.bf16.gmra.mxu0 %v3709
  %v3795 = vpop.f32.mrf.mxu0
  %v3796 = vadd.f32 %v3731, %v3795
  %v3797 = vpop.f32.mrf.mxu0
  %v3798 = vadd.f32 %v3731, %v3797
  %3799 = vmatmul.bf16.gmra.mxu0 %v3710
  %v3800 = vpop.f32.mrf.mxu0
  %v3801 = vadd.f32 %v3731, %v3800
  %v3802 = vpop.f32.mrf.mxu0
  %v3803 = vadd.f32 %v3731, %v3802
  %3804 = vmatmul.bf16.gmra.mxu0 %v3711
  %v3805 = vpop.f32.mrf.mxu0
  %v3806 = vadd.f32 %v3731, %v3805
  %v3807 = vpop.f32.mrf.mxu0
  %v3808 = vadd.f32 %v3731, %v3807
  %3809 = vmatmul.bf16.gmra.mxu0 %v3712
  %v3810 = vpop.f32.mrf.mxu0
  %v3811 = vadd.f32 %v3731, %v3810
  %v3812 = vpop.f32.mrf.mxu0
  %3813 = vdwg.mxu0
  %3814 = vst [vmem:[%s9] sm:$0xff] %v3791
  %3815 = vst [vmem:[%s9 + $0x8] sm:$0xff] %v3793
  %3816 = vst [vmem:[%s9 + $0x10] sm:$0xff] %v3796
  %3817 = vst [vmem:[%s9 + $0x18] sm:$0xff] %v3798
  %3818 = vst [vmem:[%s9 + $0x20] sm:$0xff] %v3801
  %3819 = vst [vmem:[%s9 + $0x28] sm:$0xff] %v3803
  %3820 = vst [vmem:[%s9 + $0x30] sm:$0xff] %v3806
  %3821 = vst [vmem:[%s9 + $0x38] sm:$0xff] %v3808
  %3822 = vst [vmem:[%s9 + $0x40] sm:$0xff] %v3811
  // Predicated region
  $region38: #{cnn_to_rnn_forward.3} parent=0 // pred_check
    _
  $region39: #{cnn_to_rnn_forward.3} parent=0 // pred_check_branch
    %3824 = sbr.rel (0) target = $region41
  $region40: #{cnn_to_rnn_forward.3} parent=0 // pred_region
    _
  $region41: #{cnn_to_rnn_forward.3} parent=0 // pred_fallthru
    _
  // Predicated region
  $region42: #{cnn_to_rnn_forward.3} parent=0 // pred_check
    _
  $region43: #{cnn_to_rnn_forward.3} parent=0 // pred_check_branch
    %3826 = sbr.rel (0) target = $region45
  $region44: #{cnn_to_rnn_forward.3} parent=0 // pred_region
    _
  $region45: #{cnn_to_rnn_forward.3} parent=0 // pred_fallthru
    _

</llo_original>
